<compile_context>
chip_gen: v6e
topology: v6e:2x2x1
jax: 0.10.0
libtpu: 0.0.40
codegen_flags: <defaults>
</compile_context>

<pallas_src>
import functools
import math

import jax
import jax.numpy as jnp
from jax.experimental import pallas as pl
from jax.experimental.pallas import tpu as pltpu


# --------------------------- in-kernel helpers ------------------------------ #

def _mm(a, b):
    """MXU matmul: bf16 operands (weights already bf16 in HBM), f32 accum."""
    if a.dtype != jnp.bfloat16:
        a = a.astype(jnp.bfloat16)
    if b.dtype != jnp.bfloat16:
        b = b.astype(jnp.bfloat16)
    return jnp.dot(a, b, preferred_element_type=jnp.float32)


def _mm_nt(a, b):
    """a @ b.T on the MXU (NT form, no materialized transpose).

    TODO(synk): per review, check lowered bundles for a per-head XLU vxpose
    here; if present, transpose each layer's K block once instead.
    """
    if a.dtype != jnp.bfloat16:
        a = a.astype(jnp.bfloat16)
    if b.dtype != jnp.bfloat16:
        b = b.astype(jnp.bfloat16)
    return jax.lax.dot_general(
        a, b, dimension_numbers=(((1,), (1,)), ((), ())),
        preferred_element_type=jnp.float32)


def _layernorm(x, g, b, eps=1e-5):
    mu = jnp.mean(x, axis=-1, keepdims=True)
    xc = x - mu
    var = jnp.mean(xc * xc, axis=-1, keepdims=True)
    return xc * jax.lax.rsqrt(var + eps) * g + b


def _softmax_rows(s, *, approx=False):
    s = s - jnp.max(s, axis=-1, keepdims=True)
    e = jnp.exp(s)
    d = jnp.sum(e, axis=-1, keepdims=True)
    if approx:
        return e * pl.reciprocal(d, approx=True)
    return e / d


# ------------------------------ fused kernel -------------------------------- #
# grid = (num_batch_blocks, layers); layers is the innermost, "arbitrary" axis.

def _clip_block_kernel(
    x_tok_ref,     # [Bblk, T, C*p*p] f32  patches (row 0 = zeros = cls slot)
    w_patch_ref,   # [C*p*p, width]   bf16
    pos_cls_ref,   # [T, width]       f32  pos emb, cls folded into row 0
    sh_ref,        # [4, width]       f32  ln_pre_g, ln_pre_b, ln_post_g, ln_post_b
    lp_ref,        # [1, 6, width]    f32  ln1_g, ln1_b, ln2_g, ln2_b, out_b, pr_b
    qkv_w_ref,     # [1, width, 3W]   bf16
    qkv_b_ref,     # [1, 1, 3W]       f32
    out_w_ref,     # [1, width, W]    bf16
    fc_w_ref,      # [1, width, 4W]   bf16
    fc_b_ref,      # [1, 1, 4W]       f32
    pr_w_ref,      # [1, 4W, width]   bf16
    proj_ref,      # [width, embed]   bf16
    text_t_ref,    # [embed, NT_PAD]  bf16 (pre-T, pre-normalized, lane-padded)
    o_ref,         # [Bblk, NT_PAD]   f32
    x_scr,         # VMEM [Bblk*T, width] f32 — residual stream, carried over l
    attn_scr,      # VMEM [Bblk*T, width] f32 — concat of per-head outputs
    *, heads, bblk, tokens, num_texts):
    width = w_patch_ref.shape[1]
    head_dim = width // heads
    scale = 1.0 / math.sqrt(head_dim)
    rows = bblk * tokens
    l = pl.program_id(1)

    # ---- stem (patch embed + cls/pos + pre-LN): only at layer 0 ----
    @pl.when(l == 0)
    def _():
        for b in range(bblk):
            x_scr[b * tokens:(b + 1) * tokens, :] = (
                _mm(x_tok_ref[b], w_patch_ref[...]) + pos_cls_ref[...])
        x_scr[...] = _layernorm(x_scr[...], sh_ref[0:1, :], sh_ref[1:2, :])

    # ---- one transformer block per grid step along the layer axis ----
    x = x_scr[...]                                       # [rows, width]
    lp = lp_ref[0]                                       # [6, width]

    h = _layernorm(x, lp[0:1, :], lp[1:2, :])            # ln_1
    qkv = _mm(h, qkv_w_ref[0]) + qkv_b_ref[0]            # [rows, 3*width]

    # Per-(image, head) attention at static offsets; each head's output goes to
    # its lane slice of attn_scr so the output projection is ONE matmul/layer.
    for b in range(bblk):
        r0 = b * tokens
        for hh in range(heads):
            lo = hh * head_dim
            q = qkv[r0:r0 + tokens, lo:lo + head_dim] * scale
            k = qkv[r0:r0 + tokens, width + lo:width + lo + head_dim]
            v = qkv[r0:r0 + tokens, 2 * width + lo:2 * width + lo + head_dim]
            p = _softmax_rows(_mm_nt(q, k), approx=False)      # exact softmax
            attn_scr[r0:r0 + tokens, lo:lo + head_dim] = _mm(p, v)

    x = x + _mm(attn_scr[...], out_w_ref[0]) + lp[4:5, :]      # + out_b

    # ---- MLP with QuickGELU (residual fused) ----
    h = _layernorm(x, lp[2:3, :], lp[3:4, :])            # ln_2
    h = _mm(h, fc_w_ref[0]) + fc_b_ref[0]
    h = h * jax.nn.sigmoid(1.702 * h)                    # QuickGELU (f32 VPU)
    x = x + _mm(h, pr_w_ref[0]) + lp[5:6, :]             # + pr_b
    x_scr[...] = x

    # ---- head: post-LN cls, projection, L2 norm, cosine + softmax (last l) ----
    @pl.when(l == pl.num_programs(1) - 1)
    def _():
        cls_rows = jnp.concatenate(
            [x[b * tokens:b * tokens + 1, :] for b in range(bblk)], axis=0)
        cls_rows = _layernorm(cls_rows, sh_ref[2:3, :], sh_ref[3:4, :])
        img = _mm(cls_rows, proj_ref[...])                         # [Bblk, E]
        img = img * jax.lax.rsqrt(
            jnp.sum(img * img, axis=-1, keepdims=True) + 1e-12)
        logits = _mm(img, text_t_ref[...])                         # [Bblk, NT_PAD]
        col = jax.lax.broadcasted_iota(jnp.int32, logits.shape, 1)
        logits = jnp.where(col < num_texts, logits, -1e30)         # mask pad lanes
        o_ref[...] = _softmax_rows(logits, approx=True)            # lane-dense store


# ------------------------- parameters / forward ----------------------------- #

def init_params(key, *, in_ch=3, image=16, patch=8, width=32, layers=2,
                heads=4, embed_dim=16, num_texts=8):
    del heads  # shape-independent here
    n_tok = (image // patch) ** 2 + 1
    cpp = in_ch * patch * patch
    ks = iter(jax.random.split(key, 64))
    s = 0.02
    bf16 = jnp.bfloat16

    def rnd(shape, scale=s):
        return jax.random.normal(next(ks), shape) * scale

    conv_w = rnd((width, in_ch, patch, patch))
    cls = rnd((width,))
    pos = rnd((n_tok, width))

    qkv_w = jnp.stack([rnd((width, 3 * width)) for _ in range(layers)]).astype(bf16)
    qkv_b = jnp.stack([rnd((1, 3 * width)) for _ in range(layers)])
    out_w = jnp.stack([rnd((width, width)) for _ in range(layers)]).astype(bf16)
    fc_w = jnp.stack([rnd((width, 4 * width)) for _ in range(layers)]).astype(bf16)
    fc_b = jnp.stack([rnd((1, 4 * width)) for _ in range(layers)])
    pr_w = jnp.stack([rnd((4 * width, width)) for _ in range(layers)]).astype(bf16)

    # packed per-layer vectors: ln1_g, ln1_b, ln2_g, ln2_b, out_b, pr_b
    ln1_g = 1.0 + jnp.stack([rnd((width,), 0.1) for _ in range(layers)])
    ln1_b = jnp.stack([rnd((width,)) for _ in range(layers)])
    ln2_g = 1.0 + jnp.stack([rnd((width,), 0.1) for _ in range(layers)])
    ln2_b = jnp.stack([rnd((width,)) for _ in range(layers)])
    out_b = jnp.stack([rnd((width,)) for _ in range(layers)])
    pr_b = jnp.stack([rnd((width,)) for _ in range(layers)])
    layer_vecs = jnp.stack([ln1_g, ln1_b, ln2_g, ln2_b, out_b, pr_b], axis=1)

    # packed stem/head vectors: ln_pre_g, ln_pre_b, ln_post_g, ln_post_b
    stem_head = jnp.stack([1.0 + rnd((width,), 0.1), rnd((width,)),
                           1.0 + rnd((width,), 0.1), rnd((width,))])

    proj = rnd((width, embed_dim)).astype(bf16)

    # equip_semantic_modal equivalent: pre-computed, pre-normalized text
    # features, stored pre-transposed so the score matmul needs no .T.
    # TODO(synk): clip.tokenize + encode_text (the text transformer) is
    # replaced by deterministic pre-normalized text features, as the module
    # precomputes them once.
    tf = jax.random.normal(next(ks), (num_texts, embed_dim))
    tf = tf / jnp.linalg.norm(tf, axis=-1, keepdims=True)

    return {
        "w_patch": conv_w.reshape(width, cpp).T.astype(bf16),   # [cpp, width]
        "pos_cls": pos.at[0].add(cls).astype(jnp.float32),      # [T, width]
        "stem_head": stem_head.astype(jnp.float32),             # [4, width]
        "layer_vecs": layer_vecs.astype(jnp.float32),           # [L, 6, width]
        "qkv_w": qkv_w, "qkv_b": qkv_b.astype(jnp.float32),
        "out_w": out_w,
        "fc_w": fc_w, "fc_b": fc_b.astype(jnp.float32),
        "pr_w": pr_w,
        "proj": proj,                                           # [width, embed] bf16
        "text_t": tf.T.astype(bf16),                            # [embed, num_texts]
    }


def clip_super_forward(params, vision_inputs, *, patch, heads):
    B, C, H, W_img = vision_inputs.shape
    width = params["w_patch"].shape[1]
    T = params["pos_cls"].shape[0]
    layers = params["qkv_w"].shape[0]
    embed_dim, num_texts = params["text_t"].shape
    gh, gw = H // patch, W_img // patch
    cpp = C * patch * patch
    assert gh * gw + 1 == T

    # NCHW -> [B, T, C*p*p] patch matrix with a leading zero row per image (the
    # cls-token slot, so "+ pos_cls" yields cls + pos[0]).
    # TODO(synk): this 6-D transpose/concat is the only op outside the fused
    # kernel; an in-kernel gather of NCHW patches has no clean BlockSpec
    # equivalent at this patch layout.
    xp = vision_inputs.reshape(B, C, gh, patch, gw, patch)
    xp = xp.transpose(0, 2, 4, 1, 3, 5).reshape(B, gh * gw, cpp)
    x_tok = jnp.concatenate([jnp.zeros((B, 1, cpp), jnp.float32), xp], axis=1)

    # All images of the (small) batch in one block; the batch-block grid axis
    # stays "parallel" so the same code shards across v7x's two TensorCores
    # when B is split into several blocks.
    bblk = B
    nb = B // bblk

    # Lane-dense output: pad the text-feature lane dim to a multiple of 128.
    nt_pad = max(128, ((num_texts + 127) // 128) * 128)
    text_pad = jnp.zeros((embed_dim, nt_pad), jnp.bfloat16)
    text_pad = text_pad.at[:, :num_texts].set(params["text_t"])

    def invariant(a):
        nd = a.ndim
        return pl.BlockSpec(a.shape, lambda b, l, nd=nd: (0,) * nd,
                            pipeline_mode=pl.Buffered(1))

    def per_layer(a):
        nd = a.ndim
        return pl.BlockSpec((1,) + a.shape[1:],
                            lambda b, l, nd=nd: (l,) + (0,) * (nd - 1))

    in_specs = [
        pl.BlockSpec((bblk, T, cpp), lambda b, l: (b, 0, 0)),   # x_tok
        invariant(params["w_patch"]),
        invariant(params["pos_cls"]),
        invariant(params["stem_head"]),
        per_layer(params["layer_vecs"]),
        per_layer(params["qkv_w"]),
        per_layer(params["qkv_b"]),
        per_layer(params["out_w"]),
        per_layer(params["fc_w"]),
        per_layer(params["fc_b"]),
        per_layer(params["pr_w"]),
        invariant(params["proj"]),
        invariant(text_pad),
    ]

    grid_spec = pltpu.PrefetchScalarGridSpec(
        num_scalar_prefetch=0,
        grid=(nb, layers),
        in_specs=in_specs,
        out_specs=pl.BlockSpec((bblk, nt_pad), lambda b, l: (b, 0)),
        scratch_shapes=[pltpu.VMEM((bblk * T, width), jnp.float32),   # residual x
                        pltpu.VMEM((bblk * T, width), jnp.float32)])  # head concat

    scores_pad = pl.pallas_call(
        functools.partial(_clip_block_kernel, heads=heads, bblk=bblk,
                          tokens=T, num_texts=num_texts),
        out_shape=jax.ShapeDtypeStruct((B, nt_pad), jnp.float32),
        grid_spec=grid_spec,
        compiler_params=pltpu.CompilerParams(
            dimension_semantics=("parallel", "arbitrary"),
            vmem_limit_bytes=48 * 1024 * 1024),   # headroom vs v7x 64 MiB/TC
    )(x_tok, params["w_patch"], params["pos_cls"], params["stem_head"],
      params["layer_vecs"], params["qkv_w"], params["qkv_b"], params["out_w"],
      params["fc_w"], params["fc_b"], params["pr_w"], params["proj"], text_pad)

    return scores_pad[:, :num_texts]


# ----------------------- pure-JAX reference (f32) --------------------------- #

def clip_super_reference(params, vision_inputs, *, patch, heads):
    B, C, H, W_img = vision_inputs.shape
    width = params["w_patch"].shape[1]
    T = params["pos_cls"].shape[0]
    layers = params["qkv_w"].shape[0]
    head_dim = width // heads
    scale = 1.0 / math.sqrt(head_dim)
    gh, gw = H // patch, W_img // patch
    cpp = C * patch * patch
    f32 = lambda a: a.astype(jnp.float32)

    def ln(x, g, b):
        mu = jnp.mean(x, -1, keepdims=True)
        var = jnp.var(x, -1, keepdims=True)
        return (x - mu) / jnp.sqrt(var + 1e-5) * g + b

    sh = params["stem_head"]
    lv = params["layer_vecs"]

    xp = vision_inputs.reshape(B, C, gh, patch, gw, patch)
    xp = xp.transpose(0, 2, 4, 1, 3, 5).reshape(B, gh * gw, cpp)
    x_tok = jnp.concatenate([jnp.zeros((B, 1, cpp), jnp.float32), xp], axis=1)
    x = x_tok @ f32(params["w_patch"]) + params["pos_cls"][None]
    x = ln(x, sh[0], sh[1])
    for l in range(layers):
        h = ln(x, lv[l, 0], lv[l, 1])
        qkv = h @ f32(params["qkv_w"][l]) + params["qkv_b"][l]
        q, k, v = jnp.split(qkv, 3, axis=-1)
        q = q.reshape(B, T, heads, head_dim).transpose(0, 2, 1, 3) * scale
        k = k.reshape(B, T, heads, head_dim).transpose(0, 2, 1, 3)
        v = v.reshape(B, T, heads, head_dim).transpose(0, 2, 1, 3)
        p = jax.nn.softmax(jnp.einsum("bhqd,bhkd->bhqk", q, k), axis=-1)
        a = jnp.einsum("bhqk,bhkd->bhqd", p, v)
        a = a.transpose(0, 2, 1, 3).reshape(B, T, width)
        x = x + a @ f32(params["out_w"][l]) + lv[l, 4]
        h = ln(x, lv[l, 2], lv[l, 3])
        h = h @ f32(params["fc_w"][l]) + params["fc_b"][l]
        h = h * jax.nn.sigmoid(1.702 * h)
        x = x + h @ f32(params["pr_w"][l]) + lv[l, 5]
    cls_tok = ln(x[:, 0, :], sh[2], sh[3])
    img = cls_tok @ f32(params["proj"])
    img = img / jnp.linalg.norm(img, axis=-1, keepdims=True)
    return jax.nn.softmax(img @ f32(params["text_t"]), axis=-1)


if __name__ == "__main__":
    key = jax.random.PRNGKey(0)
    k_params, k_img = jax.random.split(key)

    B, C, H, W = 2, 3, 16, 16
    PATCH, WIDTH, LAYERS, HEADS, EMBED, NTEXT = 8, 32, 2, 4, 16, 8

    params = init_params(k_params, in_ch=C, image=H, patch=PATCH, width=WIDTH,
                         layers=LAYERS, heads=HEADS, embed_dim=EMBED,
                         num_texts=NTEXT)
    vision_inputs = jax.random.normal(k_img, (B, C, H, W), jnp.float32)

    fwd = jax.jit(functools.partial(clip_super_forward, patch=PATCH, heads=HEADS))
    scores = jax.block_until_ready(fwd(params, vision_inputs))

    assert scores.shape == (B, NTEXT)
    assert scores.dtype == jnp.float32
    assert bool(jnp.all(jnp.isfinite(scores)))
    # softmax rows sum to ~1 (approx EUP reciprocal only in the final softmax)
    assert bool(jnp.allclose(jnp.sum(scores, axis=-1), 1.0, atol=5e-3))

    # cross-check against a pure f32 JAX reference (loose tol: bf16 MXU
    # operands inside the kernel)
    ref = clip_super_reference(params, vision_inputs, patch=PATCH, heads=HEADS)
    assert bool(jnp.allclose(scores, ref, atol=2e-2)), (scores, ref)

    print("KERNEL_OK")
</pallas_src>

<mosaic_0001>
module attributes {stable_mosaic.version = 11 : i64} {
  func.func @_clip_block_kernel(%arg0: i32, %arg1: i32, %arg2: memref<2x5x192xf32, #tpu.memory_space<vmem>>, %arg3: memref<192x32xbf16, #tpu.memory_space<vmem>>, %arg4: memref<5x32xf32, #tpu.memory_space<vmem>>, %arg5: memref<4x32xf32, #tpu.memory_space<vmem>>, %arg6: memref<1x6x32xf32, #tpu.memory_space<vmem>>, %arg7: memref<1x32x96xbf16, #tpu.memory_space<vmem>>, %arg8: memref<1x1x96xf32, #tpu.memory_space<vmem>>, %arg9: memref<1x32x32xbf16, #tpu.memory_space<vmem>>, %arg10: memref<1x32x128xbf16, #tpu.memory_space<vmem>>, %arg11: memref<1x1x128xf32, #tpu.memory_space<vmem>>, %arg12: memref<1x128x32xbf16, #tpu.memory_space<vmem>>, %arg13: memref<32x16xbf16, #tpu.memory_space<vmem>>, %arg14: memref<16x128xbf16, #tpu.memory_space<vmem>>, %arg15: memref<2x128xf32, #tpu.memory_space<vmem>>, %arg16: memref<10x32xf32, #tpu.memory_space<vmem>>, %arg17: memref<10x32xf32, #tpu.memory_space<vmem>>) attributes {dimension_semantics = [#tpu.dimension_semantics<parallel>, #tpu.dimension_semantics<arbitrary>], iteration_bounds = array<i64: 1, 2>, scalar_prefetch = 0 : i64, scratch_operands = 2 : i64, tpu.core_type = #tpu.core_type<tc>, window_params = [{transform_indices = @transform_0, window_bounds = array<i64: 2, 5, 192>}, {pipeline_mode = #tpu.pipeline_mode<synchronous>, transform_indices = @transform_1, window_bounds = array<i64: 192, 32>}, {pipeline_mode = #tpu.pipeline_mode<synchronous>, transform_indices = @transform_2, window_bounds = array<i64: 5, 32>}, {pipeline_mode = #tpu.pipeline_mode<synchronous>, transform_indices = @transform_3, window_bounds = array<i64: 4, 32>}, {transform_indices = @transform_4, window_bounds = array<i64: 1, 6, 32>}, {transform_indices = @transform_5, window_bounds = array<i64: 1, 32, 96>}, {transform_indices = @transform_6, window_bounds = array<i64: 1, 1, 96>}, {transform_indices = @transform_7, window_bounds = array<i64: 1, 32, 32>}, {transform_indices = @transform_8, window_bounds = array<i64: 1, 32, 128>}, {transform_indices = @transform_9, window_bounds = array<i64: 1, 1, 128>}, {transform_indices = @transform_10, window_bounds = array<i64: 1, 128, 32>}, {pipeline_mode = #tpu.pipeline_mode<synchronous>, transform_indices = @transform_11, window_bounds = array<i64: 32, 16>}, {pipeline_mode = #tpu.pipeline_mode<synchronous>, transform_indices = @transform_12, window_bounds = array<i64: 16, 128>}, {transform_indices = @transform_13, window_bounds = array<i64: 2, 128>}]} {
    %c0_i32 = arith.constant 0 : i32
    %0 = arith.cmpi eq, %arg1, %c0_i32 : i32
    %1 = arith.extui %0 : i1 to i32
    %c0_i32_0 = arith.constant 0 : i32
    %2 = arith.cmpi ne, %1, %c0_i32_0 : i32
    scf.if %2 {
      %c0_95 = arith.constant 0 : index
      %c0_96 = arith.constant 0 : index
      %c0_97 = arith.constant 0 : index
      %263 = vector.load %arg2[%c0_95, %c0_96, %c0_97] : memref<2x5x192xf32, #tpu.memory_space<vmem>>, vector<1x5x192xf32>
      %264 = vector.shape_cast %263 : vector<1x5x192xf32> to vector<5x192xf32>
      %c0_98 = arith.constant 0 : index
      %c0_99 = arith.constant 0 : index
      %265 = vector.load %arg3[%c0_98, %c0_99] : memref<192x32xbf16, #tpu.memory_space<vmem>>, vector<192x32xbf16>
      %266 = arith.truncf %264 : vector<5x192xf32> to vector<5x192xbf16>
      %cst_100 = arith.constant dense<0.000000e+00> : vector<5x32xf32>
      %267 = tpu.matmul %266, %265, %cst_100 {dimension_numbers = #tpu.dot_dimension_numbers<[1], [0], [0], [1], [0, 0, 1, 1], [], []>} : vector<5x192xbf16>, vector<192x32xbf16>, vector<5x32xf32> -> vector<5x32xf32>
      %c0_101 = arith.constant 0 : index
      %c0_102 = arith.constant 0 : index
      %268 = vector.load %arg4[%c0_101, %c0_102] : memref<5x32xf32, #tpu.memory_space<vmem>>, vector<5x32xf32>
      %269 = arith.addf %267, %268 : vector<5x32xf32>
      %c0_103 = arith.constant 0 : index
      %c0_104 = arith.constant 0 : index
      %270 = vector.load %arg16[%c0_103, %c0_104] : memref<10x32xf32, #tpu.memory_space<vmem>>, vector<5x32xf32>
      tpu.vector_store %arg16[%c0_103, %c0_104], %269 {strides = array<i32>} : memref<10x32xf32, #tpu.memory_space<vmem>>, vector<5x32xf32>,
      %c1 = arith.constant 1 : index
      %c0_105 = arith.constant 0 : index
      %c0_106 = arith.constant 0 : index
      %271 = vector.load %arg2[%c1, %c0_105, %c0_106] : memref<2x5x192xf32, #tpu.memory_space<vmem>>, vector<1x5x192xf32>
      %272 = vector.shape_cast %271 : vector<1x5x192xf32> to vector<5x192xf32>
      %c0_107 = arith.constant 0 : index
      %c0_108 = arith.constant 0 : index
      %273 = vector.load %arg3[%c0_107, %c0_108] : memref<192x32xbf16, #tpu.memory_space<vmem>>, vector<192x32xbf16>
      %274 = arith.truncf %272 : vector<5x192xf32> to vector<5x192xbf16>
      %cst_109 = arith.constant dense<0.000000e+00> : vector<5x32xf32>
      %275 = tpu.matmul %274, %273, %cst_109 {dimension_numbers = #tpu.dot_dimension_numbers<[1], [0], [0], [1], [0, 0, 1, 1], [], []>} : vector<5x192xbf16>, vector<192x32xbf16>, vector<5x32xf32> -> vector<5x32xf32>
      %c0_110 = arith.constant 0 : index
      %c0_111 = arith.constant 0 : index
      %276 = vector.load %arg4[%c0_110, %c0_111] : memref<5x32xf32, #tpu.memory_space<vmem>>, vector<5x32xf32>
      %277 = arith.addf %275, %276 : vector<5x32xf32>
      %c5_112 = arith.constant 5 : index
      %c0_113 = arith.constant 0 : index
      %278 = vector.load %arg16[%c5_112, %c0_113] : memref<10x32xf32, #tpu.memory_space<vmem>>, vector<5x32xf32>
      tpu.vector_store %arg16[%c5_112, %c0_113], %277 {strides = array<i32>} : memref<10x32xf32, #tpu.memory_space<vmem>>, vector<5x32xf32>,
      %c0_114 = arith.constant 0 : index
      %c0_115 = arith.constant 0 : index
      %279 = vector.load %arg16[%c0_114, %c0_115] : memref<10x32xf32, #tpu.memory_space<vmem>>, vector<10x32xf32>
      %c0_116 = arith.constant 0 : index
      %c0_117 = arith.constant 0 : index
      %280 = vector.load %arg5[%c0_116, %c0_117] : memref<4x32xf32, #tpu.memory_space<vmem>>, vector<1x32xf32>
      %c1_118 = arith.constant 1 : index
      %c0_119 = arith.constant 0 : index
      %281 = vector.load %arg5[%c1_118, %c0_119] : memref<4x32xf32, #tpu.memory_space<vmem>>, vector<1x32xf32>
      %cst_120 = arith.constant dense<0.000000e+00> : vector<10xf32>
      %282 = vector.multi_reduction <add>, %279, %cst_120 [1] : vector<10x32xf32> to vector<10xf32>
      %283 = vector.shape_cast %282 : vector<10xf32> to vector<10x1xf32>
      %cst_121 = arith.constant 3.200000e+01 : f32
      %284 = vector.broadcast %cst_121 : f32 to vector<10x1xf32>
      %285 = arith.divf %283, %284 : vector<10x1xf32>
      %286 = vector.broadcast %285 : vector<10x1xf32> to vector<10x32xf32>
      %287 = arith.subf %279, %286 : vector<10x32xf32>
      %288 = arith.mulf %287, %287 : vector<10x32xf32>
      %cst_122 = arith.constant dense<0.000000e+00> : vector<10xf32>
      %289 = vector.multi_reduction <add>, %288, %cst_122 [1] : vector<10x32xf32> to vector<10xf32>
      %290 = vector.shape_cast %289 : vector<10xf32> to vector<10x1xf32>
      %cst_123 = arith.constant 3.200000e+01 : f32
      %291 = vector.broadcast %cst_123 : f32 to vector<10x1xf32>
      %292 = arith.divf %290, %291 : vector<10x1xf32>
      %cst_124 = arith.constant 9.99999974E-6 : f32
      %293 = vector.broadcast %cst_124 : f32 to vector<10x1xf32>
      %294 = arith.addf %292, %293 : vector<10x1xf32>
      %295 = math.rsqrt %294 : vector<10x1xf32>
      %296 = vector.broadcast %295 : vector<10x1xf32> to vector<10x32xf32>
      %297 = arith.mulf %287, %296 : vector<10x32xf32>
      %298 = vector.broadcast %280 : vector<1x32xf32> to vector<10x32xf32>
      %299 = arith.mulf %297, %298 : vector<10x32xf32>
      %300 = vector.broadcast %281 : vector<1x32xf32> to vector<10x32xf32>
      %301 = arith.addf %299, %300 : vector<10x32xf32>
      %c0_125 = arith.constant 0 : index
      %c0_126 = arith.constant 0 : index
      %302 = vector.load %arg16[%c0_125, %c0_126] : memref<10x32xf32, #tpu.memory_space<vmem>>, vector<10x32xf32>
      tpu.vector_store %arg16[%c0_125, %c0_126], %301 {strides = array<i32>} : memref<10x32xf32, #tpu.memory_space<vmem>>, vector<10x32xf32>,
    } else {
    }
    %c0 = arith.constant 0 : index
    %c0_1 = arith.constant 0 : index
    %3 = vector.load %arg16[%c0, %c0_1] : memref<10x32xf32, #tpu.memory_space<vmem>>, vector<10x32xf32>
    %c0_2 = arith.constant 0 : index
    %c0_3 = arith.constant 0 : index
    %c0_4 = arith.constant 0 : index
    %4 = vector.load %arg6[%c0_2, %c0_3, %c0_4] : memref<1x6x32xf32, #tpu.memory_space<vmem>>, vector<1x6x32xf32>
    %5 = vector.shape_cast %4 : vector<1x6x32xf32> to vector<6x32xf32>
    %6 = vector.extract_strided_slice %5 {offsets = [0, 0], sizes = [1, 32], strides = [1, 1]} : vector<6x32xf32> to vector<1x32xf32>
    %7 = vector.extract_strided_slice %5 {offsets = [1, 0], sizes = [1, 32], strides = [1, 1]} : vector<6x32xf32> to vector<1x32xf32>
    %cst = arith.constant dense<0.000000e+00> : vector<10xf32>
    %8 = vector.multi_reduction <add>, %3, %cst [1] : vector<10x32xf32> to vector<10xf32>
    %9 = vector.shape_cast %8 : vector<10xf32> to vector<10x1xf32>
    %cst_5 = arith.constant 3.200000e+01 : f32
    %10 = vector.broadcast %cst_5 : f32 to vector<10x1xf32>
    %11 = arith.divf %9, %10 : vector<10x1xf32>
    %12 = vector.broadcast %11 : vector<10x1xf32> to vector<10x32xf32>
    %13 = arith.subf %3, %12 : vector<10x32xf32>
    %14 = arith.mulf %13, %13 : vector<10x32xf32>
    %cst_6 = arith.constant dense<0.000000e+00> : vector<10xf32>
    %15 = vector.multi_reduction <add>, %14, %cst_6 [1] : vector<10x32xf32> to vector<10xf32>
    %16 = vector.shape_cast %15 : vector<10xf32> to vector<10x1xf32>
    %cst_7 = arith.constant 3.200000e+01 : f32
    %17 = vector.broadcast %cst_7 : f32 to vector<10x1xf32>
    %18 = arith.divf %16, %17 : vector<10x1xf32>
    %cst_8 = arith.constant 9.99999974E-6 : f32
    %19 = vector.broadcast %cst_8 : f32 to vector<10x1xf32>
    %20 = arith.addf %18, %19 : vector<10x1xf32>
    %21 = math.rsqrt %20 : vector<10x1xf32>
    %22 = vector.broadcast %21 : vector<10x1xf32> to vector<10x32xf32>
    %23 = arith.mulf %13, %22 : vector<10x32xf32>
    %24 = vector.broadcast %6 : vector<1x32xf32> to vector<10x32xf32>
    %25 = arith.mulf %23, %24 : vector<10x32xf32>
    %26 = vector.broadcast %7 : vector<1x32xf32> to vector<10x32xf32>
    %27 = arith.addf %25, %26 : vector<10x32xf32>
    %c0_9 = arith.constant 0 : index
    %c0_10 = arith.constant 0 : index
    %c0_11 = arith.constant 0 : index
    %28 = vector.load %arg7[%c0_9, %c0_10, %c0_11] : memref<1x32x96xbf16, #tpu.memory_space<vmem>>, vector<1x32x96xbf16>
    %29 = vector.shape_cast %28 : vector<1x32x96xbf16> to vector<32x96xbf16>
    %30 = arith.truncf %27 : vector<10x32xf32> to vector<10x32xbf16>
    %cst_12 = arith.constant dense<0.000000e+00> : vector<10x96xf32>
    %31 = tpu.matmul %30, %29, %cst_12 {dimension_numbers = #tpu.dot_dimension_numbers<[1], [0], [0], [1], [0, 0, 1, 1], [], []>} : vector<10x32xbf16>, vector<32x96xbf16>, vector<10x96xf32> -> vector<10x96xf32>
    %c0_13 = arith.constant 0 : index
    %c0_14 = arith.constant 0 : index
    %c0_15 = arith.constant 0 : index
    %32 = vector.load %arg8[%c0_13, %c0_14, %c0_15] : memref<1x1x96xf32, #tpu.memory_space<vmem>>, vector<1x1x96xf32>
    %33 = vector.shape_cast %32 : vector<1x1x96xf32> to vector<1x96xf32>
    %34 = vector.broadcast %33 : vector<1x96xf32> to vector<10x96xf32>
    %35 = arith.addf %31, %34 : vector<10x96xf32>
    %36 = vector.extract_strided_slice %35 {offsets = [0, 0], sizes = [5, 8], strides = [1, 1]} : vector<10x96xf32> to vector<5x8xf32>
    %cst_16 = arith.constant 0.353553385 : f32
    %37 = vector.broadcast %cst_16 : f32 to vector<5x8xf32>
    %38 = arith.mulf %36, %37 : vector<5x8xf32>
    %39 = vector.extract_strided_slice %35 {offsets = [0, 32], sizes = [5, 8], strides = [1, 1]} : vector<10x96xf32> to vector<5x8xf32>
    %40 = vector.extract_strided_slice %35 {offsets = [0, 64], sizes = [5, 8], strides = [1, 1]} : vector<10x96xf32> to vector<5x8xf32>
    %41 = arith.truncf %38 : vector<5x8xf32> to vector<5x8xbf16>
    %42 = arith.truncf %39 : vector<5x8xf32> to vector<5x8xbf16>
    %cst_17 = arith.constant dense<0.000000e+00> : vector<5x5xf32>
    %43 = tpu.matmul %41, %42, %cst_17 {dimension_numbers = #tpu.dot_dimension_numbers<[1], [1], [0], [0], [0, 0, 1, 0], [], []>} : vector<5x8xbf16>, vector<5x8xbf16>, vector<5x5xf32> -> vector<5x5xf32>
    %cst_18 = arith.constant dense<0xFF800000> : vector<5xf32>
    %44 = vector.multi_reduction <maximumf>, %43, %cst_18 [1] : vector<5x5xf32> to vector<5xf32>
    %45 = vector.shape_cast %44 : vector<5xf32> to vector<5x1xf32>
    %46 = vector.broadcast %45 : vector<5x1xf32> to vector<5x5xf32>
    %47 = arith.subf %43, %46 : vector<5x5xf32>
    %48 = math.exp %47 : vector<5x5xf32>
    %cst_19 = arith.constant dense<0.000000e+00> : vector<5xf32>
    %49 = vector.multi_reduction <add>, %48, %cst_19 [1] : vector<5x5xf32> to vector<5xf32>
    %50 = vector.shape_cast %49 : vector<5xf32> to vector<5x1xf32>
    %51 = vector.broadcast %50 : vector<5x1xf32> to vector<5x5xf32>
    %52 = arith.divf %48, %51 : vector<5x5xf32>
    %53 = arith.truncf %52 : vector<5x5xf32> to vector<5x5xbf16>
    %54 = arith.truncf %40 : vector<5x8xf32> to vector<5x8xbf16>
    %cst_20 = arith.constant dense<0.000000e+00> : vector<5x8xf32>
    %55 = tpu.matmul %53, %54, %cst_20 {dimension_numbers = #tpu.dot_dimension_numbers<[1], [0], [0], [1], [0, 0, 1, 1], [], []>} : vector<5x5xbf16>, vector<5x8xbf16>, vector<5x8xf32> -> vector<5x8xf32>
    %c0_21 = arith.constant 0 : index
    %c0_22 = arith.constant 0 : index
    %56 = vector.load %arg17[%c0_21, %c0_22] : memref<10x32xf32, #tpu.memory_space<vmem>>, vector<5x8xf32>
    tpu.vector_store %arg17[%c0_21, %c0_22], %55 {strides = array<i32>} : memref<10x32xf32, #tpu.memory_space<vmem>>, vector<5x8xf32>,
    %57 = vector.extract_strided_slice %35 {offsets = [0, 8], sizes = [5, 8], strides = [1, 1]} : vector<10x96xf32> to vector<5x8xf32>
    %cst_23 = arith.constant 0.353553385 : f32
    %58 = vector.broadcast %cst_23 : f32 to vector<5x8xf32>
    %59 = arith.mulf %57, %58 : vector<5x8xf32>
    %60 = vector.extract_strided_slice %35 {offsets = [0, 40], sizes = [5, 8], strides = [1, 1]} : vector<10x96xf32> to vector<5x8xf32>
    %61 = vector.extract_strided_slice %35 {offsets = [0, 72], sizes = [5, 8], strides = [1, 1]} : vector<10x96xf32> to vector<5x8xf32>
    %62 = arith.truncf %59 : vector<5x8xf32> to vector<5x8xbf16>
    %63 = arith.truncf %60 : vector<5x8xf32> to vector<5x8xbf16>
    %cst_24 = arith.constant dense<0.000000e+00> : vector<5x5xf32>
    %64 = tpu.matmul %62, %63, %cst_24 {dimension_numbers = #tpu.dot_dimension_numbers<[1], [1], [0], [0], [0, 0, 1, 0], [], []>} : vector<5x8xbf16>, vector<5x8xbf16>, vector<5x5xf32> -> vector<5x5xf32>
    %cst_25 = arith.constant dense<0xFF800000> : vector<5xf32>
    %65 = vector.multi_reduction <maximumf>, %64, %cst_25 [1] : vector<5x5xf32> to vector<5xf32>
    %66 = vector.shape_cast %65 : vector<5xf32> to vector<5x1xf32>
    %67 = vector.broadcast %66 : vector<5x1xf32> to vector<5x5xf32>
    %68 = arith.subf %64, %67 : vector<5x5xf32>
    %69 = math.exp %68 : vector<5x5xf32>
    %cst_26 = arith.constant dense<0.000000e+00> : vector<5xf32>
    %70 = vector.multi_reduction <add>, %69, %cst_26 [1] : vector<5x5xf32> to vector<5xf32>
    %71 = vector.shape_cast %70 : vector<5xf32> to vector<5x1xf32>
    %72 = vector.broadcast %71 : vector<5x1xf32> to vector<5x5xf32>
    %73 = arith.divf %69, %72 : vector<5x5xf32>
    %74 = arith.truncf %73 : vector<5x5xf32> to vector<5x5xbf16>
    %75 = arith.truncf %61 : vector<5x8xf32> to vector<5x8xbf16>
    %cst_27 = arith.constant dense<0.000000e+00> : vector<5x8xf32>
    %76 = tpu.matmul %74, %75, %cst_27 {dimension_numbers = #tpu.dot_dimension_numbers<[1], [0], [0], [1], [0, 0, 1, 1], [], []>} : vector<5x5xbf16>, vector<5x8xbf16>, vector<5x8xf32> -> vector<5x8xf32>
    %c0_28 = arith.constant 0 : index
    %c8 = arith.constant 8 : index
    %77 = vector.load %arg17[%c0_28, %c8] : memref<10x32xf32, #tpu.memory_space<vmem>>, vector<5x8xf32>
    tpu.vector_store %arg17[%c0_28, %c8], %76 {strides = array<i32>} : memref<10x32xf32, #tpu.memory_space<vmem>>, vector<5x8xf32>,
    %78 = vector.extract_strided_slice %35 {offsets = [0, 16], sizes = [5, 8], strides = [1, 1]} : vector<10x96xf32> to vector<5x8xf32>
    %cst_29 = arith.constant 0.353553385 : f32
    %79 = vector.broadcast %cst_29 : f32 to vector<5x8xf32>
    %80 = arith.mulf %78, %79 : vector<5x8xf32>
    %81 = vector.extract_strided_slice %35 {offsets = [0, 48], sizes = [5, 8], strides = [1, 1]} : vector<10x96xf32> to vector<5x8xf32>
    %82 = vector.extract_strided_slice %35 {offsets = [0, 80], sizes = [5, 8], strides = [1, 1]} : vector<10x96xf32> to vector<5x8xf32>
    %83 = arith.truncf %80 : vector<5x8xf32> to vector<5x8xbf16>
    %84 = arith.truncf %81 : vector<5x8xf32> to vector<5x8xbf16>
    %cst_30 = arith.constant dense<0.000000e+00> : vector<5x5xf32>
    %85 = tpu.matmul %83, %84, %cst_30 {dimension_numbers = #tpu.dot_dimension_numbers<[1], [1], [0], [0], [0, 0, 1, 0], [], []>} : vector<5x8xbf16>, vector<5x8xbf16>, vector<5x5xf32> -> vector<5x5xf32>
    %cst_31 = arith.constant dense<0xFF800000> : vector<5xf32>
    %86 = vector.multi_reduction <maximumf>, %85, %cst_31 [1] : vector<5x5xf32> to vector<5xf32>
    %87 = vector.shape_cast %86 : vector<5xf32> to vector<5x1xf32>
    %88 = vector.broadcast %87 : vector<5x1xf32> to vector<5x5xf32>
    %89 = arith.subf %85, %88 : vector<5x5xf32>
    %90 = math.exp %89 : vector<5x5xf32>
    %cst_32 = arith.constant dense<0.000000e+00> : vector<5xf32>
    %91 = vector.multi_reduction <add>, %90, %cst_32 [1] : vector<5x5xf32> to vector<5xf32>
    %92 = vector.shape_cast %91 : vector<5xf32> to vector<5x1xf32>
    %93 = vector.broadcast %92 : vector<5x1xf32> to vector<5x5xf32>
    %94 = arith.divf %90, %93 : vector<5x5xf32>
    %95 = arith.truncf %94 : vector<5x5xf32> to vector<5x5xbf16>
    %96 = arith.truncf %82 : vector<5x8xf32> to vector<5x8xbf16>
    %cst_33 = arith.constant dense<0.000000e+00> : vector<5x8xf32>
    %97 = tpu.matmul %95, %96, %cst_33 {dimension_numbers = #tpu.dot_dimension_numbers<[1], [0], [0], [1], [0, 0, 1, 1], [], []>} : vector<5x5xbf16>, vector<5x8xbf16>, vector<5x8xf32> -> vector<5x8xf32>
    %c0_34 = arith.constant 0 : index
    %c16 = arith.constant 16 : index
    %98 = vector.load %arg17[%c0_34, %c16] : memref<10x32xf32, #tpu.memory_space<vmem>>, vector<5x8xf32>
    tpu.vector_store %arg17[%c0_34, %c16], %97 {strides = array<i32>} : memref<10x32xf32, #tpu.memory_space<vmem>>, vector<5x8xf32>,
    %99 = vector.extract_strided_slice %35 {offsets = [0, 24], sizes = [5, 8], strides = [1, 1]} : vector<10x96xf32> to vector<5x8xf32>
    %cst_35 = arith.constant 0.353553385 : f32
    %100 = vector.broadcast %cst_35 : f32 to vector<5x8xf32>
    %101 = arith.mulf %99, %100 : vector<5x8xf32>
    %102 = vector.extract_strided_slice %35 {offsets = [0, 56], sizes = [5, 8], strides = [1, 1]} : vector<10x96xf32> to vector<5x8xf32>
    %103 = vector.extract_strided_slice %35 {offsets = [0, 88], sizes = [5, 8], strides = [1, 1]} : vector<10x96xf32> to vector<5x8xf32>
    %104 = arith.truncf %101 : vector<5x8xf32> to vector<5x8xbf16>
    %105 = arith.truncf %102 : vector<5x8xf32> to vector<5x8xbf16>
    %cst_36 = arith.constant dense<0.000000e+00> : vector<5x5xf32>
    %106 = tpu.matmul %104, %105, %cst_36 {dimension_numbers = #tpu.dot_dimension_numbers<[1], [1], [0], [0], [0, 0, 1, 0], [], []>} : vector<5x8xbf16>, vector<5x8xbf16>, vector<5x5xf32> -> vector<5x5xf32>
    %cst_37 = arith.constant dense<0xFF800000> : vector<5xf32>
    %107 = vector.multi_reduction <maximumf>, %106, %cst_37 [1] : vector<5x5xf32> to vector<5xf32>
    %108 = vector.shape_cast %107 : vector<5xf32> to vector<5x1xf32>
    %109 = vector.broadcast %108 : vector<5x1xf32> to vector<5x5xf32>
    %110 = arith.subf %106, %109 : vector<5x5xf32>
    %111 = math.exp %110 : vector<5x5xf32>
    %cst_38 = arith.constant dense<0.000000e+00> : vector<5xf32>
    %112 = vector.multi_reduction <add>, %111, %cst_38 [1] : vector<5x5xf32> to vector<5xf32>
    %113 = vector.shape_cast %112 : vector<5xf32> to vector<5x1xf32>
    %114 = vector.broadcast %113 : vector<5x1xf32> to vector<5x5xf32>
    %115 = arith.divf %111, %114 : vector<5x5xf32>
    %116 = arith.truncf %115 : vector<5x5xf32> to vector<5x5xbf16>
    %117 = arith.truncf %103 : vector<5x8xf32> to vector<5x8xbf16>
    %cst_39 = arith.constant dense<0.000000e+00> : vector<5x8xf32>
    %118 = tpu.matmul %116, %117, %cst_39 {dimension_numbers = #tpu.dot_dimension_numbers<[1], [0], [0], [1], [0, 0, 1, 1], [], []>} : vector<5x5xbf16>, vector<5x8xbf16>, vector<5x8xf32> -> vector<5x8xf32>
    %c0_40 = arith.constant 0 : index
    %c24 = arith.constant 24 : index
    %119 = vector.load %arg17[%c0_40, %c24] : memref<10x32xf32, #tpu.memory_space<vmem>>, vector<5x8xf32>
    tpu.vector_store %arg17[%c0_40, %c24], %118 {strides = array<i32>} : memref<10x32xf32, #tpu.memory_space<vmem>>, vector<5x8xf32>,
    %120 = vector.extract_strided_slice %35 {offsets = [5, 0], sizes = [5, 8], strides = [1, 1]} : vector<10x96xf32> to vector<5x8xf32>
    %cst_41 = arith.constant 0.353553385 : f32
    %121 = vector.broadcast %cst_41 : f32 to vector<5x8xf32>
    %122 = arith.mulf %120, %121 : vector<5x8xf32>
    %123 = vector.extract_strided_slice %35 {offsets = [5, 32], sizes = [5, 8], strides = [1, 1]} : vector<10x96xf32> to vector<5x8xf32>
    %124 = vector.extract_strided_slice %35 {offsets = [5, 64], sizes = [5, 8], strides = [1, 1]} : vector<10x96xf32> to vector<5x8xf32>
    %125 = arith.truncf %122 : vector<5x8xf32> to vector<5x8xbf16>
    %126 = arith.truncf %123 : vector<5x8xf32> to vector<5x8xbf16>
    %cst_42 = arith.constant dense<0.000000e+00> : vector<5x5xf32>
    %127 = tpu.matmul %125, %126, %cst_42 {dimension_numbers = #tpu.dot_dimension_numbers<[1], [1], [0], [0], [0, 0, 1, 0], [], []>} : vector<5x8xbf16>, vector<5x8xbf16>, vector<5x5xf32> -> vector<5x5xf32>
    %cst_43 = arith.constant dense<0xFF800000> : vector<5xf32>
    %128 = vector.multi_reduction <maximumf>, %127, %cst_43 [1] : vector<5x5xf32> to vector<5xf32>
    %129 = vector.shape_cast %128 : vector<5xf32> to vector<5x1xf32>
    %130 = vector.broadcast %129 : vector<5x1xf32> to vector<5x5xf32>
    %131 = arith.subf %127, %130 : vector<5x5xf32>
    %132 = math.exp %131 : vector<5x5xf32>
    %cst_44 = arith.constant dense<0.000000e+00> : vector<5xf32>
    %133 = vector.multi_reduction <add>, %132, %cst_44 [1] : vector<5x5xf32> to vector<5xf32>
    %134 = vector.shape_cast %133 : vector<5xf32> to vector<5x1xf32>
    %135 = vector.broadcast %134 : vector<5x1xf32> to vector<5x5xf32>
    %136 = arith.divf %132, %135 : vector<5x5xf32>
    %137 = arith.truncf %136 : vector<5x5xf32> to vector<5x5xbf16>
    %138 = arith.truncf %124 : vector<5x8xf32> to vector<5x8xbf16>
    %cst_45 = arith.constant dense<0.000000e+00> : vector<5x8xf32>
    %139 = tpu.matmul %137, %138, %cst_45 {dimension_numbers = #tpu.dot_dimension_numbers<[1], [0], [0], [1], [0, 0, 1, 1], [], []>} : vector<5x5xbf16>, vector<5x8xbf16>, vector<5x8xf32> -> vector<5x8xf32>
    %c5 = arith.constant 5 : index
    %c0_46 = arith.constant 0 : index
    %140 = vector.load %arg17[%c5, %c0_46] : memref<10x32xf32, #tpu.memory_space<vmem>>, vector<5x8xf32>
    tpu.vector_store %arg17[%c5, %c0_46], %139 {strides = array<i32>} : memref<10x32xf32, #tpu.memory_space<vmem>>, vector<5x8xf32>,
    %141 = vector.extract_strided_slice %35 {offsets = [5, 8], sizes = [5, 8], strides = [1, 1]} : vector<10x96xf32> to vector<5x8xf32>
    %cst_47 = arith.constant 0.353553385 : f32
    %142 = vector.broadcast %cst_47 : f32 to vector<5x8xf32>
    %143 = arith.mulf %141, %142 : vector<5x8xf32>
    %144 = vector.extract_strided_slice %35 {offsets = [5, 40], sizes = [5, 8], strides = [1, 1]} : vector<10x96xf32> to vector<5x8xf32>
    %145 = vector.extract_strided_slice %35 {offsets = [5, 72], sizes = [5, 8], strides = [1, 1]} : vector<10x96xf32> to vector<5x8xf32>
    %146 = arith.truncf %143 : vector<5x8xf32> to vector<5x8xbf16>
    %147 = arith.truncf %144 : vector<5x8xf32> to vector<5x8xbf16>
    %cst_48 = arith.constant dense<0.000000e+00> : vector<5x5xf32>
    %148 = tpu.matmul %146, %147, %cst_48 {dimension_numbers = #tpu.dot_dimension_numbers<[1], [1], [0], [0], [0, 0, 1, 0], [], []>} : vector<5x8xbf16>, vector<5x8xbf16>, vector<5x5xf32> -> vector<5x5xf32>
    %cst_49 = arith.constant dense<0xFF800000> : vector<5xf32>
    %149 = vector.multi_reduction <maximumf>, %148, %cst_49 [1] : vector<5x5xf32> to vector<5xf32>
    %150 = vector.shape_cast %149 : vector<5xf32> to vector<5x1xf32>
    %151 = vector.broadcast %150 : vector<5x1xf32> to vector<5x5xf32>
    %152 = arith.subf %148, %151 : vector<5x5xf32>
    %153 = math.exp %152 : vector<5x5xf32>
    %cst_50 = arith.constant dense<0.000000e+00> : vector<5xf32>
    %154 = vector.multi_reduction <add>, %153, %cst_50 [1] : vector<5x5xf32> to vector<5xf32>
    %155 = vector.shape_cast %154 : vector<5xf32> to vector<5x1xf32>
    %156 = vector.broadcast %155 : vector<5x1xf32> to vector<5x5xf32>
    %157 = arith.divf %153, %156 : vector<5x5xf32>
    %158 = arith.truncf %157 : vector<5x5xf32> to vector<5x5xbf16>
    %159 = arith.truncf %145 : vector<5x8xf32> to vector<5x8xbf16>
    %cst_51 = arith.constant dense<0.000000e+00> : vector<5x8xf32>
    %160 = tpu.matmul %158, %159, %cst_51 {dimension_numbers = #tpu.dot_dimension_numbers<[1], [0], [0], [1], [0, 0, 1, 1], [], []>} : vector<5x5xbf16>, vector<5x8xbf16>, vector<5x8xf32> -> vector<5x8xf32>
    %c5_52 = arith.constant 5 : index
    %c8_53 = arith.constant 8 : index
    %161 = vector.load %arg17[%c5_52, %c8_53] : memref<10x32xf32, #tpu.memory_space<vmem>>, vector<5x8xf32>
    tpu.vector_store %arg17[%c5_52, %c8_53], %160 {strides = array<i32>} : memref<10x32xf32, #tpu.memory_space<vmem>>, vector<5x8xf32>,
    %162 = vector.extract_strided_slice %35 {offsets = [5, 16], sizes = [5, 8], strides = [1, 1]} : vector<10x96xf32> to vector<5x8xf32>
    %cst_54 = arith.constant 0.353553385 : f32
    %163 = vector.broadcast %cst_54 : f32 to vector<5x8xf32>
    %164 = arith.mulf %162, %163 : vector<5x8xf32>
    %165 = vector.extract_strided_slice %35 {offsets = [5, 48], sizes = [5, 8], strides = [1, 1]} : vector<10x96xf32> to vector<5x8xf32>
    %166 = vector.extract_strided_slice %35 {offsets = [5, 80], sizes = [5, 8], strides = [1, 1]} : vector<10x96xf32> to vector<5x8xf32>
    %167 = arith.truncf %164 : vector<5x8xf32> to vector<5x8xbf16>
    %168 = arith.truncf %165 : vector<5x8xf32> to vector<5x8xbf16>
    %cst_55 = arith.constant dense<0.000000e+00> : vector<5x5xf32>
    %169 = tpu.matmul %167, %168, %cst_55 {dimension_numbers = #tpu.dot_dimension_numbers<[1], [1], [0], [0], [0, 0, 1, 0], [], []>} : vector<5x8xbf16>, vector<5x8xbf16>, vector<5x5xf32> -> vector<5x5xf32>
    %cst_56 = arith.constant dense<0xFF800000> : vector<5xf32>
    %170 = vector.multi_reduction <maximumf>, %169, %cst_56 [1] : vector<5x5xf32> to vector<5xf32>
    %171 = vector.shape_cast %170 : vector<5xf32> to vector<5x1xf32>
    %172 = vector.broadcast %171 : vector<5x1xf32> to vector<5x5xf32>
    %173 = arith.subf %169, %172 : vector<5x5xf32>
    %174 = math.exp %173 : vector<5x5xf32>
    %cst_57 = arith.constant dense<0.000000e+00> : vector<5xf32>
    %175 = vector.multi_reduction <add>, %174, %cst_57 [1] : vector<5x5xf32> to vector<5xf32>
    %176 = vector.shape_cast %175 : vector<5xf32> to vector<5x1xf32>
    %177 = vector.broadcast %176 : vector<5x1xf32> to vector<5x5xf32>
    %178 = arith.divf %174, %177 : vector<5x5xf32>
    %179 = arith.truncf %178 : vector<5x5xf32> to vector<5x5xbf16>
    %180 = arith.truncf %166 : vector<5x8xf32> to vector<5x8xbf16>
    %cst_58 = arith.constant dense<0.000000e+00> : vector<5x8xf32>
    %181 = tpu.matmul %179, %180, %cst_58 {dimension_numbers = #tpu.dot_dimension_numbers<[1], [0], [0], [1], [0, 0, 1, 1], [], []>} : vector<5x5xbf16>, vector<5x8xbf16>, vector<5x8xf32> -> vector<5x8xf32>
    %c5_59 = arith.constant 5 : index
    %c16_60 = arith.constant 16 : index
    %182 = vector.load %arg17[%c5_59, %c16_60] : memref<10x32xf32, #tpu.memory_space<vmem>>, vector<5x8xf32>
    tpu.vector_store %arg17[%c5_59, %c16_60], %181 {strides = array<i32>} : memref<10x32xf32, #tpu.memory_space<vmem>>, vector<5x8xf32>,
    %183 = vector.extract_strided_slice %35 {offsets = [5, 24], sizes = [5, 8], strides = [1, 1]} : vector<10x96xf32> to vector<5x8xf32>
    %cst_61 = arith.constant 0.353553385 : f32
    %184 = vector.broadcast %cst_61 : f32 to vector<5x8xf32>
    %185 = arith.mulf %183, %184 : vector<5x8xf32>
    %186 = vector.extract_strided_slice %35 {offsets = [5, 56], sizes = [5, 8], strides = [1, 1]} : vector<10x96xf32> to vector<5x8xf32>
    %187 = vector.extract_strided_slice %35 {offsets = [5, 88], sizes = [5, 8], strides = [1, 1]} : vector<10x96xf32> to vector<5x8xf32>
    %188 = arith.truncf %185 : vector<5x8xf32> to vector<5x8xbf16>
    %189 = arith.truncf %186 : vector<5x8xf32> to vector<5x8xbf16>
    %cst_62 = arith.constant dense<0.000000e+00> : vector<5x5xf32>
    %190 = tpu.matmul %188, %189, %cst_62 {dimension_numbers = #tpu.dot_dimension_numbers<[1], [1], [0], [0], [0, 0, 1, 0], [], []>} : vector<5x8xbf16>, vector<5x8xbf16>, vector<5x5xf32> -> vector<5x5xf32>
    %cst_63 = arith.constant dense<0xFF800000> : vector<5xf32>
    %191 = vector.multi_reduction <maximumf>, %190, %cst_63 [1] : vector<5x5xf32> to vector<5xf32>
    %192 = vector.shape_cast %191 : vector<5xf32> to vector<5x1xf32>
    %193 = vector.broadcast %192 : vector<5x1xf32> to vector<5x5xf32>
    %194 = arith.subf %190, %193 : vector<5x5xf32>
    %195 = math.exp %194 : vector<5x5xf32>
    %cst_64 = arith.constant dense<0.000000e+00> : vector<5xf32>
    %196 = vector.multi_reduction <add>, %195, %cst_64 [1] : vector<5x5xf32> to vector<5xf32>
    %197 = vector.shape_cast %196 : vector<5xf32> to vector<5x1xf32>
    %198 = vector.broadcast %197 : vector<5x1xf32> to vector<5x5xf32>
    %199 = arith.divf %195, %198 : vector<5x5xf32>
    %200 = arith.truncf %199 : vector<5x5xf32> to vector<5x5xbf16>
    %201 = arith.truncf %187 : vector<5x8xf32> to vector<5x8xbf16>
    %cst_65 = arith.constant dense<0.000000e+00> : vector<5x8xf32>
    %202 = tpu.matmul %200, %201, %cst_65 {dimension_numbers = #tpu.dot_dimension_numbers<[1], [0], [0], [1], [0, 0, 1, 1], [], []>} : vector<5x5xbf16>, vector<5x8xbf16>, vector<5x8xf32> -> vector<5x8xf32>
    %c5_66 = arith.constant 5 : index
    %c24_67 = arith.constant 24 : index
    %203 = vector.load %arg17[%c5_66, %c24_67] : memref<10x32xf32, #tpu.memory_space<vmem>>, vector<5x8xf32>
    tpu.vector_store %arg17[%c5_66, %c24_67], %202 {strides = array<i32>} : memref<10x32xf32, #tpu.memory_space<vmem>>, vector<5x8xf32>,
    %c0_68 = arith.constant 0 : index
    %c0_69 = arith.constant 0 : index
    %204 = vector.load %arg17[%c0_68, %c0_69] : memref<10x32xf32, #tpu.memory_space<vmem>>, vector<10x32xf32>
    %c0_70 = arith.constant 0 : index
    %c0_71 = arith.constant 0 : index
    %c0_72 = arith.constant 0 : index
    %205 = vector.load %arg9[%c0_70, %c0_71, %c0_72] : memref<1x32x32xbf16, #tpu.memory_space<vmem>>, vector<1x32x32xbf16>
    %206 = vector.shape_cast %205 : vector<1x32x32xbf16> to vector<32x32xbf16>
    %207 = arith.truncf %204 : vector<10x32xf32> to vector<10x32xbf16>
    %cst_73 = arith.constant dense<0.000000e+00> : vector<10x32xf32>
    %208 = tpu.matmul %207, %206, %cst_73 {dimension_numbers = #tpu.dot_dimension_numbers<[1], [0], [0], [1], [0, 0, 1, 1], [], []>} : vector<10x32xbf16>, vector<32x32xbf16>, vector<10x32xf32> -> vector<10x32xf32>
    %209 = arith.addf %3, %208 : vector<10x32xf32>
    %210 = vector.extract_strided_slice %5 {offsets = [4, 0], sizes = [1, 32], strides = [1, 1]} : vector<6x32xf32> to vector<1x32xf32>
    %211 = vector.broadcast %210 : vector<1x32xf32> to vector<10x32xf32>
    %212 = arith.addf %209, %211 : vector<10x32xf32>
    %213 = vector.extract_strided_slice %5 {offsets = [2, 0], sizes = [1, 32], strides = [1, 1]} : vector<6x32xf32> to vector<1x32xf32>
    %214 = vector.extract_strided_slice %5 {offsets = [3, 0], sizes = [1, 32], strides = [1, 1]} : vector<6x32xf32> to vector<1x32xf32>
    %cst_74 = arith.constant dense<0.000000e+00> : vector<10xf32>
    %215 = vector.multi_reduction <add>, %212, %cst_74 [1] : vector<10x32xf32> to vector<10xf32>
    %216 = vector.shape_cast %215 : vector<10xf32> to vector<10x1xf32>
    %cst_75 = arith.constant 3.200000e+01 : f32
    %217 = vector.broadcast %cst_75 : f32 to vector<10x1xf32>
    %218 = arith.divf %216, %217 : vector<10x1xf32>
    %219 = vector.broadcast %218 : vector<10x1xf32> to vector<10x32xf32>
    %220 = arith.subf %212, %219 : vector<10x32xf32>
    %221 = arith.mulf %220, %220 : vector<10x32xf32>
    %cst_76 = arith.constant dense<0.000000e+00> : vector<10xf32>
    %222 = vector.multi_reduction <add>, %221, %cst_76 [1] : vector<10x32xf32> to vector<10xf32>
    %223 = vector.shape_cast %222 : vector<10xf32> to vector<10x1xf32>
    %cst_77 = arith.constant 3.200000e+01 : f32
    %224 = vector.broadcast %cst_77 : f32 to vector<10x1xf32>
    %225 = arith.divf %223, %224 : vector<10x1xf32>
    %cst_78 = arith.constant 9.99999974E-6 : f32
    %226 = vector.broadcast %cst_78 : f32 to vector<10x1xf32>
    %227 = arith.addf %225, %226 : vector<10x1xf32>
    %228 = math.rsqrt %227 : vector<10x1xf32>
    %229 = vector.broadcast %228 : vector<10x1xf32> to vector<10x32xf32>
    %230 = arith.mulf %220, %229 : vector<10x32xf32>
    %231 = vector.broadcast %213 : vector<1x32xf32> to vector<10x32xf32>
    %232 = arith.mulf %230, %231 : vector<10x32xf32>
    %233 = vector.broadcast %214 : vector<1x32xf32> to vector<10x32xf32>
    %234 = arith.addf %232, %233 : vector<10x32xf32>
    %c0_79 = arith.constant 0 : index
    %c0_80 = arith.constant 0 : index
    %c0_81 = arith.constant 0 : index
    %235 = vector.load %arg10[%c0_79, %c0_80, %c0_81] : memref<1x32x128xbf16, #tpu.memory_space<vmem>>, vector<1x32x128xbf16>
    %236 = vector.shape_cast %235 : vector<1x32x128xbf16> to vector<32x128xbf16>
    %237 = arith.truncf %234 : vector<10x32xf32> to vector<10x32xbf16>
    %cst_82 = arith.constant dense<0.000000e+00> : vector<10x128xf32>
    %238 = tpu.matmul %237, %236, %cst_82 {dimension_numbers = #tpu.dot_dimension_numbers<[1], [0], [0], [1], [0, 0, 1, 1], [], []>} : vector<10x32xbf16>, vector<32x128xbf16>, vector<10x128xf32> -> vector<10x128xf32>
    %c0_83 = arith.constant 0 : index
    %c0_84 = arith.constant 0 : index
    %c0_85 = arith.constant 0 : index
    %239 = vector.load %arg11[%c0_83, %c0_84, %c0_85] : memref<1x1x128xf32, #tpu.memory_space<vmem>>, vector<1x1x128xf32>
    %240 = vector.shape_cast %239 : vector<1x1x128xf32> to vector<1x128xf32>
    %241 = vector.broadcast %240 : vector<1x128xf32> to vector<10x128xf32>
    %242 = arith.addf %238, %241 : vector<10x128xf32>
    %cst_86 = arith.constant 1.702000e+00 : f32
    %243 = vector.broadcast %cst_86 : f32 to vector<10x128xf32>
    %244 = arith.mulf %243, %242 : vector<10x128xf32>
    %245 = arith.negf %244 : vector<10x128xf32>
    %246 = math.exp %245 : vector<10x128xf32>
    %cst_87 = arith.constant 1.000000e+00 : f32
    %247 = vector.broadcast %cst_87 : f32 to vector<10x128xf32>
    %248 = arith.addf %247, %246 : vector<10x128xf32>
    %249 = arith.divf %247, %248 : vector<10x128xf32>
    %250 = arith.mulf %242, %249 : vector<10x128xf32>
    %c0_88 = arith.constant 0 : index
    %c0_89 = arith.constant 0 : index
    %c0_90 = arith.constant 0 : index
    %251 = vector.load %arg12[%c0_88, %c0_89, %c0_90] : memref<1x128x32xbf16, #tpu.memory_space<vmem>>, vector<1x128x32xbf16>
    %252 = vector.shape_cast %251 : vector<1x128x32xbf16> to vector<128x32xbf16>
    %253 = arith.truncf %250 : vector<10x128xf32> to vector<10x128xbf16>
    %cst_91 = arith.constant dense<0.000000e+00> : vector<10x32xf32>
    %254 = tpu.matmul %253, %252, %cst_91 {dimension_numbers = #tpu.dot_dimension_numbers<[1], [0], [0], [1], [0, 0, 1, 1], [], []>} : vector<10x128xbf16>, vector<128x32xbf16>, vector<10x32xf32> -> vector<10x32xf32>
    %255 = arith.addf %212, %254 : vector<10x32xf32>
    %256 = vector.extract_strided_slice %5 {offsets = [5, 0], sizes = [1, 32], strides = [1, 1]} : vector<6x32xf32> to vector<1x32xf32>
    %257 = vector.broadcast %256 : vector<1x32xf32> to vector<10x32xf32>
    %258 = arith.addf %255, %257 : vector<10x32xf32>
    %c0_92 = arith.constant 0 : index
    %c0_93 = arith.constant 0 : index
    %259 = vector.load %arg16[%c0_92, %c0_93] : memref<10x32xf32, #tpu.memory_space<vmem>>, vector<10x32xf32>
    tpu.vector_store %arg16[%c0_92, %c0_93], %258 {strides = array<i32>} : memref<10x32xf32, #tpu.memory_space<vmem>>, vector<10x32xf32>,
    %c1_i32 = arith.constant 1 : i32
    %260 = arith.cmpi eq, %arg1, %c1_i32 : i32
    %261 = arith.extui %260 : i1 to i32
    %c0_i32_94 = arith.constant 0 : i32
    %262 = arith.cmpi ne, %261, %c0_i32_94 : i32
    scf.if %262 {
      %263 = vector.extract_strided_slice %258 {offsets = [0, 0], sizes = [1, 32], strides = [1, 1]} : vector<10x32xf32> to vector<1x32xf32>
      %264 = vector.extract_strided_slice %258 {offsets = [5, 0], sizes = [1, 32], strides = [1, 1]} : vector<10x32xf32> to vector<1x32xf32>
      %265 = tpu.concatenate %263, %264 in 0 : vector<1x32xf32>, vector<1x32xf32> -> vector<2x32xf32>
      %c2 = arith.constant 2 : index
      %c0_95 = arith.constant 0 : index
      %266 = vector.load %arg5[%c2, %c0_95] : memref<4x32xf32, #tpu.memory_space<vmem>>, vector<1x32xf32>
      %c3 = arith.constant 3 : index
      %c0_96 = arith.constant 0 : index
      %267 = vector.load %arg5[%c3, %c0_96] : memref<4x32xf32, #tpu.memory_space<vmem>>, vector<1x32xf32>
      %cst_97 = arith.constant dense<0.000000e+00> : vector<2xf32>
      %268 = vector.multi_reduction <add>, %265, %cst_97 [1] : vector<2x32xf32> to vector<2xf32>
      %269 = vector.shape_cast %268 : vector<2xf32> to vector<2x1xf32>
      %cst_98 = arith.constant 3.200000e+01 : f32
      %270 = vector.broadcast %cst_98 : f32 to vector<2x1xf32>
      %271 = arith.divf %269, %270 : vector<2x1xf32>
      %272 = vector.broadcast %271 : vector<2x1xf32> to vector<2x32xf32>
      %273 = arith.subf %265, %272 : vector<2x32xf32>
      %274 = arith.mulf %273, %273 : vector<2x32xf32>
      %cst_99 = arith.constant dense<0.000000e+00> : vector<2xf32>
      %275 = vector.multi_reduction <add>, %274, %cst_99 [1] : vector<2x32xf32> to vector<2xf32>
      %276 = vector.shape_cast %275 : vector<2xf32> to vector<2x1xf32>
      %cst_100 = arith.constant 3.200000e+01 : f32
      %277 = vector.broadcast %cst_100 : f32 to vector<2x1xf32>
      %278 = arith.divf %276, %277 : vector<2x1xf32>
      %cst_101 = arith.constant 9.99999974E-6 : f32
      %279 = vector.broadcast %cst_101 : f32 to vector<2x1xf32>
      %280 = arith.addf %278, %279 : vector<2x1xf32>
      %281 = math.rsqrt %280 : vector<2x1xf32>
      %282 = vector.broadcast %281 : vector<2x1xf32> to vector<2x32xf32>
      %283 = arith.mulf %273, %282 : vector<2x32xf32>
      %284 = vector.broadcast %266 : vector<1x32xf32> to vector<2x32xf32>
      %285 = arith.mulf %283, %284 : vector<2x32xf32>
      %286 = vector.broadcast %267 : vector<1x32xf32> to vector<2x32xf32>
      %287 = arith.addf %285, %286 : vector<2x32xf32>
      %c0_102 = arith.constant 0 : index
      %c0_103 = arith.constant 0 : index
      %288 = vector.load %arg13[%c0_102, %c0_103] : memref<32x16xbf16, #tpu.memory_space<vmem>>, vector<32x16xbf16>
      %289 = arith.truncf %287 : vector<2x32xf32> to vector<2x32xbf16>
      %cst_104 = arith.constant dense<0.000000e+00> : vector<2x16xf32>
      %290 = tpu.matmul %289, %288, %cst_104 {dimension_numbers = #tpu.dot_dimension_numbers<[1], [0], [0], [1], [0, 0, 1, 1], [], []>} : vector<2x32xbf16>, vector<32x16xbf16>, vector<2x16xf32> -> vector<2x16xf32>
      %291 = arith.mulf %290, %290 : vector<2x16xf32>
      %cst_105 = arith.constant dense<0.000000e+00> : vector<2xf32>
      %292 = vector.multi_reduction <add>, %291, %cst_105 [1] : vector<2x16xf32> to vector<2xf32>
      %293 = vector.shape_cast %292 : vector<2xf32> to vector<2x1xf32>
      %cst_106 = arith.constant 9.99999996E-13 : f32
      %294 = vector.broadcast %cst_106 : f32 to vector<2x1xf32>
      %295 = arith.addf %293, %294 : vector<2x1xf32>
      %296 = math.rsqrt %295 : vector<2x1xf32>
      %297 = vector.broadcast %296 : vector<2x1xf32> to vector<2x16xf32>
      %298 = arith.mulf %290, %297 : vector<2x16xf32>
      %c0_107 = arith.constant 0 : index
      %c0_108 = arith.constant 0 : index
      %299 = vector.load %arg14[%c0_107, %c0_108] : memref<16x128xbf16, #tpu.memory_space<vmem>>, vector<16x128xbf16>
      %300 = arith.truncf %298 : vector<2x16xf32> to vector<2x16xbf16>
      %cst_109 = arith.constant dense<0.000000e+00> : vector<2x128xf32>
      %301 = tpu.matmul %300, %299, %cst_109 {dimension_numbers = #tpu.dot_dimension_numbers<[1], [0], [0], [1], [0, 0, 1, 1], [], []>} : vector<2x16xbf16>, vector<16x128xbf16>, vector<2x128xf32> -> vector<2x128xf32>
      %302 = tpu.iota {dimensions = array<i32: 1>} : vector<2x128xi32>
      %c8_i32 = arith.constant 8 : i32
      %303 = vector.broadcast %c8_i32 : i32 to vector<2x128xi32>
      %304 = arith.cmpi slt, %302, %303 : vector<2x128xi32>
      %cst_110 = arith.constant -1.000000e+30 : f32
      %305 = vector.broadcast %cst_110 : f32 to vector<2x128xf32>
      %306 = arith.select %304, %301, %305 : vector<2x128xi1>, vector<2x128xf32>
      %cst_111 = arith.constant dense<0xFF800000> : vector<2xf32>
      %307 = vector.multi_reduction <maximumf>, %306, %cst_111 [1] : vector<2x128xf32> to vector<2xf32>
      %308 = vector.shape_cast %307 : vector<2xf32> to vector<2x1xf32>
      %309 = vector.broadcast %308 : vector<2x1xf32> to vector<2x128xf32>
      %310 = arith.subf %306, %309 : vector<2x128xf32>
      %311 = math.exp %310 : vector<2x128xf32>
      %cst_112 = arith.constant dense<0.000000e+00> : vector<2xf32>
      %312 = vector.multi_reduction <add>, %311, %cst_112 [1] : vector<2x128xf32> to vector<2xf32>
      %313 = vector.shape_cast %312 : vector<2xf32> to vector<2x1xf32>
      %314 = tpu.reciprocal %313 {approx = true} : vector<2x1xf32> -> vector<2x1xf32>
      %315 = vector.broadcast %314 : vector<2x1xf32> to vector<2x128xf32>
      %316 = arith.mulf %311, %315 : vector<2x128xf32>
      %c0_113 = arith.constant 0 : index
      %c0_114 = arith.constant 0 : index
      %317 = vector.load %arg15[%c0_113, %c0_114] : memref<2x128xf32, #tpu.memory_space<vmem>>, vector<2x128xf32>
      tpu.vector_store %arg15[%c0_113, %c0_114], %316 {strides = array<i32>} : memref<2x128xf32, #tpu.memory_space<vmem>>, vector<2x128xf32>,
    } else {
    }
    return
  }
  func.func @transform_0(%arg0: i32, %arg1: i32) -> (i32, i32, i32) {
    %c0_i32 = arith.constant 0 : i32
    %c0_i32_0 = arith.constant 0 : i32
    %c0_i32_1 = arith.constant 0 : i32
    return %arg0, %c0_i32, %c0_i32_0 : i32, i32, i32
  }
  func.func @transform_1(%arg0: i32, %arg1: i32) -> (i32, i32) {
    %c0_i32 = arith.constant 0 : i32
    %c0_i32_0 = arith.constant 0 : i32
    %c0_i32_1 = arith.constant 0 : i32
    return %c0_i32, %c0_i32_0 : i32, i32
  }
  func.func @transform_2(%arg0: i32, %arg1: i32) -> (i32, i32) {
    %c0_i32 = arith.constant 0 : i32
    %c0_i32_0 = arith.constant 0 : i32
    %c0_i32_1 = arith.constant 0 : i32
    return %c0_i32, %c0_i32_0 : i32, i32
  }
  func.func @transform_3(%arg0: i32, %arg1: i32) -> (i32, i32) {
    %c0_i32 = arith.constant 0 : i32
    %c0_i32_0 = arith.constant 0 : i32
    %c0_i32_1 = arith.constant 0 : i32
    return %c0_i32, %c0_i32_0 : i32, i32
  }
  func.func @transform_4(%arg0: i32, %arg1: i32) -> (i32, i32, i32) {
    %c0_i32 = arith.constant 0 : i32
    %c0_i32_0 = arith.constant 0 : i32
    %c0_i32_1 = arith.constant 0 : i32
    return %arg1, %c0_i32, %c0_i32_0 : i32, i32, i32
  }
  func.func @transform_5(%arg0: i32, %arg1: i32) -> (i32, i32, i32) {
    %c0_i32 = arith.constant 0 : i32
    %c0_i32_0 = arith.constant 0 : i32
    %c0_i32_1 = arith.constant 0 : i32
    return %arg1, %c0_i32, %c0_i32_0 : i32, i32, i32
  }
  func.func @transform_6(%arg0: i32, %arg1: i32) -> (i32, i32, i32) {
    %c0_i32 = arith.constant 0 : i32
    %c0_i32_0 = arith.constant 0 : i32
    %c0_i32_1 = arith.constant 0 : i32
    return %arg1, %c0_i32, %c0_i32_0 : i32, i32, i32
  }
  func.func @transform_7(%arg0: i32, %arg1: i32) -> (i32, i32, i32) {
    %c0_i32 = arith.constant 0 : i32
    %c0_i32_0 = arith.constant 0 : i32
    %c0_i32_1 = arith.constant 0 : i32
    return %arg1, %c0_i32, %c0_i32_0 : i32, i32, i32
  }
  func.func @transform_8(%arg0: i32, %arg1: i32) -> (i32, i32, i32) {
    %c0_i32 = arith.constant 0 : i32
    %c0_i32_0 = arith.constant 0 : i32
    %c0_i32_1 = arith.constant 0 : i32
    return %arg1, %c0_i32, %c0_i32_0 : i32, i32, i32
  }
  func.func @transform_9(%arg0: i32, %arg1: i32) -> (i32, i32, i32) {
    %c0_i32 = arith.constant 0 : i32
    %c0_i32_0 = arith.constant 0 : i32
    %c0_i32_1 = arith.constant 0 : i32
    return %arg1, %c0_i32, %c0_i32_0 : i32, i32, i32
  }
  func.func @transform_10(%arg0: i32, %arg1: i32) -> (i32, i32, i32) {
    %c0_i32 = arith.constant 0 : i32
    %c0_i32_0 = arith.constant 0 : i32
    %c0_i32_1 = arith.constant 0 : i32
    return %arg1, %c0_i32, %c0_i32_0 : i32, i32, i32
  }
  func.func @transform_11(%arg0: i32, %arg1: i32) -> (i32, i32) {
    %c0_i32 = arith.constant 0 : i32
    %c0_i32_0 = arith.constant 0 : i32
    %c0_i32_1 = arith.constant 0 : i32
    return %c0_i32, %c0_i32_0 : i32, i32
  }
  func.func @transform_12(%arg0: i32, %arg1: i32) -> (i32, i32) {
    %c0_i32 = arith.constant 0 : i32
    %c0_i32_0 = arith.constant 0 : i32
    %c0_i32_1 = arith.constant 0 : i32
    return %c0_i32, %c0_i32_0 : i32, i32
  }
  func.func @transform_13(%arg0: i32, %arg1: i32) -> (i32, i32) {
    %c0_i32 = arith.constant 0 : i32
    %c0_i32_0 = arith.constant 0 : i32
    return %arg0, %c0_i32 : i32, i32
  }
}

</mosaic_0001>

<llo_original>
// kernel: clip_super_forward.1
$region0: #{clip_super_forward.1}
  #allocation0 [shape = 'u32[]', space=smem, size = 0x4, offset = 0x4, fixed_abs, tag = 'smem constant byte address 0x4 - core index']
  #allocation1 [shape = 'u32[144,128]{1,0:T(1,128)}', space=vmem, size = 0x12000, scoped, tag = 'internal scratch']
  #allocation2 [shape = 'f32[10,32]{1,0:T(8,128)}', space=vmem, size = 0x2000, scoped, tag = 'scratch operand']
  #allocation3 [shape = 'f32[10,32]{1,0:T(8,128)}', space=vmem, size = 0x2000, scoped, tag = 'scratch operand']
  %s0 = inlined_call_operand.vmem [shape: f32[2,5,192], index: 0, kind: input, shape index: {}]
  %s1 = inlined_call_operand.vmem [shape: bf16[192,32], index: 1, kind: input, shape index: {}]
  %s2 = inlined_call_operand.vmem [shape: f32[5,32], index: 2, kind: input, shape index: {}]
  %s3 = inlined_call_operand.vmem [shape: f32[4,32], index: 3, kind: input, shape index: {}]
  %s4 = inlined_call_operand.vmem [shape: f32[2,6,32], index: 4, kind: input, shape index: {}]
  %s5 = inlined_call_operand.vmem [shape: bf16[2,32,96], index: 5, kind: input, shape index: {}]
  %s6 = inlined_call_operand.vmem [shape: f32[2,1,96], index: 6, kind: input, shape index: {}]
  %s7 = inlined_call_operand.vmem [shape: bf16[2,32,32], index: 7, kind: input, shape index: {}]
  %s8 = inlined_call_operand.vmem [shape: bf16[2,32,128], index: 8, kind: input, shape index: {}]
  %s9 = inlined_call_operand.vmem [shape: f32[2,1,128], index: 9, kind: input, shape index: {}]
  %s10 = inlined_call_operand.vmem [shape: bf16[2,128,32], index: 10, kind: input, shape index: {}]
  %s11 = inlined_call_operand.vmem [shape: bf16[32,16], index: 11, kind: input, shape index: {}]
  %s12 = inlined_call_operand.vmem [shape: bf16[16,128], index: 12, kind: input, shape index: {}]
  %s13 = inlined_call_operand.hbm [shape: f32[2,128], index: 13, kind: output, shape index: {}]
  %s14 = sld [smem:[#allocation0]]
  $region93: #{clip_super_forward.1} parent=0
    _
  %s16 = ssub.s32 1, %s14
  %s17 = scalar_select 0, %s16, %s14
  $region1: #{clip_super_forward.1} parent=0
    #allocation4 [shape = 'u8[1024]{0}', space=vmem, size = 0x400, scoped, tag = 'output window, operand 0, single buffered']
    #allocation5 [shape = 's32[2]{0}', space=sflag, size = 0x8, scoped, tag = 'scoped memory for clip_super_forward.1']
    %18 = vsyncpa [#allocation5], 0
    loop: start=0, step=1, limit=4
    $region2: #{clip_super_forward.1} parent=1 // loop_pre_header
      _
    $region3: #{clip_super_forward.1} parent=1 // loop_header
      %s20 = sphi 0, %s24
      %p21 = scmp.ge.s32.totalorder %s20, 4
      %s27 = sphi 0, %s39
      %s28 = sphi 0, %s35
      %s29 = sphi 0, %s27
      %s30 = sphi 0, %s28
      %s31 = sphi 0, %s29
      %s32 = sphi 0, %s30
      %s42 = sphi 0, %s44
      %s45 = sphi 0, %s42
      %s46 = sphi 0, %s45
      %s62 = sphi 0, %s46
      %s66 = sphi 0, %s66
      %s68 = sphi 0, %s66
      %s69 = sphi 0, %s68
      %s83 = sphi 0, %s69
      %s87 = sphi 0, %s87
      %s89 = sphi 0, %s87
      %s90 = sphi 0, %s89
      %s104 = sphi 0, %s90
      %s108 = sphi 0, %s108
      %s110 = sphi 0, %s108
      %s111 = sphi 0, %s110
      %s125 = sphi 0, %s111
      %s131 = sphi 0, %s133
      %s134 = sphi 0, %s131
      %s135 = sphi 0, %s134
      %s151 = sphi 0, %s135
      %s157 = sphi 0, %s159
      %s160 = sphi 0, %s157
      %s161 = sphi 0, %s160
      %s177 = sphi 0, %s161
      %s183 = sphi 0, %s185
      %s186 = sphi 0, %s183
      %s187 = sphi 0, %s186
      %s203 = sphi 0, %s187
      %s209 = sphi 0, %s211
      %s212 = sphi 0, %s209
      %s213 = sphi 0, %s212
      %s229 = sphi 0, %s213
      %s235 = sphi 0, %s237
      %s238 = sphi 0, %s235
      %s239 = sphi 0, %s238
      %s255 = sphi 0, %s239
      %s261 = sphi 0, %s263
      %s264 = sphi 0, %s261
      %s265 = sphi 0, %s264
      %s281 = sphi 0, %s265
      %s287 = sphi 0, %s289
      %s290 = sphi 0, %s287
      %s291 = sphi 0, %s290
      %s307 = sphi 0, %s291
      %s311 = sphi 0, %s311
      %s313 = sphi 0, %s311
      %s314 = sphi 0, %s313
      %s328 = sphi 0, %s314
      %s332 = sphi 0, %s332
      %s334 = sphi 0, %s332
      %s335 = sphi 0, %s334
      %s349 = sphi 0, %s335
      %s355 = sphi 0, %s357
      %s358 = sphi 0, %s355
      %s359 = sphi 0, %s358
      %s375 = sphi 0, %s359
    $region4: #{clip_super_forward.1} parent=1 // loop_header_branch
      %23 = sbr.rel (%p21) target = $region8
    $region5: #{clip_super_forward.1} parent=1 // loop_body
      %s25 = ssub.s32 %s20, 1
      %s26 = ssub.s32 %s20, 2
      %s33 = sadd.s32 1, %s28
      %p34 = scmp.ge.s32.totalorder %s33, 2
      %s35 = scalar_select %p34, 0, %s33
      %s36 = sadd.s32 1, %s27
      %s37 = scalar_select %p34, %s36, %s27
      %p38 = scmp.ge.s32.totalorder %s37, 1
      %s39 = scalar_select %p38, 0, %s37
      %s40 = ssub.s32 %s27, %s39
      %p41 = scmp.eq.s32.totalorder %s40, 0
      %s43 = sadd.s32 %s42, 1
      %s44 = scalar_select %p41, %s42, %s43
      %p47 = pneg %p41
      %p48 = scmp.eq.s32.totalorder %s20, 1
      %p49 = por %p47, %p48
      %p50 = scmp.ne.s32.totalorder %s42, %s45
      %p51 = scmp.eq.s32.totalorder %s20, 0
      %p52 = por %p50, %p51
      %p53 = scmp.ne.s32.totalorder %s42, %s45
      %p54 = scmp.eq.s32.totalorder %s25, 1
      %p55 = por %p53, %p54
      %p56 = scmp.ne.s32.totalorder %s45, %s46
      %p57 = scmp.eq.s32.totalorder %s25, 0
      %p58 = por %p56, %p57
      %p59 = scmp.ne.s32.totalorder %s45, %s46
      %p60 = scmp.eq.s32.totalorder %s26, 1
      %p61 = por %p59, %p60
      %p63 = scmp.ne.s32.totalorder %s46, %s62
      %p64 = scmp.eq.s32.totalorder %s26, 0
      %p65 = por %p63, %p64
      %s67 = sadd.s32 %s66, 1
      %p70 = scmp.eq.s32.totalorder %s20, 1
      %p71 = scmp.ne.s32.totalorder %s66, %s68
      %p72 = scmp.eq.s32.totalorder %s20, 0
      %p73 = por %p71, %p72
      %p74 = scmp.ne.s32.totalorder %s66, %s68
      %p75 = scmp.eq.s32.totalorder %s25, 1
      %p76 = por %p74, %p75
      %p77 = scmp.ne.s32.totalorder %s68, %s69
      %p78 = scmp.eq.s32.totalorder %s25, 0
      %p79 = por %p77, %p78
      %p80 = scmp.ne.s32.totalorder %s68, %s69
      %p81 = scmp.eq.s32.totalorder %s26, 1
      %p82 = por %p80, %p81
      %p84 = scmp.ne.s32.totalorder %s69, %s83
      %p85 = scmp.eq.s32.totalorder %s26, 0
      %p86 = por %p84, %p85
      %s88 = sadd.s32 %s87, 1
      %p91 = scmp.eq.s32.totalorder %s20, 1
      %p92 = scmp.ne.s32.totalorder %s87, %s89
      %p93 = scmp.eq.s32.totalorder %s20, 0
      %p94 = por %p92, %p93
      %p95 = scmp.ne.s32.totalorder %s87, %s89
      %p96 = scmp.eq.s32.totalorder %s25, 1
      %p97 = por %p95, %p96
      %p98 = scmp.ne.s32.totalorder %s89, %s90
      %p99 = scmp.eq.s32.totalorder %s25, 0
      %p100 = por %p98, %p99
      %p101 = scmp.ne.s32.totalorder %s89, %s90
      %p102 = scmp.eq.s32.totalorder %s26, 1
      %p103 = por %p101, %p102
      %p105 = scmp.ne.s32.totalorder %s90, %s104
      %p106 = scmp.eq.s32.totalorder %s26, 0
      %p107 = por %p105, %p106
      %s109 = sadd.s32 %s108, 1
      %p112 = scmp.eq.s32.totalorder %s20, 1
      %p113 = scmp.ne.s32.totalorder %s108, %s110
      %p114 = scmp.eq.s32.totalorder %s20, 0
      %p115 = por %p113, %p114
      %p116 = scmp.ne.s32.totalorder %s108, %s110
      %p117 = scmp.eq.s32.totalorder %s25, 1
      %p118 = por %p116, %p117
      %p119 = scmp.ne.s32.totalorder %s110, %s111
      %p120 = scmp.eq.s32.totalorder %s25, 0
      %p121 = por %p119, %p120
      %p122 = scmp.ne.s32.totalorder %s110, %s111
      %p123 = scmp.eq.s32.totalorder %s26, 1
      %p124 = por %p122, %p123
      %p126 = scmp.ne.s32.totalorder %s111, %s125
      %p127 = scmp.eq.s32.totalorder %s26, 0
      %p128 = por %p126, %p127
      %s129 = ssub.s32 %s28, %s35
      %p130 = scmp.eq.s32.totalorder %s129, 0
      %s132 = sadd.s32 %s131, 1
      %s133 = scalar_select %p130, %s131, %s132
      %p136 = pneg %p130
      %p137 = scmp.eq.s32.totalorder %s20, 1
      %p138 = por %p136, %p137
      %p139 = scmp.ne.s32.totalorder %s131, %s134
      %p140 = scmp.eq.s32.totalorder %s20, 0
      %p141 = por %p139, %p140
      %p142 = scmp.ne.s32.totalorder %s131, %s134
      %p143 = scmp.eq.s32.totalorder %s25, 1
      %p144 = por %p142, %p143
      %p145 = scmp.ne.s32.totalorder %s134, %s135
      %p146 = scmp.eq.s32.totalorder %s25, 0
      %p147 = por %p145, %p146
      %p148 = scmp.ne.s32.totalorder %s134, %s135
      %p149 = scmp.eq.s32.totalorder %s26, 1
      %p150 = por %p148, %p149
      %p152 = scmp.ne.s32.totalorder %s135, %s151
      %p153 = scmp.eq.s32.totalorder %s26, 0
      %p154 = por %p152, %p153
      %s155 = ssub.s32 %s28, %s35
      %p156 = scmp.eq.s32.totalorder %s155, 0
      %s158 = sadd.s32 %s157, 1
      %s159 = scalar_select %p156, %s157, %s158
      %p162 = pneg %p156
      %p163 = scmp.eq.s32.totalorder %s20, 1
      %p164 = por %p162, %p163
      %p165 = scmp.ne.s32.totalorder %s157, %s160
      %p166 = scmp.eq.s32.totalorder %s20, 0
      %p167 = por %p165, %p166
      %p168 = scmp.ne.s32.totalorder %s157, %s160
      %p169 = scmp.eq.s32.totalorder %s25, 1
      %p170 = por %p168, %p169
      %p171 = scmp.ne.s32.totalorder %s160, %s161
      %p172 = scmp.eq.s32.totalorder %s25, 0
      %p173 = por %p171, %p172
      %p174 = scmp.ne.s32.totalorder %s160, %s161
      %p175 = scmp.eq.s32.totalorder %s26, 1
      %p176 = por %p174, %p175
      %p178 = scmp.ne.s32.totalorder %s161, %s177
      %p179 = scmp.eq.s32.totalorder %s26, 0
      %p180 = por %p178, %p179
      %s181 = ssub.s32 %s28, %s35
      %p182 = scmp.eq.s32.totalorder %s181, 0
      %s184 = sadd.s32 %s183, 1
      %s185 = scalar_select %p182, %s183, %s184
      %p188 = pneg %p182
      %p189 = scmp.eq.s32.totalorder %s20, 1
      %p190 = por %p188, %p189
      %p191 = scmp.ne.s32.totalorder %s183, %s186
      %p192 = scmp.eq.s32.totalorder %s20, 0
      %p193 = por %p191, %p192
      %p194 = scmp.ne.s32.totalorder %s183, %s186
      %p195 = scmp.eq.s32.totalorder %s25, 1
      %p196 = por %p194, %p195
      %p197 = scmp.ne.s32.totalorder %s186, %s187
      %p198 = scmp.eq.s32.totalorder %s25, 0
      %p199 = por %p197, %p198
      %p200 = scmp.ne.s32.totalorder %s186, %s187
      %p201 = scmp.eq.s32.totalorder %s26, 1
      %p202 = por %p200, %p201
      %p204 = scmp.ne.s32.totalorder %s187, %s203
      %p205 = scmp.eq.s32.totalorder %s26, 0
      %p206 = por %p204, %p205
      %s207 = ssub.s32 %s28, %s35
      %p208 = scmp.eq.s32.totalorder %s207, 0
      %s210 = sadd.s32 %s209, 1
      %s211 = scalar_select %p208, %s209, %s210
      %p214 = pneg %p208
      %p215 = scmp.eq.s32.totalorder %s20, 1
      %p216 = por %p214, %p215
      %p217 = scmp.ne.s32.totalorder %s209, %s212
      %p218 = scmp.eq.s32.totalorder %s20, 0
      %p219 = por %p217, %p218
      %p220 = scmp.ne.s32.totalorder %s209, %s212
      %p221 = scmp.eq.s32.totalorder %s25, 1
      %p222 = por %p220, %p221
      %p223 = scmp.ne.s32.totalorder %s212, %s213
      %p224 = scmp.eq.s32.totalorder %s25, 0
      %p225 = por %p223, %p224
      %p226 = scmp.ne.s32.totalorder %s212, %s213
      %p227 = scmp.eq.s32.totalorder %s26, 1
      %p228 = por %p226, %p227
      %p230 = scmp.ne.s32.totalorder %s213, %s229
      %p231 = scmp.eq.s32.totalorder %s26, 0
      %p232 = por %p230, %p231
      %s233 = ssub.s32 %s28, %s35
      %p234 = scmp.eq.s32.totalorder %s233, 0
      %s236 = sadd.s32 %s235, 1
      %s237 = scalar_select %p234, %s235, %s236
      %p240 = pneg %p234
      %p241 = scmp.eq.s32.totalorder %s20, 1
      %p242 = por %p240, %p241
      %p243 = scmp.ne.s32.totalorder %s235, %s238
      %p244 = scmp.eq.s32.totalorder %s20, 0
      %p245 = por %p243, %p244
      %p246 = scmp.ne.s32.totalorder %s235, %s238
      %p247 = scmp.eq.s32.totalorder %s25, 1
      %p248 = por %p246, %p247
      %p249 = scmp.ne.s32.totalorder %s238, %s239
      %p250 = scmp.eq.s32.totalorder %s25, 0
      %p251 = por %p249, %p250
      %p252 = scmp.ne.s32.totalorder %s238, %s239
      %p253 = scmp.eq.s32.totalorder %s26, 1
      %p254 = por %p252, %p253
      %p256 = scmp.ne.s32.totalorder %s239, %s255
      %p257 = scmp.eq.s32.totalorder %s26, 0
      %p258 = por %p256, %p257
      %s259 = ssub.s32 %s28, %s35
      %p260 = scmp.eq.s32.totalorder %s259, 0
      %s262 = sadd.s32 %s261, 1
      %s263 = scalar_select %p260, %s261, %s262
      %p266 = pneg %p260
      %p267 = scmp.eq.s32.totalorder %s20, 1
      %p268 = por %p266, %p267
      %p269 = scmp.ne.s32.totalorder %s261, %s264
      %p270 = scmp.eq.s32.totalorder %s20, 0
      %p271 = por %p269, %p270
      %p272 = scmp.ne.s32.totalorder %s261, %s264
      %p273 = scmp.eq.s32.totalorder %s25, 1
      %p274 = por %p272, %p273
      %p275 = scmp.ne.s32.totalorder %s264, %s265
      %p276 = scmp.eq.s32.totalorder %s25, 0
      %p277 = por %p275, %p276
      %p278 = scmp.ne.s32.totalorder %s264, %s265
      %p279 = scmp.eq.s32.totalorder %s26, 1
      %p280 = por %p278, %p279
      %p282 = scmp.ne.s32.totalorder %s265, %s281
      %p283 = scmp.eq.s32.totalorder %s26, 0
      %p284 = por %p282, %p283
      %s285 = ssub.s32 %s28, %s35
      %p286 = scmp.eq.s32.totalorder %s285, 0
      %s288 = sadd.s32 %s287, 1
      %s289 = scalar_select %p286, %s287, %s288
      %p292 = pneg %p286
      %p293 = scmp.eq.s32.totalorder %s20, 1
      %p294 = por %p292, %p293
      %p295 = scmp.ne.s32.totalorder %s287, %s290
      %p296 = scmp.eq.s32.totalorder %s20, 0
      %p297 = por %p295, %p296
      %p298 = scmp.ne.s32.totalorder %s287, %s290
      %p299 = scmp.eq.s32.totalorder %s25, 1
      %p300 = por %p298, %p299
      %p301 = scmp.ne.s32.totalorder %s290, %s291
      %p302 = scmp.eq.s32.totalorder %s25, 0
      %p303 = por %p301, %p302
      %p304 = scmp.ne.s32.totalorder %s290, %s291
      %p305 = scmp.eq.s32.totalorder %s26, 1
      %p306 = por %p304, %p305
      %p308 = scmp.ne.s32.totalorder %s291, %s307
      %p309 = scmp.eq.s32.totalorder %s26, 0
      %p310 = por %p308, %p309
      %s312 = sadd.s32 %s311, 1
      %p315 = scmp.eq.s32.totalorder %s20, 1
      %p316 = scmp.ne.s32.totalorder %s311, %s313
      %p317 = scmp.eq.s32.totalorder %s20, 0
      %p318 = por %p316, %p317
      %p319 = scmp.ne.s32.totalorder %s311, %s313
      %p320 = scmp.eq.s32.totalorder %s25, 1
      %p321 = por %p319, %p320
      %p322 = scmp.ne.s32.totalorder %s313, %s314
      %p323 = scmp.eq.s32.totalorder %s25, 0
      %p324 = por %p322, %p323
      %p325 = scmp.ne.s32.totalorder %s313, %s314
      %p326 = scmp.eq.s32.totalorder %s26, 1
      %p327 = por %p325, %p326
      %p329 = scmp.ne.s32.totalorder %s314, %s328
      %p330 = scmp.eq.s32.totalorder %s26, 0
      %p331 = por %p329, %p330
      %s333 = sadd.s32 %s332, 1
      %p336 = scmp.eq.s32.totalorder %s20, 1
      %p337 = scmp.ne.s32.totalorder %s332, %s334
      %p338 = scmp.eq.s32.totalorder %s20, 0
      %p339 = por %p337, %p338
      %p340 = scmp.ne.s32.totalorder %s332, %s334
      %p341 = scmp.eq.s32.totalorder %s25, 1
      %p342 = por %p340, %p341
      %p343 = scmp.ne.s32.totalorder %s334, %s335
      %p344 = scmp.eq.s32.totalorder %s25, 0
      %p345 = por %p343, %p344
      %p346 = scmp.ne.s32.totalorder %s334, %s335
      %p347 = scmp.eq.s32.totalorder %s26, 1
      %p348 = por %p346, %p347
      %p350 = scmp.ne.s32.totalorder %s335, %s349
      %p351 = scmp.eq.s32.totalorder %s26, 0
      %p352 = por %p350, %p351
      %s353 = ssub.s32 %s27, %s39
      %p354 = scmp.eq.s32.totalorder %s353, 0
      %s356 = sadd.s32 %s355, 1
      %s357 = scalar_select %p354, %s355, %s356
      %p360 = pneg %p354
      %p361 = scmp.eq.s32.totalorder %s20, 1
      %p362 = por %p360, %p361
      %p363 = scmp.ne.s32.totalorder %s355, %s358
      %p364 = scmp.eq.s32.totalorder %s20, 0
      %p365 = por %p363, %p364
      %p366 = scmp.ne.s32.totalorder %s355, %s358
      %p367 = scmp.eq.s32.totalorder %s25, 1
      %p368 = por %p366, %p367
      %p369 = scmp.ne.s32.totalorder %s358, %s359
      %p370 = scmp.eq.s32.totalorder %s25, 0
      %p371 = por %p369, %p370
      %p372 = scmp.ne.s32.totalorder %s358, %s359
      %p373 = scmp.eq.s32.totalorder %s26, 1
      %p374 = por %p372, %p373
      %p376 = scmp.ne.s32.totalorder %s359, %s375
      %p377 = scmp.eq.s32.totalorder %s26, 0
      %p378 = por %p376, %p377
      %p379 = scmp.le.s32.totalorder 1, %s20
      %p380 = scmp.lt.s32.totalorder %s20, 3
      %p381 = pnand %p379, %p380
      %p382 = pneg %p381
      // Predicated region
      $region9: #{clip_super_forward.1} parent=5 // pred_check
        _
      $region10: #{clip_super_forward.1} parent=5 // pred_check_branch
        %384 = sbr.rel (%p381) target = $region12
      $region11: #{clip_super_forward.1} parent=5 // pred_region
        %s385 = ssub.s32 %s20, 1
        // Predicated region
        $region13: #{clip_super_forward.1} parent=11 // pred_check
          %p386 = pneg %p58
        $region14: #{clip_super_forward.1} parent=11 // pred_check_branch
          %388 = sbr.rel (%p386) target = $region16
        $region15: #{clip_super_forward.1} parent=11 // pred_region
          %s389 = smul.u32 2, %s29
          %p390 = scmp.lt.s32.totalorder %s389, 1
          %s391 = scalar_select %p390, %s389, 1
          %s392 = smul.addr %s391, 2
          %s393 = smul.addr %s392, 8
          %s394 = scalar_lea.vmem %s0, %s393
          %s395 = smul.u32 2, %s29
        $region16: #{clip_super_forward.1} parent=11 // pred_fallthru
          _
        // Predicated region
        $region17: #{clip_super_forward.1} parent=11 // pred_check
          %p396 = pneg %p79
        $region18: #{clip_super_forward.1} parent=11 // pred_check_branch
          %398 = sbr.rel (%p396) target = $region20
        $region19: #{clip_super_forward.1} parent=11 // pred_region
          _
        $region20: #{clip_super_forward.1} parent=11 // pred_fallthru
          _
        // Predicated region
        $region21: #{clip_super_forward.1} parent=11 // pred_check
          %p399 = pneg %p100
        $region22: #{clip_super_forward.1} parent=11 // pred_check_branch
          %401 = sbr.rel (%p399) target = $region24
        $region23: #{clip_super_forward.1} parent=11 // pred_region
          _
        $region24: #{clip_super_forward.1} parent=11 // pred_fallthru
          _
        // Predicated region
        $region25: #{clip_super_forward.1} parent=11 // pred_check
          %p402 = pneg %p121
        $region26: #{clip_super_forward.1} parent=11 // pred_check_branch
          %404 = sbr.rel (%p402) target = $region28
        $region27: #{clip_super_forward.1} parent=11 // pred_region
          _
        $region28: #{clip_super_forward.1} parent=11 // pred_fallthru
          _
        // Predicated region
        $region29: #{clip_super_forward.1} parent=11 // pred_check
          %p405 = pneg %p324
        $region30: #{clip_super_forward.1} parent=11 // pred_check_branch
          %407 = sbr.rel (%p405) target = $region32
        $region31: #{clip_super_forward.1} parent=11 // pred_region
          _
        $region32: #{clip_super_forward.1} parent=11 // pred_fallthru
          _
        // Predicated region
        $region33: #{clip_super_forward.1} parent=11 // pred_check
          %p408 = pneg %p345
        $region34: #{clip_super_forward.1} parent=11 // pred_check_branch
          %410 = sbr.rel (%p408) target = $region36
        $region35: #{clip_super_forward.1} parent=11 // pred_region
          _
        $region36: #{clip_super_forward.1} parent=11 // pred_fallthru
          _
      $region12: #{clip_super_forward.1} parent=5 // pred_fallthru
        _
      %p411 = scmp.lt.s32.totalorder %s20, 2
      // Predicated region
      $region37: #{clip_super_forward.1} parent=5 // pred_check
        %p412 = pneg %p411
      $region38: #{clip_super_forward.1} parent=5 // pred_check_branch
        %414 = sbr.rel (%p412) target = $region40
      $region39: #{clip_super_forward.1} parent=5 // pred_region
        // Predicated region
        $region41: #{clip_super_forward.1} parent=39 // pred_check
          %p415 = pneg %p141
        $region42: #{clip_super_forward.1} parent=39 // pred_check_branch
          %417 = sbr.rel (%p415) target = $region44
        $region43: #{clip_super_forward.1} parent=39 // pred_region
          %p418 = scmp.lt.s32.totalorder %s28, 1
          %s419 = scalar_select %p418, %s28, 1
          %s420 = smul.addr %s419, 8
          %s421 = scalar_lea.vmem %s4, %s420
        $region44: #{clip_super_forward.1} parent=39 // pred_fallthru
          _
        // Predicated region
        $region45: #{clip_super_forward.1} parent=39 // pred_check
          %p422 = pneg %p167
        $region46: #{clip_super_forward.1} parent=39 // pred_check_branch
          %424 = sbr.rel (%p422) target = $region48
        $region47: #{clip_super_forward.1} parent=39 // pred_region
          %p425 = scmp.lt.s32.totalorder %s28, 1
          %s426 = scalar_select %p425, %s28, 1
          %s427 = smul.addr %s426, 4
          %s428 = smul.addr %s427, 4
          %s429 = scalar_lea.vmem %s5, %s428
        $region48: #{clip_super_forward.1} parent=39 // pred_fallthru
          _
        // Predicated region
        $region49: #{clip_super_forward.1} parent=39 // pred_check
          %p430 = pneg %p193
        $region50: #{clip_super_forward.1} parent=39 // pred_check_branch
          %432 = sbr.rel (%p430) target = $region52
        $region51: #{clip_super_forward.1} parent=39 // pred_region
          %p433 = scmp.lt.s32.totalorder %s28, 1
          %s434 = scalar_select %p433, %s28, 1
          %s435 = scalar_lea.vmem %s6, %s434
        $region52: #{clip_super_forward.1} parent=39 // pred_fallthru
          _
        // Predicated region
        $region53: #{clip_super_forward.1} parent=39 // pred_check
          %p436 = pneg %p219
        $region54: #{clip_super_forward.1} parent=39 // pred_check_branch
          %438 = sbr.rel (%p436) target = $region56
        $region55: #{clip_super_forward.1} parent=39 // pred_region
          %p439 = scmp.lt.s32.totalorder %s28, 1
          %s440 = scalar_select %p439, %s28, 1
          %s441 = smul.addr %s440, 4
          %s442 = smul.addr %s441, 4
          %s443 = scalar_lea.vmem %s7, %s442
        $region56: #{clip_super_forward.1} parent=39 // pred_fallthru
          _
        // Predicated region
        $region57: #{clip_super_forward.1} parent=39 // pred_check
          %p444 = pneg %p245
        $region58: #{clip_super_forward.1} parent=39 // pred_check_branch
          %446 = sbr.rel (%p444) target = $region60
        $region59: #{clip_super_forward.1} parent=39 // pred_region
          %p447 = scmp.lt.s32.totalorder %s28, 1
          %s448 = scalar_select %p447, %s28, 1
          %s449 = smul.addr %s448, 4
          %s450 = smul.addr %s449, 4
          %s451 = scalar_lea.vmem %s8, %s450
        $region60: #{clip_super_forward.1} parent=39 // pred_fallthru
          _
        // Predicated region
        $region61: #{clip_super_forward.1} parent=39 // pred_check
          %p452 = pneg %p271
        $region62: #{clip_super_forward.1} parent=39 // pred_check_branch
          %454 = sbr.rel (%p452) target = $region64
        $region63: #{clip_super_forward.1} parent=39 // pred_region
          %p455 = scmp.lt.s32.totalorder %s28, 1
          %s456 = scalar_select %p455, %s28, 1
          %s457 = scalar_lea.vmem %s9, %s456
        $region64: #{clip_super_forward.1} parent=39 // pred_fallthru
          _
        // Predicated region
        $region65: #{clip_super_forward.1} parent=39 // pred_check
          %p458 = pneg %p297
        $region66: #{clip_super_forward.1} parent=39 // pred_check_branch
          %460 = sbr.rel (%p458) target = $region68
        $region67: #{clip_super_forward.1} parent=39 // pred_region
          %p461 = scmp.lt.s32.totalorder %s28, 1
          %s462 = scalar_select %p461, %s28, 1
          %s463 = smul.addr %s462, 16
          %s464 = smul.addr %s463, 4
          %s465 = scalar_lea.vmem %s10, %s464
        $region68: #{clip_super_forward.1} parent=39 // pred_fallthru
          _
      $region40: #{clip_super_forward.1} parent=5 // pred_fallthru
        _
      %p466 = scmp.le.s32.totalorder 1, %s20
      %p467 = scmp.lt.s32.totalorder %s20, 3
      %p468 = pnand %p466, %p467
      %p469 = pneg %p468
      // Predicated region
      $region69: #{clip_super_forward.1} parent=5 // pred_check
        _
      $region70: #{clip_super_forward.1} parent=5 // pred_check_branch
        %471 = sbr.rel (%p468) target = $region72
      $region71: #{clip_super_forward.1} parent=5 // pred_region
        %s472 = ssub.s32 %s20, 1
        %s473 = smul.u32 2, %s29
        %p474 = scmp.lt.s32.totalorder %s473, 1
        %s475 = scalar_select %p474, %s473, 1
        %s476 = smul.addr %s475, 2
        %s477 = smul.addr %s476, 8
        %s478 = scalar_lea.vmem %s0, %s477
        %p479 = pneg %p58
        %p480 = pneg %p55
        %p481 = pneg %p79
        %p482 = pneg %p76
        %p483 = pneg %p100
        %p484 = pneg %p97
        %p485 = pneg %p121
        %p486 = pneg %p118
        %p487 = scmp.lt.s32.totalorder %s30, 1
        %s488 = scalar_select %p487, %s30, 1
        %s489 = smul.addr %s488, 8
        %s490 = scalar_lea.vmem %s4, %s489
        %p491 = pneg %p147
        %p492 = pneg %p144
        %p493 = scmp.lt.s32.totalorder %s30, 1
        %s494 = scalar_select %p493, %s30, 1
        %s495 = smul.addr %s494, 4
        %s496 = smul.addr %s495, 4
        %s497 = scalar_lea.vmem %s5, %s496
        %p498 = pneg %p173
        %p499 = pneg %p170
        %p500 = scmp.lt.s32.totalorder %s30, 1
        %s501 = scalar_select %p500, %s30, 1
        %s502 = scalar_lea.vmem %s6, %s501
        %p503 = pneg %p199
        %p504 = pneg %p196
        %p505 = scmp.lt.s32.totalorder %s30, 1
        %s506 = scalar_select %p505, %s30, 1
        %s507 = smul.addr %s506, 4
        %s508 = smul.addr %s507, 4
        %s509 = scalar_lea.vmem %s7, %s508
        %p510 = pneg %p225
        %p511 = pneg %p222
        %p512 = scmp.lt.s32.totalorder %s30, 1
        %s513 = scalar_select %p512, %s30, 1
        %s514 = smul.addr %s513, 4
        %s515 = smul.addr %s514, 4
        %s516 = scalar_lea.vmem %s8, %s515
        %p517 = pneg %p251
        %p518 = pneg %p248
        %p519 = scmp.lt.s32.totalorder %s30, 1
        %s520 = scalar_select %p519, %s30, 1
        %s521 = scalar_lea.vmem %s9, %s520
        %p522 = pneg %p277
        %p523 = pneg %p274
        %p524 = scmp.lt.s32.totalorder %s30, 1
        %s525 = scalar_select %p524, %s30, 1
        %s526 = smul.addr %s525, 16
        %s527 = smul.addr %s526, 4
        %s528 = scalar_lea.vmem %s10, %s527
        %p529 = pneg %p303
        %p530 = pneg %p300
        %p531 = pneg %p324
        %p532 = pneg %p321
        %p533 = pneg %p345
        %p534 = pneg %p342
        %p535 = pneg %p371
        %p536 = pneg %p368
        %s537 = smul.u32 2, %s29
        %p538 = scmp.lt.s32.totalorder %s537, 1
        %s539 = scalar_select %p538, %s537, 1
        %s540 = smul.addr %s539, 2
        %s541 = smul.addr %s540, 8
        %s542 = scalar_lea.vmem %s0, %s541
        %s543 = smul.u32 2, %s29
        %p544 = scmp.lt.s32.totalorder %s30, 1
        %s545 = scalar_select %p544, %s30, 1
        %s546 = smul.addr %s545, 8
        %s547 = scalar_lea.vmem %s4, %s546
        %p548 = scmp.lt.s32.totalorder %s30, 1
        %s549 = scalar_select %p548, %s30, 1
        %s550 = smul.addr %s549, 4
        %s551 = smul.addr %s550, 4
        %s552 = scalar_lea.vmem %s5, %s551
        %p553 = scmp.lt.s32.totalorder %s30, 1
        %s554 = scalar_select %p553, %s30, 1
        %s555 = scalar_lea.vmem %s6, %s554
        %p556 = scmp.lt.s32.totalorder %s30, 1
        %s557 = scalar_select %p556, %s30, 1
        %s558 = smul.addr %s557, 4
        %s559 = smul.addr %s558, 4
        %s560 = scalar_lea.vmem %s7, %s559
        %p561 = scmp.lt.s32.totalorder %s30, 1
        %s562 = scalar_select %p561, %s30, 1
        %s563 = smul.addr %s562, 4
        %s564 = smul.addr %s563, 4
        %s565 = scalar_lea.vmem %s8, %s564
        %p566 = scmp.lt.s32.totalorder %s30, 1
        %s567 = scalar_select %p566, %s30, 1
        %s568 = scalar_lea.vmem %s9, %s567
        %p569 = scmp.lt.s32.totalorder %s30, 1
        %s570 = scalar_select %p569, %s30, 1
        %s571 = smul.addr %s570, 16
        %s572 = smul.addr %s571, 4
        %s573 = scalar_lea.vmem %s10, %s572
        %p575 = scmp.eq.s32.totalorder %s30, 0
        // Predicated region
        $region73: #{clip_super_forward.1} parent=71 // pred_check
          %p576 = pneg %p575
        $region74: #{clip_super_forward.1} parent=71 // pred_check_branch
          %578 = sbr.rel (%p576) target = $region76
        $region75: #{clip_super_forward.1} parent=71 // pred_region
          %v579 = vld [vmem:[%s542] sm:$0x1f]
          %v580 = vld [vmem:[%s542 + $0x8] sm:$0x1f]
          %v581 = vld [vmem:[%s1] sm:$0xf]
          %v582 = vld [vmem:[%s1 + $0x4] sm:$0xf]
          %v583 = vld [vmem:[%s1 + $0x8] sm:$0xf]
          %v584 = vld [vmem:[%s1 + $0xc] sm:$0xf]
          %v585 = vld [vmem:[%s1 + $0x10] sm:$0xf]
          %v586 = vld [vmem:[%s1 + $0x14] sm:$0xf]
          %v587 = vld [vmem:[%s1 + $0x18] sm:$0xf]
          %v588 = vld [vmem:[%s1 + $0x1c] sm:$0xf]
          %v589 = vld [vmem:[%s1 + $0x20] sm:$0xf]
          %v590 = vld [vmem:[%s1 + $0x24] sm:$0xf]
          %v591 = vld [vmem:[%s1 + $0x28] sm:$0xf]
          %v592 = vld [vmem:[%s1 + $0x2c] sm:$0xf]
          %v593 = vld [vmem:[%s1 + $0x30] sm:$0xf]
          %v594 = vld [vmem:[%s1 + $0x34] sm:$0xf]
          %v595 = vld [vmem:[%s1 + $0x38] sm:$0xf]
          %v596 = vld [vmem:[%s1 + $0x3c] sm:$0xf]
          %v597 = vld [vmem:[%s1 + $0x40] sm:$0xf]
          %v598 = vld [vmem:[%s1 + $0x44] sm:$0xf]
          %v599 = vld [vmem:[%s1 + $0x48] sm:$0xf]
          %v600 = vld [vmem:[%s1 + $0x4c] sm:$0xf]
          %v601 = vld [vmem:[%s1 + $0x50] sm:$0xf]
          %v602 = vld [vmem:[%s1 + $0x54] sm:$0xf]
          %v603 = vld [vmem:[%s1 + $0x58] sm:$0xf]
          %v604 = vld [vmem:[%s1 + $0x5c] sm:$0xf]
          %v605 = vpack.c.bf16 %v579, %v579
          %v606 = vpack.c.bf16 %v580, %v580
          %v607 = vld [vmem:[%s2] sm:$0x1f]
          %v632 = vunpack.c.l.b16 %v581
          %v633 = vunpack.c.l.b16 %v582
          %v634 = vunpack.c.l.b16 %v583
          %v635 = vunpack.c.l.b16 %v584
          %v636 = vunpack.c.l.b16 %v585
          %v637 = vunpack.c.l.b16 %v586
          %v638 = vunpack.c.l.b16 %v587
          %v639 = vunpack.c.l.b16 %v588
          %v640 = vunpack.c.l.b16 %v589
          %v641 = vunpack.c.l.b16 %v590
          %v642 = vunpack.c.l.b16 %v591
          %v643 = vunpack.c.l.b16 %v592
          %v644 = vunpack.c.l.b16 %v593
          %v645 = vunpack.c.l.b16 %v594
          %v646 = vunpack.c.l.b16 %v595
          %v647 = vunpack.c.l.b16 %v596
          %v648 = vunpack.c.l.b16 %v597
          %v649 = vunpack.c.l.b16 %v598
          %v650 = vunpack.c.l.b16 %v599
          %v651 = vunpack.c.l.b16 %v600
          %v652 = vunpack.c.l.b16 %v601
          %v653 = vunpack.c.l.b16 %v602
          %v654 = vunpack.c.l.b16 %v603
          %v655 = vunpack.c.l.b16 %v604
          %v656 = vpack.c.b16 %v633, %v632
          %v657 = vpack.c.b16 %v635, %v634
          %v658 = vpack.c.b16 %v637, %v636
          %v659 = vpack.c.b16 %v639, %v638
          %v660 = vpack.c.b16 %v641, %v640
          %v661 = vpack.c.b16 %v643, %v642
          %v662 = vpack.c.b16 %v645, %v644
          %v663 = vpack.c.b16 %v647, %v646
          %v664 = vpack.c.b16 %v649, %v648
          %v665 = vpack.c.b16 %v651, %v650
          %v666 = vpack.c.b16 %v653, %v652
          %v667 = vpack.c.b16 %v655, %v654
          %vm680 = vcmask 523264
          %v682 = vsel %vm680, %v606, 0
          %684 = vmatprep.subr.bf16.mxu0 0
          %685 = vmatpush1.bf16.msra.mxu0 %v663
          %686 = vmatprep.subr.bf16.mxu0 0
          %687 = vmatpush1.bf16.msra.mxu0 %v662
          %688 = vmatprep.subr.bf16.mxu0 0
          %689 = vmatpush1.bf16.msra.mxu0 %v661
          %690 = vmatprep.subr.bf16.mxu0 0
          %691 = vmatpush1.bf16.msra.mxu0 %v660
          %692 = vmatprep.subr.bf16.mxu0 0
          %693 = vmatpush1.bf16.msra.mxu0 %v659
          %694 = vmatprep.subr.bf16.mxu0 0
          %695 = vmatpush1.bf16.msra.mxu0 %v658
          %696 = vmatprep.subr.bf16.mxu0 0
          %697 = vmatpush1.bf16.msra.mxu0 %v657
          %698 = vmatprep.subr.bf16.mxu0 0
          %699 = vmatpush1.bf16.msra.mxu0 %v656
          %700 = vmatprep.subr.bf16.mxu0 0
          %701 = vmatpush2.bf16.msra.mxu0 0
          %702 = vmatprep.subr.bf16.mxu0 0
          %703 = vmatpush2.bf16.msra.mxu0 0
          %704 = vmatprep.subr.bf16.mxu0 0
          %705 = vmatpush2.bf16.msra.mxu0 0
          %706 = vmatprep.subr.bf16.mxu0 0
          %707 = vmatpush2.bf16.msra.mxu0 0
          %708 = vmatprep.subr.bf16.mxu0 0
          %709 = vmatpush2.bf16.msra.mxu0 %v667
          %710 = vmatprep.subr.bf16.mxu0 0
          %711 = vmatpush2.bf16.msra.mxu0 %v666
          %712 = vmatprep.subr.bf16.mxu0 0
          %713 = vmatpush2.bf16.msra.mxu0 %v665
          %714 = vmatprep.subr.bf16.mxu0 0
          %715 = vmatpush2.bf16.msra.mxu0 %v664
          %716 = vmatprep.mubr.bf16.mxu0 %v682
          %717 = vmatmul.mubr.bf16.gmra.mxu0 %v605
          %v718 = vpop.f32.mrf.mxu0
          %v719 = vadd.f32 %v607, %v718
          %v720 = vpop.f32.mrf.mxu0
          %v721 = vpop.f32.mrf.mxu0
          %v722 = vpop.f32.mrf.mxu0
          %723 = vdwg.mxu0
          %vm724 = vcmask 258048
          %725 = vst.msk [vmem:[#allocation2] sm:$0x1f] %vm724, %v719
          %s726 = scalar_lea.vmem %s542, 16
          %v727 = vld [vmem:[%s726] sm:$0x1f]
          %v728 = vld [vmem:[%s726 + $0x8] sm:$0x1f]
          %v729 = vld [vmem:[%s1] sm:$0xf]
          %v730 = vld [vmem:[%s1 + $0x4] sm:$0xf]
          %v731 = vld [vmem:[%s1 + $0x8] sm:$0xf]
          %v732 = vld [vmem:[%s1 + $0xc] sm:$0xf]
          %v733 = vld [vmem:[%s1 + $0x10] sm:$0xf]
          %v734 = vld [vmem:[%s1 + $0x14] sm:$0xf]
          %v735 = vld [vmem:[%s1 + $0x18] sm:$0xf]
          %v736 = vld [vmem:[%s1 + $0x1c] sm:$0xf]
          %v737 = vld [vmem:[%s1 + $0x20] sm:$0xf]
          %v738 = vld [vmem:[%s1 + $0x24] sm:$0xf]
          %v739 = vld [vmem:[%s1 + $0x28] sm:$0xf]
          %v740 = vld [vmem:[%s1 + $0x2c] sm:$0xf]
          %v741 = vld [vmem:[%s1 + $0x30] sm:$0xf]
          %v742 = vld [vmem:[%s1 + $0x34] sm:$0xf]
          %v743 = vld [vmem:[%s1 + $0x38] sm:$0xf]
          %v744 = vld [vmem:[%s1 + $0x3c] sm:$0xf]
          %v745 = vld [vmem:[%s1 + $0x40] sm:$0xf]
          %v746 = vld [vmem:[%s1 + $0x44] sm:$0xf]
          %v747 = vld [vmem:[%s1 + $0x48] sm:$0xf]
          %v748 = vld [vmem:[%s1 + $0x4c] sm:$0xf]
          %v749 = vld [vmem:[%s1 + $0x50] sm:$0xf]
          %v750 = vld [vmem:[%s1 + $0x54] sm:$0xf]
          %v751 = vld [vmem:[%s1 + $0x58] sm:$0xf]
          %v752 = vld [vmem:[%s1 + $0x5c] sm:$0xf]
          %v753 = vpack.c.bf16 %v727, %v727
          %v754 = vpack.c.bf16 %v728, %v728
          %v755 = vld [vmem:[%s2] sm:$0x1f]
          %v780 = vunpack.c.l.b16 %v729
          %v781 = vunpack.c.l.b16 %v730
          %v782 = vunpack.c.l.b16 %v731
          %v783 = vunpack.c.l.b16 %v732
          %v784 = vunpack.c.l.b16 %v733
          %v785 = vunpack.c.l.b16 %v734
          %v786 = vunpack.c.l.b16 %v735
          %v787 = vunpack.c.l.b16 %v736
          %v788 = vunpack.c.l.b16 %v737
          %v789 = vunpack.c.l.b16 %v738
          %v790 = vunpack.c.l.b16 %v739
          %v791 = vunpack.c.l.b16 %v740
          %v792 = vunpack.c.l.b16 %v741
          %v793 = vunpack.c.l.b16 %v742
          %v794 = vunpack.c.l.b16 %v743
          %v795 = vunpack.c.l.b16 %v744
          %v796 = vunpack.c.l.b16 %v745
          %v797 = vunpack.c.l.b16 %v746
          %v798 = vunpack.c.l.b16 %v747
          %v799 = vunpack.c.l.b16 %v748
          %v800 = vunpack.c.l.b16 %v749
          %v801 = vunpack.c.l.b16 %v750
          %v802 = vunpack.c.l.b16 %v751
          %v803 = vunpack.c.l.b16 %v752
          %v804 = vpack.c.b16 %v781, %v780
          %v805 = vpack.c.b16 %v783, %v782
          %v806 = vpack.c.b16 %v785, %v784
          %v807 = vpack.c.b16 %v787, %v786
          %v808 = vpack.c.b16 %v789, %v788
          %v809 = vpack.c.b16 %v791, %v790
          %v810 = vpack.c.b16 %v793, %v792
          %v811 = vpack.c.b16 %v795, %v794
          %v812 = vpack.c.b16 %v797, %v796
          %v813 = vpack.c.b16 %v799, %v798
          %v814 = vpack.c.b16 %v801, %v800
          %v815 = vpack.c.b16 %v803, %v802
          %v829 = vsel %vm680, %v754, 0
          %831 = vmatprep.subr.bf16.mxu0 0
          %832 = vmatpush1.bf16.msra.mxu0 %v811
          %833 = vmatprep.subr.bf16.mxu0 0
          %834 = vmatpush1.bf16.msra.mxu0 %v810
          %835 = vmatprep.subr.bf16.mxu0 0
          %836 = vmatpush1.bf16.msra.mxu0 %v809
          %837 = vmatprep.subr.bf16.mxu0 0
          %838 = vmatpush1.bf16.msra.mxu0 %v808
          %839 = vmatprep.subr.bf16.mxu0 0
          %840 = vmatpush1.bf16.msra.mxu0 %v807
          %841 = vmatprep.subr.bf16.mxu0 0
          %842 = vmatpush1.bf16.msra.mxu0 %v806
          %843 = vmatprep.subr.bf16.mxu0 0
          %844 = vmatpush1.bf16.msra.mxu0 %v805
          %845 = vmatprep.subr.bf16.mxu0 0
          %846 = vmatpush1.bf16.msra.mxu0 %v804
          %847 = vmatprep.subr.bf16.mxu0 0
          %848 = vmatpush2.bf16.msra.mxu0 0
          %849 = vmatprep.subr.bf16.mxu0 0
          %850 = vmatpush2.bf16.msra.mxu0 0
          %851 = vmatprep.subr.bf16.mxu0 0
          %852 = vmatpush2.bf16.msra.mxu0 0
          %853 = vmatprep.subr.bf16.mxu0 0
          %854 = vmatpush2.bf16.msra.mxu0 0
          %855 = vmatprep.subr.bf16.mxu0 0
          %856 = vmatpush2.bf16.msra.mxu0 %v815
          %857 = vmatprep.subr.bf16.mxu0 0
          %858 = vmatpush2.bf16.msra.mxu0 %v814
          %859 = vmatprep.subr.bf16.mxu0 0
          %860 = vmatpush2.bf16.msra.mxu0 %v813
          %861 = vmatprep.subr.bf16.mxu0 0
          %862 = vmatpush2.bf16.msra.mxu0 %v812
          %863 = vmatprep.mubr.bf16.mxu0 %v829
          %864 = vmatmul.mubr.bf16.gmra.mxu0 %v753
          %v865 = vpop.f32.mrf.mxu0
          %v866 = vadd.f32 %v755, %v865
          %v867 = vpop.f32.mrf.mxu0
          %v868 = vpop.f32.mrf.mxu0
          %v869 = vpop.f32.mrf.mxu0
          %870 = vdwg.mxu0
          %871 = vst.msk [vmem:[#allocation2 + $0x5] sm:$0x1f] %vm724, %v866
          %v872 = vld [vmem:[#allocation2] sm:$0xff]
          %v873 = vld [vmem:[#allocation2 + $0x8] sm:$0x3]
          %v874 = vld [vmem:[%s3] sm:$0x1]
          %v875 = vld [vmem:[%s3 + $0x1] sm:$0x1]
          %vm876 = vcmask 261120
          %v877 = vsel %vm876, %v872, 0.0
          %878 = vadd.xlane.f32.xlu0 %v877
          %v879 = vpop.xlane.xlu0 %878
          %vm880 = vcmask 254976
          %v881 = vsel %vm880, %v873, 0.0
          %882 = vadd.xlane.f32.xlu0 %v881
          %v883 = vpop.xlane.xlu0 %882
          %v884 = vrcp.pop 32.0
          %v885 = vmul.f32 %v879, %v884
          %v886 = vmul.f32 %v883, %v884
          %v887 = vsub.f32 %v872, %v885
          %v888 = vsub.f32 %v873, %v886
          %v889 = vmul.f32 %v887, %v887
          %v890 = vmul.f32 %v888, %v888
          %v891 = vsel %vm876, %v889, 0.0
          %892 = vadd.xlane.f32.xlu0 %v891
          %v893 = vpop.xlane.xlu0 %892
          %v894 = vsel %vm880, %v890, 0.0
          %895 = vadd.xlane.f32.xlu0 %v894
          %v896 = vpop.xlane.xlu0 %895
          %v897 = vmul.f32 %v893, %v884
          %v898 = vmul.f32 %v896, %v884
          %v899 = vadd.f32 %v897, 1e-05
          %v900 = vadd.f32 %v898, 1e-05
          %v901 = vrsqrt.pop %v899
          %v902 = vrsqrt.pop %v900
          %v903 = vmul.f32 %v887, %v901
          %v904 = vmul.f32 %v888, %v902
          %v905 = vlaneseq
          %v906 = vshrl.u32 %v905, 7
          %v907 = vsub.s32 0, %v906
          %v908 = vrot.slane %v874, %v907
          %v909 = vmul.f32 %v903, %v908
          %v910 = vmul.f32 %v904, %v908
          %v911 = vlaneseq
          %v912 = vshrl.u32 %v911, 7
          %v913 = vsub.s32 0, %v912
          %v914 = vrot.slane %v875, %v913
          %v915 = vadd.f32 %v909, %v914
          %v916 = vadd.f32 %v910, %v914
          %917 = vst.msk [vmem:[#allocation2] sm:$0xff] %vm876, %v915
          %918 = vst.msk [vmem:[#allocation2 + $0x8] sm:$0x3] %vm880, %v916
        $region76: #{clip_super_forward.1} parent=71 // pred_fallthru
          _
        %v919 = vld [vmem:[#allocation2] sm:$0xff]
        %v920 = vld [vmem:[#allocation2 + $0x8] sm:$0x3]
        %v921 = vld [vmem:[%s547] sm:$0x3f]
        %vm922 = vcmask 261120
        %v923 = vsel %vm922, %v919, 0.0
        %924 = vadd.xlane.f32.xlu0 %v923
        %v925 = vpop.xlane.xlu0 %924
        %vm926 = vcmask 254976
        %v927 = vsel %vm926, %v920, 0.0
        %928 = vadd.xlane.f32.xlu0 %v927
        %v929 = vpop.xlane.xlu0 %928
        %v930 = vrcp.pop 32.0
        %v931 = vmul.f32 %v925, %v930
        %v932 = vmul.f32 %v929, %v930
        %v933 = vsub.f32 %v919, %v931
        %v934 = vsub.f32 %v920, %v932
        %v935 = vmul.f32 %v933, %v933
        %v936 = vmul.f32 %v934, %v934
        %v937 = vsel %vm922, %v935, 0.0
        %938 = vadd.xlane.f32.xlu0 %v937
        %v939 = vpop.xlane.xlu0 %938
        %v940 = vsel %vm926, %v936, 0.0
        %941 = vadd.xlane.f32.xlu0 %v940
        %v942 = vpop.xlane.xlu0 %941
        %v943 = vmul.f32 %v939, %v930
        %v944 = vmul.f32 %v942, %v930
        %v945 = vadd.f32 %v943, 1e-05
        %v946 = vadd.f32 %v944, 1e-05
        %v947 = vrsqrt.pop %v945
        %v948 = vrsqrt.pop %v946
        %v949 = vmul.f32 %v933, %v947
        %v950 = vmul.f32 %v934, %v948
        %v951 = vlaneseq
        %v952 = vshrl.u32 %v951, 7
        %v953 = vsub.s32 0, %v952
        %v954 = vrot.slane %v921, %v953
        %v955 = vmul.f32 %v949, %v954
        %v956 = vmul.f32 %v950, %v954
        %v957 = vlaneseq
        %v958 = vshrl.u32 %v957, 7
        %v959 = vsub.s32 1, %v958
        %v960 = vrot.slane %v921, %v959
        %v961 = vadd.f32 %v955, %v960
        %v962 = vadd.f32 %v956, %v960
        %v963 = vld [vmem:[%s552] sm:$0xf]
        %v964 = vld [vmem:[%s552 + $0x4] sm:$0xf]
        %v965 = vld [vmem:[%s552 + $0x8] sm:$0xf]
        %v966 = vld [vmem:[%s552 + $0xc] sm:$0xf]
        %v967 = vpack.c.bf16 %v962, %v961
        %v968 = vld [vmem:[%s555] sm:$0x1]
        %v970 = vlaneseq
        %v971 = vshrl.u32 %v970, 7
        %v972 = vsub.s32 0, %v971
        %v973 = vrot.slane %v968, %v972
        %v979 = vunpack.c.l.b16 %v963
        %v980 = vunpack.c.l.b16 %v964
        %v981 = vunpack.c.l.b16 %v965
        %v982 = vunpack.c.l.b16 %v966
        %v983 = vpack.c.b16 %v980, %v979
        %v984 = vpack.c.b16 %v982, %v981
        %v988 = vsel %vm922, %v967, 0
        %990 = vmatprep.subr.bf16.mxu0 0
        %991 = vmatpush1.bf16.msra.mxu0 0
        %992 = vmatprep.subr.bf16.mxu0 0
        %993 = vmatpush1.bf16.msra.mxu0 0
        %994 = vmatprep.subr.bf16.mxu0 0
        %995 = vmatpush1.bf16.msra.mxu0 0
        %996 = vmatprep.subr.bf16.mxu0 0
        %997 = vmatpush1.bf16.msra.mxu0 0
        %998 = vmatprep.subr.bf16.mxu0 0
        %999 = vmatpush1.bf16.msra.mxu0 0
        %1000 = vmatprep.subr.bf16.mxu0 0
        %1001 = vmatpush1.bf16.msra.mxu0 0
        %1002 = vmatprep.subr.bf16.mxu0 0
        %1003 = vmatpush1.bf16.msra.mxu0 %v984
        %1004 = vmatprep.subr.bf16.mxu0 0
        %1005 = vmatpush1.bf16.msra.mxu0 %v983
        %1006 = vmatprep.subr.bf16.mxu0 0
        %1007 = vmatpush2.bf16.msra.mxu0 0
        %1008 = vmatprep.subr.bf16.mxu0 0
        %1009 = vmatpush2.bf16.msra.mxu0 0
        %1010 = vmatprep.subr.bf16.mxu0 0
        %1011 = vmatpush2.bf16.msra.mxu0 0
        %1012 = vmatprep.subr.bf16.mxu0 0
        %1013 = vmatpush2.bf16.msra.mxu0 0
        %1014 = vmatprep.subr.bf16.mxu0 0
        %1015 = vmatpush2.bf16.msra.mxu0 0
        %1016 = vmatprep.subr.bf16.mxu0 0
        %1017 = vmatpush2.bf16.msra.mxu0 0
        %1018 = vmatprep.subr.bf16.mxu0 0
        %1019 = vmatpush2.bf16.msra.mxu0 0
        %1020 = vmatprep.subr.bf16.mxu0 0
        %1021 = vmatpush2.bf16.msra.mxu0 0
        %1022 = vmatprep.mubr.bf16.mxu0 0
        %1023 = vmatmul.mubr.bf16.gmra.mxu0 %v988
        %v1024 = vpop.f32.mrf.mxu0
        %v1025 = vadd.f32 %v973, %v1024
        %v1026 = vpop.f32.mrf.mxu0
        %v1027 = vpop.f32.mrf.mxu0
        %v1028 = vadd.f32 %v973, %v1027
        %v1029 = vpop.f32.mrf.mxu0
        %1030 = vdwg.mxu0
        %v1031 = vmul.f32 %v1025, 0.35355338
        %v1032 = vpack.c.bf16 %v1031, %v1031
        %v1033 = vpack.c.bf16 %v1025, %v1025
        %1035 = vrot.lane.b32.xlu0 %v1033, 96
        %v1036 = vpop.permute.xlu0 %1035
        %vm1037 = vcmask 64512
        %v1039 = vsel %vm1037, %v1032, 0
        %v1042 = vsel %vm1037, %v1036, 0
        %1044 = vmatprep.subr.bf16.mxu0 0
        %1045 = vmatpush1.bf16.xpose.msra.mxu0 0
        %1046 = vmatprep.subr.bf16.mxu0 0
        %1047 = vmatpush1.bf16.xpose.msra.mxu0 0
        %1048 = vmatprep.subr.bf16.mxu0 0
        %1049 = vmatpush1.bf16.xpose.msra.mxu0 0
        %1050 = vmatprep.subr.bf16.mxu0 0
        %1051 = vmatpush1.bf16.xpose.msra.mxu0 0
        %1052 = vmatprep.subr.bf16.mxu0 0
        %1053 = vmatpush1.bf16.xpose.msra.mxu0 0
        %1054 = vmatprep.subr.bf16.mxu0 0
        %1055 = vmatpush1.bf16.xpose.msra.mxu0 0
        %1056 = vmatprep.subr.bf16.mxu0 0
        %1057 = vmatpush1.bf16.xpose.msra.mxu0 0
        %1058 = vmatprep.subr.bf16.mxu0 0
        %1059 = vmatpush1.bf16.xpose.msra.mxu0 %v1042
        %1060 = vmatprep.subr.bf16.mxu0 0
        %1061 = vmatpush2.bf16.xpose.msra.mxu0 0
        %1062 = vmatprep.subr.bf16.mxu0 0
        %1063 = vmatpush2.bf16.xpose.msra.mxu0 0
        %1064 = vmatprep.subr.bf16.mxu0 0
        %1065 = vmatpush2.bf16.xpose.msra.mxu0 0
        %1066 = vmatprep.subr.bf16.mxu0 0
        %1067 = vmatpush2.bf16.xpose.msra.mxu0 0
        %1068 = vmatprep.subr.bf16.mxu0 0
        %1069 = vmatpush2.bf16.xpose.msra.mxu0 0
        %1070 = vmatprep.subr.bf16.mxu0 0
        %1071 = vmatpush2.bf16.xpose.msra.mxu0 0
        %1072 = vmatprep.subr.bf16.mxu0 0
        %1073 = vmatpush2.bf16.xpose.msra.mxu0 0
        %1074 = vmatprep.subr.bf16.mxu0 0
        %1075 = vmatpush2.bf16.xpose.msra.mxu0 0
        %1076 = vmatprep.mubr.bf16.mxu0 0
        %1077 = vmatmul.mubr.bf16.gmra.mxu0 %v1039
        %v1078 = vpop.f32.mrf.mxu0
        %v1079 = vadd.f32 0.0, %v1078
        %v1080 = vpop.f32.mrf.mxu0
        %v1081 = vpop.f32.mrf.mxu0
        %v1082 = vpop.f32.mrf.mxu0
        %1083 = vdwg.mxu0
        %vm1084 = vcmask 36864
        %v1085 = vsel %vm1084, %v1079, -inf
        %1086 = vmax.xlane.f32.xlu0 %v1085
        %v1087 = vpop.xlane.xlu0 %1086
        %v1088 = vsub.f32 %v1079, %v1087
        %v1089 = vmul.f32 %v1088, 1.442695
        %v1090 = vpow.pop %v1089
        %v1091 = vsel %vm1084, %v1090, 0.0
        %1092 = vadd.xlane.f32.xlu0 %v1091
        %v1093 = vpop.xlane.xlu0 %1092
        %v1094 = vrcp.pop %v1093
        %v1095 = vmul.f32 %v1090, %v1094
        %v1096 = vpack.c.bf16 %v1095, %v1095
        %1097 = vrot.lane.b32.xlu0 %v1033, 64
        %v1098 = vpop.permute.xlu0 %1097
        %vm1099 = vcmask 39936
        %v1101 = vsel %vm1099, %v1096, 0
        %vm1103 = vcmask 1041408
        %vm1104 = vcmask 1042432
        %v1105 = vsel %vm1103, 4294967295, 65535
        %v1106 = vsel %vm1104, %v1105, 0
        %v1108 = vand.u32 %v1098, %v1106
        %1110 = vmatprep.subr.bf16.mxu0 0
        %1111 = vmatpush1.bf16.msra.mxu0 0
        %1112 = vmatprep.subr.bf16.mxu0 0
        %1113 = vmatpush1.bf16.msra.mxu0 0
        %1114 = vmatprep.subr.bf16.mxu0 0
        %1115 = vmatpush1.bf16.msra.mxu0 0
        %1116 = vmatprep.subr.bf16.mxu0 0
        %1117 = vmatpush1.bf16.msra.mxu0 0
        %1118 = vmatprep.subr.bf16.mxu0 0
        %1119 = vmatpush1.bf16.msra.mxu0 0
        %1120 = vmatprep.subr.bf16.mxu0 0
        %1121 = vmatpush1.bf16.msra.mxu0 0
        %1122 = vmatprep.subr.bf16.mxu0 0
        %1123 = vmatpush1.bf16.msra.mxu0 0
        %1124 = vmatprep.subr.bf16.mxu0 0
        %1125 = vmatpush1.bf16.msra.mxu0 %v1108
        %1126 = vmatprep.subr.bf16.mxu0 0
        %1127 = vmatpush2.bf16.msra.mxu0 0
        %1128 = vmatprep.subr.bf16.mxu0 0
        %1129 = vmatpush2.bf16.msra.mxu0 0
        %1130 = vmatprep.subr.bf16.mxu0 0
        %1131 = vmatpush2.bf16.msra.mxu0 0
        %1132 = vmatprep.subr.bf16.mxu0 0
        %1133 = vmatpush2.bf16.msra.mxu0 0
        %1134 = vmatprep.subr.bf16.mxu0 0
        %1135 = vmatpush2.bf16.msra.mxu0 0
        %1136 = vmatprep.subr.bf16.mxu0 0
        %1137 = vmatpush2.bf16.msra.mxu0 0
        %1138 = vmatprep.subr.bf16.mxu0 0
        %1139 = vmatpush2.bf16.msra.mxu0 0
        %1140 = vmatprep.subr.bf16.mxu0 0
        %1141 = vmatpush2.bf16.msra.mxu0 0
        %1142 = vmatprep.mubr.bf16.mxu0 0
        %1143 = vmatmul.mubr.bf16.gmra.mxu0 %v1101
        %v1144 = vpop.f32.mrf.mxu0
        %v1145 = vadd.f32 0.0, %v1144
        %v1146 = vpop.f32.mrf.mxu0
        %v1147 = vpop.f32.mrf.mxu0
        %v1148 = vpop.f32.mrf.mxu0
        %1149 = vdwg.mxu0
        %vm1150 = vcmask 61440
        %1151 = vst.msk [vmem:[#allocation3] sm:$0x1f] %vm1150, %v1145
        %1153 = vrot.lane.b32.xlu0 %v1032, 120
        %v1154 = vpop.permute.xlu0 %1153
        %1155 = vrot.lane.b32.xlu0 %v1033, 88
        %v1156 = vpop.permute.xlu0 %1155
        %v1158 = vsel %vm1037, %v1154, 0
        %v1161 = vsel %vm1037, %v1156, 0
        %1163 = vmatprep.subr.bf16.mxu0 0
        %1164 = vmatpush1.bf16.xpose.msra.mxu0 0
        %1165 = vmatprep.subr.bf16.mxu0 0
        %1166 = vmatpush1.bf16.xpose.msra.mxu0 0
        %1167 = vmatprep.subr.bf16.mxu0 0
        %1168 = vmatpush1.bf16.xpose.msra.mxu0 0
        %1169 = vmatprep.subr.bf16.mxu0 0
        %1170 = vmatpush1.bf16.xpose.msra.mxu0 0
        %1171 = vmatprep.subr.bf16.mxu0 0
        %1172 = vmatpush1.bf16.xpose.msra.mxu0 0
        %1173 = vmatprep.subr.bf16.mxu0 0
        %1174 = vmatpush1.bf16.xpose.msra.mxu0 0
        %1175 = vmatprep.subr.bf16.mxu0 0
        %1176 = vmatpush1.bf16.xpose.msra.mxu0 0
        %1177 = vmatprep.subr.bf16.mxu0 0
        %1178 = vmatpush1.bf16.xpose.msra.mxu0 %v1161
        %1179 = vmatprep.subr.bf16.mxu0 0
        %1180 = vmatpush2.bf16.xpose.msra.mxu0 0
        %1181 = vmatprep.subr.bf16.mxu0 0
        %1182 = vmatpush2.bf16.xpose.msra.mxu0 0
        %1183 = vmatprep.subr.bf16.mxu0 0
        %1184 = vmatpush2.bf16.xpose.msra.mxu0 0
        %1185 = vmatprep.subr.bf16.mxu0 0
        %1186 = vmatpush2.bf16.xpose.msra.mxu0 0
        %1187 = vmatprep.subr.bf16.mxu0 0
        %1188 = vmatpush2.bf16.xpose.msra.mxu0 0
        %1189 = vmatprep.subr.bf16.mxu0 0
        %1190 = vmatpush2.bf16.xpose.msra.mxu0 0
        %1191 = vmatprep.subr.bf16.mxu0 0
        %1192 = vmatpush2.bf16.xpose.msra.mxu0 0
        %1193 = vmatprep.subr.bf16.mxu0 0
        %1194 = vmatpush2.bf16.xpose.msra.mxu0 0
        %1195 = vmatprep.mubr.bf16.mxu0 0
        %1196 = vmatmul.mubr.bf16.gmra.mxu0 %v1158
        %v1197 = vpop.f32.mrf.mxu0
        %v1198 = vadd.f32 0.0, %v1197
        %v1199 = vpop.f32.mrf.mxu0
        %v1200 = vpop.f32.mrf.mxu0
        %v1201 = vpop.f32.mrf.mxu0
        %1202 = vdwg.mxu0
        %v1203 = vsel %vm1084, %v1198, -inf
        %1204 = vmax.xlane.f32.xlu0 %v1203
        %v1205 = vpop.xlane.xlu0 %1204
        %v1206 = vsub.f32 %v1198, %v1205
        %v1207 = vmul.f32 %v1206, 1.442695
        %v1208 = vpow.pop %v1207
        %v1209 = vsel %vm1084, %v1208, 0.0
        %1210 = vadd.xlane.f32.xlu0 %v1209
        %v1211 = vpop.xlane.xlu0 %1210
        %v1212 = vrcp.pop %v1211
        %v1213 = vmul.f32 %v1208, %v1212
        %v1214 = vpack.c.bf16 %v1213, %v1213
        %1215 = vrot.lane.b32.xlu0 %v1033, 56
        %v1216 = vpop.permute.xlu0 %1215
        %v1218 = vsel %vm1099, %v1214, 0
        %v1221 = vand.u32 %v1216, %v1106
        %1223 = vmatprep.subr.bf16.mxu0 0
        %1224 = vmatpush1.bf16.msra.mxu0 0
        %1225 = vmatprep.subr.bf16.mxu0 0
        %1226 = vmatpush1.bf16.msra.mxu0 0
        %1227 = vmatprep.subr.bf16.mxu0 0
        %1228 = vmatpush1.bf16.msra.mxu0 0
        %1229 = vmatprep.subr.bf16.mxu0 0
        %1230 = vmatpush1.bf16.msra.mxu0 0
        %1231 = vmatprep.subr.bf16.mxu0 0
        %1232 = vmatpush1.bf16.msra.mxu0 0
        %1233 = vmatprep.subr.bf16.mxu0 0
        %1234 = vmatpush1.bf16.msra.mxu0 0
        %1235 = vmatprep.subr.bf16.mxu0 0
        %1236 = vmatpush1.bf16.msra.mxu0 0
        %1237 = vmatprep.subr.bf16.mxu0 0
        %1238 = vmatpush1.bf16.msra.mxu0 %v1221
        %1239 = vmatprep.subr.bf16.mxu0 0
        %1240 = vmatpush2.bf16.msra.mxu0 0
        %1241 = vmatprep.subr.bf16.mxu0 0
        %1242 = vmatpush2.bf16.msra.mxu0 0
        %1243 = vmatprep.subr.bf16.mxu0 0
        %1244 = vmatpush2.bf16.msra.mxu0 0
        %1245 = vmatprep.subr.bf16.mxu0 0
        %1246 = vmatpush2.bf16.msra.mxu0 0
        %1247 = vmatprep.subr.bf16.mxu0 0
        %1248 = vmatpush2.bf16.msra.mxu0 0
        %1249 = vmatprep.subr.bf16.mxu0 0
        %1250 = vmatpush2.bf16.msra.mxu0 0
        %1251 = vmatprep.subr.bf16.mxu0 0
        %1252 = vmatpush2.bf16.msra.mxu0 0
        %1253 = vmatprep.subr.bf16.mxu0 0
        %1254 = vmatpush2.bf16.msra.mxu0 0
        %1255 = vmatprep.mubr.bf16.mxu0 0
        %1256 = vmatmul.mubr.bf16.gmra.mxu0 %v1218
        %v1257 = vpop.f32.mrf.mxu0
        %v1258 = vadd.f32 0.0, %v1257
        %v1259 = vpop.f32.mrf.mxu0
        %v1260 = vpop.f32.mrf.mxu0
        %v1261 = vpop.f32.mrf.mxu0
        %1262 = vdwg.mxu0
        %1264 = vrot.lane.b32.xlu0 %v1258, 8
        %v1265 = vpop.permute.xlu0 %1264
        %vm1267 = vcmask 127040
        %1268 = vst.msk [vmem:[#allocation3] sm:$0x1f] %vm1267, %v1265
        %1269 = vrot.lane.b32.xlu0 %v1032, 112
        %v1270 = vpop.permute.xlu0 %1269
        %1271 = vrot.lane.b32.xlu0 %v1033, 80
        %v1272 = vpop.permute.xlu0 %1271
        %v1274 = vsel %vm1037, %v1270, 0
        %v1277 = vsel %vm1037, %v1272, 0
        %1279 = vmatprep.subr.bf16.mxu0 0
        %1280 = vmatpush1.bf16.xpose.msra.mxu0 0
        %1281 = vmatprep.subr.bf16.mxu0 0
        %1282 = vmatpush1.bf16.xpose.msra.mxu0 0
        %1283 = vmatprep.subr.bf16.mxu0 0
        %1284 = vmatpush1.bf16.xpose.msra.mxu0 0
        %1285 = vmatprep.subr.bf16.mxu0 0
        %1286 = vmatpush1.bf16.xpose.msra.mxu0 0
        %1287 = vmatprep.subr.bf16.mxu0 0
        %1288 = vmatpush1.bf16.xpose.msra.mxu0 0
        %1289 = vmatprep.subr.bf16.mxu0 0
        %1290 = vmatpush1.bf16.xpose.msra.mxu0 0
        %1291 = vmatprep.subr.bf16.mxu0 0
        %1292 = vmatpush1.bf16.xpose.msra.mxu0 0
        %1293 = vmatprep.subr.bf16.mxu0 0
        %1294 = vmatpush1.bf16.xpose.msra.mxu0 %v1277
        %1295 = vmatprep.subr.bf16.mxu0 0
        %1296 = vmatpush2.bf16.xpose.msra.mxu0 0
        %1297 = vmatprep.subr.bf16.mxu0 0
        %1298 = vmatpush2.bf16.xpose.msra.mxu0 0
        %1299 = vmatprep.subr.bf16.mxu0 0
        %1300 = vmatpush2.bf16.xpose.msra.mxu0 0
        %1301 = vmatprep.subr.bf16.mxu0 0
        %1302 = vmatpush2.bf16.xpose.msra.mxu0 0
        %1303 = vmatprep.subr.bf16.mxu0 0
        %1304 = vmatpush2.bf16.xpose.msra.mxu0 0
        %1305 = vmatprep.subr.bf16.mxu0 0
        %1306 = vmatpush2.bf16.xpose.msra.mxu0 0
        %1307 = vmatprep.subr.bf16.mxu0 0
        %1308 = vmatpush2.bf16.xpose.msra.mxu0 0
        %1309 = vmatprep.subr.bf16.mxu0 0
        %1310 = vmatpush2.bf16.xpose.msra.mxu0 0
        %1311 = vmatprep.mubr.bf16.mxu0 0
        %1312 = vmatmul.mubr.bf16.gmra.mxu0 %v1274
        %v1313 = vpop.f32.mrf.mxu0
        %v1314 = vadd.f32 0.0, %v1313
        %v1315 = vpop.f32.mrf.mxu0
        %v1316 = vpop.f32.mrf.mxu0
        %v1317 = vpop.f32.mrf.mxu0
        %1318 = vdwg.mxu0
        %v1319 = vsel %vm1084, %v1314, -inf
        %1320 = vmax.xlane.f32.xlu0 %v1319
        %v1321 = vpop.xlane.xlu0 %1320
        %v1322 = vsub.f32 %v1314, %v1321
        %v1323 = vmul.f32 %v1322, 1.442695
        %v1324 = vpow.pop %v1323
        %v1325 = vsel %vm1084, %v1324, 0.0
        %1326 = vadd.xlane.f32.xlu0 %v1325
        %v1327 = vpop.xlane.xlu0 %1326
        %v1328 = vrcp.pop %v1327
        %v1329 = vmul.f32 %v1324, %v1328
        %v1330 = vpack.c.bf16 %v1329, %v1329
        %1331 = vrot.lane.b32.xlu0 %v1033, 48
        %v1332 = vpop.permute.xlu0 %1331
        %v1334 = vsel %vm1099, %v1330, 0
        %v1337 = vand.u32 %v1332, %v1106
        %1339 = vmatprep.subr.bf16.mxu0 0
        %1340 = vmatpush1.bf16.msra.mxu0 0
        %1341 = vmatprep.subr.bf16.mxu0 0
        %1342 = vmatpush1.bf16.msra.mxu0 0
        %1343 = vmatprep.subr.bf16.mxu0 0
        %1344 = vmatpush1.bf16.msra.mxu0 0
        %1345 = vmatprep.subr.bf16.mxu0 0
        %1346 = vmatpush1.bf16.msra.mxu0 0
        %1347 = vmatprep.subr.bf16.mxu0 0
        %1348 = vmatpush1.bf16.msra.mxu0 0
        %1349 = vmatprep.subr.bf16.mxu0 0
        %1350 = vmatpush1.bf16.msra.mxu0 0
        %1351 = vmatprep.subr.bf16.mxu0 0
        %1352 = vmatpush1.bf16.msra.mxu0 0
        %1353 = vmatprep.subr.bf16.mxu0 0
        %1354 = vmatpush1.bf16.msra.mxu0 %v1337
        %1355 = vmatprep.subr.bf16.mxu0 0
        %1356 = vmatpush2.bf16.msra.mxu0 0
        %1357 = vmatprep.subr.bf16.mxu0 0
        %1358 = vmatpush2.bf16.msra.mxu0 0
        %1359 = vmatprep.subr.bf16.mxu0 0
        %1360 = vmatpush2.bf16.msra.mxu0 0
        %1361 = vmatprep.subr.bf16.mxu0 0
        %1362 = vmatpush2.bf16.msra.mxu0 0
        %1363 = vmatprep.subr.bf16.mxu0 0
        %1364 = vmatpush2.bf16.msra.mxu0 0
        %1365 = vmatprep.subr.bf16.mxu0 0
        %1366 = vmatpush2.bf16.msra.mxu0 0
        %1367 = vmatprep.subr.bf16.mxu0 0
        %1368 = vmatpush2.bf16.msra.mxu0 0
        %1369 = vmatprep.subr.bf16.mxu0 0
        %1370 = vmatpush2.bf16.msra.mxu0 0
        %1371 = vmatprep.mubr.bf16.mxu0 0
        %1372 = vmatmul.mubr.bf16.gmra.mxu0 %v1334
        %v1373 = vpop.f32.mrf.mxu0
        %v1374 = vadd.f32 0.0, %v1373
        %v1375 = vpop.f32.mrf.mxu0
        %v1376 = vpop.f32.mrf.mxu0
        %v1377 = vpop.f32.mrf.mxu0
        %1378 = vdwg.mxu0
        %1380 = vrot.lane.b32.xlu0 %v1374, 16
        %v1381 = vpop.permute.xlu0 %1380
        %vm1383 = vcmask 192640
        %1384 = vst.msk [vmem:[#allocation3] sm:$0x1f] %vm1383, %v1381
        %1385 = vrot.lane.b32.xlu0 %v1032, 104
        %v1386 = vpop.permute.xlu0 %1385
        %1387 = vrot.lane.b32.xlu0 %v1033, 72
        %v1388 = vpop.permute.xlu0 %1387
        %v1390 = vsel %vm1037, %v1386, 0
        %v1393 = vsel %vm1037, %v1388, 0
        %1395 = vmatprep.subr.bf16.mxu0 0
        %1396 = vmatpush1.bf16.xpose.msra.mxu0 0
        %1397 = vmatprep.subr.bf16.mxu0 0
        %1398 = vmatpush1.bf16.xpose.msra.mxu0 0
        %1399 = vmatprep.subr.bf16.mxu0 0
        %1400 = vmatpush1.bf16.xpose.msra.mxu0 0
        %1401 = vmatprep.subr.bf16.mxu0 0
        %1402 = vmatpush1.bf16.xpose.msra.mxu0 0
        %1403 = vmatprep.subr.bf16.mxu0 0
        %1404 = vmatpush1.bf16.xpose.msra.mxu0 0
        %1405 = vmatprep.subr.bf16.mxu0 0
        %1406 = vmatpush1.bf16.xpose.msra.mxu0 0
        %1407 = vmatprep.subr.bf16.mxu0 0
        %1408 = vmatpush1.bf16.xpose.msra.mxu0 0
        %1409 = vmatprep.subr.bf16.mxu0 0
        %1410 = vmatpush1.bf16.xpose.msra.mxu0 %v1393
        %1411 = vmatprep.subr.bf16.mxu0 0
        %1412 = vmatpush2.bf16.xpose.msra.mxu0 0
        %1413 = vmatprep.subr.bf16.mxu0 0
        %1414 = vmatpush2.bf16.xpose.msra.mxu0 0
        %1415 = vmatprep.subr.bf16.mxu0 0
        %1416 = vmatpush2.bf16.xpose.msra.mxu0 0
        %1417 = vmatprep.subr.bf16.mxu0 0
        %1418 = vmatpush2.bf16.xpose.msra.mxu0 0
        %1419 = vmatprep.subr.bf16.mxu0 0
        %1420 = vmatpush2.bf16.xpose.msra.mxu0 0
        %1421 = vmatprep.subr.bf16.mxu0 0
        %1422 = vmatpush2.bf16.xpose.msra.mxu0 0
        %1423 = vmatprep.subr.bf16.mxu0 0
        %1424 = vmatpush2.bf16.xpose.msra.mxu0 0
        %1425 = vmatprep.subr.bf16.mxu0 0
        %1426 = vmatpush2.bf16.xpose.msra.mxu0 0
        %1427 = vmatprep.mubr.bf16.mxu0 0
        %1428 = vmatmul.mubr.bf16.gmra.mxu0 %v1390
        %v1429 = vpop.f32.mrf.mxu0
        %v1430 = vadd.f32 0.0, %v1429
        %v1431 = vpop.f32.mrf.mxu0
        %v1432 = vpop.f32.mrf.mxu0
        %v1433 = vpop.f32.mrf.mxu0
        %1434 = vdwg.mxu0
        %v1435 = vsel %vm1084, %v1430, -inf
        %1436 = vmax.xlane.f32.xlu0 %v1435
        %v1437 = vpop.xlane.xlu0 %1436
        %v1438 = vsub.f32 %v1430, %v1437
        %v1439 = vmul.f32 %v1438, 1.442695
        %v1440 = vpow.pop %v1439
        %v1441 = vsel %vm1084, %v1440, 0.0
        %1442 = vadd.xlane.f32.xlu0 %v1441
        %v1443 = vpop.xlane.xlu0 %1442
        %v1444 = vrcp.pop %v1443
        %v1445 = vmul.f32 %v1440, %v1444
        %v1446 = vpack.c.bf16 %v1445, %v1445
        %1447 = vrot.lane.b32.xlu0 %v1033, 40
        %v1448 = vpop.permute.xlu0 %1447
        %v1450 = vsel %vm1099, %v1446, 0
        %v1453 = vand.u32 %v1448, %v1106
        %1455 = vmatprep.subr.bf16.mxu0 0
        %1456 = vmatpush1.bf16.msra.mxu0 0
        %1457 = vmatprep.subr.bf16.mxu0 0
        %1458 = vmatpush1.bf16.msra.mxu0 0
        %1459 = vmatprep.subr.bf16.mxu0 0
        %1460 = vmatpush1.bf16.msra.mxu0 0
        %1461 = vmatprep.subr.bf16.mxu0 0
        %1462 = vmatpush1.bf16.msra.mxu0 0
        %1463 = vmatprep.subr.bf16.mxu0 0
        %1464 = vmatpush1.bf16.msra.mxu0 0
        %1465 = vmatprep.subr.bf16.mxu0 0
        %1466 = vmatpush1.bf16.msra.mxu0 0
        %1467 = vmatprep.subr.bf16.mxu0 0
        %1468 = vmatpush1.bf16.msra.mxu0 0
        %1469 = vmatprep.subr.bf16.mxu0 0
        %1470 = vmatpush1.bf16.msra.mxu0 %v1453
        %1471 = vmatprep.subr.bf16.mxu0 0
        %1472 = vmatpush2.bf16.msra.mxu0 0
        %1473 = vmatprep.subr.bf16.mxu0 0
        %1474 = vmatpush2.bf16.msra.mxu0 0
        %1475 = vmatprep.subr.bf16.mxu0 0
        %1476 = vmatpush2.bf16.msra.mxu0 0
        %1477 = vmatprep.subr.bf16.mxu0 0
        %1478 = vmatpush2.bf16.msra.mxu0 0
        %1479 = vmatprep.subr.bf16.mxu0 0
        %1480 = vmatpush2.bf16.msra.mxu0 0
        %1481 = vmatprep.subr.bf16.mxu0 0
        %1482 = vmatpush2.bf16.msra.mxu0 0
        %1483 = vmatprep.subr.bf16.mxu0 0
        %1484 = vmatpush2.bf16.msra.mxu0 0
        %1485 = vmatprep.subr.bf16.mxu0 0
        %1486 = vmatpush2.bf16.msra.mxu0 0
        %1487 = vmatprep.mubr.bf16.mxu0 0
        %1488 = vmatmul.mubr.bf16.gmra.mxu0 %v1450
        %v1489 = vpop.f32.mrf.mxu0
        %v1490 = vadd.f32 0.0, %v1489
        %v1491 = vpop.f32.mrf.mxu0
        %v1492 = vpop.f32.mrf.mxu0
        %v1493 = vpop.f32.mrf.mxu0
        %1494 = vdwg.mxu0
        %1496 = vrot.lane.b32.xlu0 %v1490, 24
        %v1497 = vpop.permute.xlu0 %1496
        %vm1499 = vcmask 258240
        %1500 = vst.msk [vmem:[#allocation3] sm:$0x1f] %vm1499, %v1497
        %v1501 = vmul.f32 %v1028, 0.35355338
        %v1502 = vpack.c.bf16 %v1501, %v1031
        %v1503 = vpack.c.bf16 %v1028, %v1025
        %v1505 = vshrl.u32 %v1502, 16
        %v1507 = vrot.slane %v1505, 2
        %v1508 = vshll.u32 %v1502, 16
        %v1510 = vrot.slane %v1508, 3
        %v1511 = vor.u32 %v1507, %v1510
        %v1513 = vshrl.u32 %v1503, 16
        %v1515 = vrot.slane %v1513, 2
        %v1516 = vshll.u32 %v1503, 16
        %v1518 = vrot.slane %v1516, 3
        %v1519 = vor.u32 %v1515, %v1518
        %1520 = vrot.lane.b32.xlu0 %v1519, 96
        %v1521 = vpop.permute.xlu0 %1520
        %v1523 = vsel %vm1037, %v1511, 0
        %v1526 = vsel %vm1037, %v1521, 0
        %1528 = vmatprep.subr.bf16.mxu0 0
        %1529 = vmatpush1.bf16.xpose.msra.mxu0 0
        %1530 = vmatprep.subr.bf16.mxu0 0
        %1531 = vmatpush1.bf16.xpose.msra.mxu0 0
        %1532 = vmatprep.subr.bf16.mxu0 0
        %1533 = vmatpush1.bf16.xpose.msra.mxu0 0
        %1534 = vmatprep.subr.bf16.mxu0 0
        %1535 = vmatpush1.bf16.xpose.msra.mxu0 0
        %1536 = vmatprep.subr.bf16.mxu0 0
        %1537 = vmatpush1.bf16.xpose.msra.mxu0 0
        %1538 = vmatprep.subr.bf16.mxu0 0
        %1539 = vmatpush1.bf16.xpose.msra.mxu0 0
        %1540 = vmatprep.subr.bf16.mxu0 0
        %1541 = vmatpush1.bf16.xpose.msra.mxu0 0
        %1542 = vmatprep.subr.bf16.mxu0 0
        %1543 = vmatpush1.bf16.xpose.msra.mxu0 %v1526
        %1544 = vmatprep.subr.bf16.mxu0 0
        %1545 = vmatpush2.bf16.xpose.msra.mxu0 0
        %1546 = vmatprep.subr.bf16.mxu0 0
        %1547 = vmatpush2.bf16.xpose.msra.mxu0 0
        %1548 = vmatprep.subr.bf16.mxu0 0
        %1549 = vmatpush2.bf16.xpose.msra.mxu0 0
        %1550 = vmatprep.subr.bf16.mxu0 0
        %1551 = vmatpush2.bf16.xpose.msra.mxu0 0
        %1552 = vmatprep.subr.bf16.mxu0 0
        %1553 = vmatpush2.bf16.xpose.msra.mxu0 0
        %1554 = vmatprep.subr.bf16.mxu0 0
        %1555 = vmatpush2.bf16.xpose.msra.mxu0 0
        %1556 = vmatprep.subr.bf16.mxu0 0
        %1557 = vmatpush2.bf16.xpose.msra.mxu0 0
        %1558 = vmatprep.subr.bf16.mxu0 0
        %1559 = vmatpush2.bf16.xpose.msra.mxu0 0
        %1560 = vmatprep.mubr.bf16.mxu0 0
        %1561 = vmatmul.mubr.bf16.gmra.mxu0 %v1523
        %v1562 = vpop.f32.mrf.mxu0
        %v1563 = vadd.f32 0.0, %v1562
        %v1564 = vpop.f32.mrf.mxu0
        %v1565 = vpop.f32.mrf.mxu0
        %v1566 = vpop.f32.mrf.mxu0
        %1567 = vdwg.mxu0
        %v1568 = vsel %vm1084, %v1563, -inf
        %1569 = vmax.xlane.f32.xlu0 %v1568
        %v1570 = vpop.xlane.xlu0 %1569
        %v1571 = vsub.f32 %v1563, %v1570
        %v1572 = vmul.f32 %v1571, 1.442695
        %v1573 = vpow.pop %v1572
        %v1574 = vsel %vm1084, %v1573, 0.0
        %1575 = vadd.xlane.f32.xlu0 %v1574
        %v1576 = vpop.xlane.xlu0 %1575
        %v1577 = vrcp.pop %v1576
        %v1578 = vmul.f32 %v1573, %v1577
        %v1579 = vpack.c.bf16 %v1578, %v1578
        %1580 = vrot.lane.b32.xlu0 %v1519, 64
        %v1581 = vpop.permute.xlu0 %1580
        %v1583 = vsel %vm1099, %v1579, 0
        %v1586 = vand.u32 %v1581, %v1106
        %1588 = vmatprep.subr.bf16.mxu0 0
        %1589 = vmatpush1.bf16.msra.mxu0 0
        %1590 = vmatprep.subr.bf16.mxu0 0
        %1591 = vmatpush1.bf16.msra.mxu0 0
        %1592 = vmatprep.subr.bf16.mxu0 0
        %1593 = vmatpush1.bf16.msra.mxu0 0
        %1594 = vmatprep.subr.bf16.mxu0 0
        %1595 = vmatpush1.bf16.msra.mxu0 0
        %1596 = vmatprep.subr.bf16.mxu0 0
        %1597 = vmatpush1.bf16.msra.mxu0 0
        %1598 = vmatprep.subr.bf16.mxu0 0
        %1599 = vmatpush1.bf16.msra.mxu0 0
        %1600 = vmatprep.subr.bf16.mxu0 0
        %1601 = vmatpush1.bf16.msra.mxu0 0
        %1602 = vmatprep.subr.bf16.mxu0 0
        %1603 = vmatpush1.bf16.msra.mxu0 %v1586
        %1604 = vmatprep.subr.bf16.mxu0 0
        %1605 = vmatpush2.bf16.msra.mxu0 0
        %1606 = vmatprep.subr.bf16.mxu0 0
        %1607 = vmatpush2.bf16.msra.mxu0 0
        %1608 = vmatprep.subr.bf16.mxu0 0
        %1609 = vmatpush2.bf16.msra.mxu0 0
        %1610 = vmatprep.subr.bf16.mxu0 0
        %1611 = vmatpush2.bf16.msra.mxu0 0
        %1612 = vmatprep.subr.bf16.mxu0 0
        %1613 = vmatpush2.bf16.msra.mxu0 0
        %1614 = vmatprep.subr.bf16.mxu0 0
        %1615 = vmatpush2.bf16.msra.mxu0 0
        %1616 = vmatprep.subr.bf16.mxu0 0
        %1617 = vmatpush2.bf16.msra.mxu0 0
        %1618 = vmatprep.subr.bf16.mxu0 0
        %1619 = vmatpush2.bf16.msra.mxu0 0
        %1620 = vmatprep.mubr.bf16.mxu0 0
        %1621 = vmatmul.mubr.bf16.gmra.mxu0 %v1583
        %v1622 = vpop.f32.mrf.mxu0
        %v1623 = vadd.f32 0.0, %v1622
        %v1624 = vpop.f32.mrf.mxu0
        %v1625 = vpop.f32.mrf.mxu0
        %v1626 = vpop.f32.mrf.mxu0
        %1627 = vdwg.mxu0
        %1628 = vst.msk [vmem:[#allocation3 + $0x5] sm:$0x1f] %vm1150, %v1623
        %1629 = vrot.lane.b32.xlu0 %v1511, 120
        %v1630 = vpop.permute.xlu0 %1629
        %1631 = vrot.lane.b32.xlu0 %v1519, 88
        %v1632 = vpop.permute.xlu0 %1631
        %v1634 = vsel %vm1037, %v1630, 0
        %v1637 = vsel %vm1037, %v1632, 0
        %1639 = vmatprep.subr.bf16.mxu0 0
        %1640 = vmatpush1.bf16.xpose.msra.mxu0 0
        %1641 = vmatprep.subr.bf16.mxu0 0
        %1642 = vmatpush1.bf16.xpose.msra.mxu0 0
        %1643 = vmatprep.subr.bf16.mxu0 0
        %1644 = vmatpush1.bf16.xpose.msra.mxu0 0
        %1645 = vmatprep.subr.bf16.mxu0 0
        %1646 = vmatpush1.bf16.xpose.msra.mxu0 0
        %1647 = vmatprep.subr.bf16.mxu0 0
        %1648 = vmatpush1.bf16.xpose.msra.mxu0 0
        %1649 = vmatprep.subr.bf16.mxu0 0
        %1650 = vmatpush1.bf16.xpose.msra.mxu0 0
        %1651 = vmatprep.subr.bf16.mxu0 0
        %1652 = vmatpush1.bf16.xpose.msra.mxu0 0
        %1653 = vmatprep.subr.bf16.mxu0 0
        %1654 = vmatpush1.bf16.xpose.msra.mxu0 %v1637
        %1655 = vmatprep.subr.bf16.mxu0 0
        %1656 = vmatpush2.bf16.xpose.msra.mxu0 0
        %1657 = vmatprep.subr.bf16.mxu0 0
        %1658 = vmatpush2.bf16.xpose.msra.mxu0 0
        %1659 = vmatprep.subr.bf16.mxu0 0
        %1660 = vmatpush2.bf16.xpose.msra.mxu0 0
        %1661 = vmatprep.subr.bf16.mxu0 0
        %1662 = vmatpush2.bf16.xpose.msra.mxu0 0
        %1663 = vmatprep.subr.bf16.mxu0 0
        %1664 = vmatpush2.bf16.xpose.msra.mxu0 0
        %1665 = vmatprep.subr.bf16.mxu0 0
        %1666 = vmatpush2.bf16.xpose.msra.mxu0 0
        %1667 = vmatprep.subr.bf16.mxu0 0
        %1668 = vmatpush2.bf16.xpose.msra.mxu0 0
        %1669 = vmatprep.subr.bf16.mxu0 0
        %1670 = vmatpush2.bf16.xpose.msra.mxu0 0
        %1671 = vmatprep.mubr.bf16.mxu0 0
        %1672 = vmatmul.mubr.bf16.gmra.mxu0 %v1634
        %v1673 = vpop.f32.mrf.mxu0
        %v1674 = vadd.f32 0.0, %v1673
        %v1675 = vpop.f32.mrf.mxu0
        %v1676 = vpop.f32.mrf.mxu0
        %v1677 = vpop.f32.mrf.mxu0
        %1678 = vdwg.mxu0
        %v1679 = vsel %vm1084, %v1674, -inf
        %1680 = vmax.xlane.f32.xlu0 %v1679
        %v1681 = vpop.xlane.xlu0 %1680
        %v1682 = vsub.f32 %v1674, %v1681
        %v1683 = vmul.f32 %v1682, 1.442695
        %v1684 = vpow.pop %v1683
        %v1685 = vsel %vm1084, %v1684, 0.0
        %1686 = vadd.xlane.f32.xlu0 %v1685
        %v1687 = vpop.xlane.xlu0 %1686
        %v1688 = vrcp.pop %v1687
        %v1689 = vmul.f32 %v1684, %v1688
        %v1690 = vpack.c.bf16 %v1689, %v1689
        %1691 = vrot.lane.b32.xlu0 %v1519, 56
        %v1692 = vpop.permute.xlu0 %1691
        %v1694 = vsel %vm1099, %v1690, 0
        %v1697 = vand.u32 %v1692, %v1106
        %1699 = vmatprep.subr.bf16.mxu0 0
        %1700 = vmatpush1.bf16.msra.mxu0 0
        %1701 = vmatprep.subr.bf16.mxu0 0
        %1702 = vmatpush1.bf16.msra.mxu0 0
        %1703 = vmatprep.subr.bf16.mxu0 0
        %1704 = vmatpush1.bf16.msra.mxu0 0
        %1705 = vmatprep.subr.bf16.mxu0 0
        %1706 = vmatpush1.bf16.msra.mxu0 0
        %1707 = vmatprep.subr.bf16.mxu0 0
        %1708 = vmatpush1.bf16.msra.mxu0 0
        %1709 = vmatprep.subr.bf16.mxu0 0
        %1710 = vmatpush1.bf16.msra.mxu0 0
        %1711 = vmatprep.subr.bf16.mxu0 0
        %1712 = vmatpush1.bf16.msra.mxu0 0
        %1713 = vmatprep.subr.bf16.mxu0 0
        %1714 = vmatpush1.bf16.msra.mxu0 %v1697
        %1715 = vmatprep.subr.bf16.mxu0 0
        %1716 = vmatpush2.bf16.msra.mxu0 0
        %1717 = vmatprep.subr.bf16.mxu0 0
        %1718 = vmatpush2.bf16.msra.mxu0 0
        %1719 = vmatprep.subr.bf16.mxu0 0
        %1720 = vmatpush2.bf16.msra.mxu0 0
        %1721 = vmatprep.subr.bf16.mxu0 0
        %1722 = vmatpush2.bf16.msra.mxu0 0
        %1723 = vmatprep.subr.bf16.mxu0 0
        %1724 = vmatpush2.bf16.msra.mxu0 0
        %1725 = vmatprep.subr.bf16.mxu0 0
        %1726 = vmatpush2.bf16.msra.mxu0 0
        %1727 = vmatprep.subr.bf16.mxu0 0
        %1728 = vmatpush2.bf16.msra.mxu0 0
        %1729 = vmatprep.subr.bf16.mxu0 0
        %1730 = vmatpush2.bf16.msra.mxu0 0
        %1731 = vmatprep.mubr.bf16.mxu0 0
        %1732 = vmatmul.mubr.bf16.gmra.mxu0 %v1694
        %v1733 = vpop.f32.mrf.mxu0
        %v1734 = vadd.f32 0.0, %v1733
        %v1735 = vpop.f32.mrf.mxu0
        %v1736 = vpop.f32.mrf.mxu0
        %v1737 = vpop.f32.mrf.mxu0
        %1738 = vdwg.mxu0
        %1740 = vrot.lane.b32.xlu0 %v1734, 8
        %v1741 = vpop.permute.xlu0 %1740
        %1743 = vst.msk [vmem:[#allocation3 + $0x5] sm:$0x1f] %vm1267, %v1741
        %1744 = vrot.lane.b32.xlu0 %v1511, 112
        %v1745 = vpop.permute.xlu0 %1744
        %1746 = vrot.lane.b32.xlu0 %v1519, 80
        %v1747 = vpop.permute.xlu0 %1746
        %v1749 = vsel %vm1037, %v1745, 0
        %v1752 = vsel %vm1037, %v1747, 0
        %1754 = vmatprep.subr.bf16.mxu0 0
        %1755 = vmatpush1.bf16.xpose.msra.mxu0 0
        %1756 = vmatprep.subr.bf16.mxu0 0
        %1757 = vmatpush1.bf16.xpose.msra.mxu0 0
        %1758 = vmatprep.subr.bf16.mxu0 0
        %1759 = vmatpush1.bf16.xpose.msra.mxu0 0
        %1760 = vmatprep.subr.bf16.mxu0 0
        %1761 = vmatpush1.bf16.xpose.msra.mxu0 0
        %1762 = vmatprep.subr.bf16.mxu0 0
        %1763 = vmatpush1.bf16.xpose.msra.mxu0 0
        %1764 = vmatprep.subr.bf16.mxu0 0
        %1765 = vmatpush1.bf16.xpose.msra.mxu0 0
        %1766 = vmatprep.subr.bf16.mxu0 0
        %1767 = vmatpush1.bf16.xpose.msra.mxu0 0
        %1768 = vmatprep.subr.bf16.mxu0 0
        %1769 = vmatpush1.bf16.xpose.msra.mxu0 %v1752
        %1770 = vmatprep.subr.bf16.mxu0 0
        %1771 = vmatpush2.bf16.xpose.msra.mxu0 0
        %1772 = vmatprep.subr.bf16.mxu0 0
        %1773 = vmatpush2.bf16.xpose.msra.mxu0 0
        %1774 = vmatprep.subr.bf16.mxu0 0
        %1775 = vmatpush2.bf16.xpose.msra.mxu0 0
        %1776 = vmatprep.subr.bf16.mxu0 0
        %1777 = vmatpush2.bf16.xpose.msra.mxu0 0
        %1778 = vmatprep.subr.bf16.mxu0 0
        %1779 = vmatpush2.bf16.xpose.msra.mxu0 0
        %1780 = vmatprep.subr.bf16.mxu0 0
        %1781 = vmatpush2.bf16.xpose.msra.mxu0 0
        %1782 = vmatprep.subr.bf16.mxu0 0
        %1783 = vmatpush2.bf16.xpose.msra.mxu0 0
        %1784 = vmatprep.subr.bf16.mxu0 0
        %1785 = vmatpush2.bf16.xpose.msra.mxu0 0
        %1786 = vmatprep.mubr.bf16.mxu0 0
        %1787 = vmatmul.mubr.bf16.gmra.mxu0 %v1749
        %v1788 = vpop.f32.mrf.mxu0
        %v1789 = vadd.f32 0.0, %v1788
        %v1790 = vpop.f32.mrf.mxu0
        %v1791 = vpop.f32.mrf.mxu0
        %v1792 = vpop.f32.mrf.mxu0
        %1793 = vdwg.mxu0
        %v1794 = vsel %vm1084, %v1789, -inf
        %1795 = vmax.xlane.f32.xlu0 %v1794
        %v1796 = vpop.xlane.xlu0 %1795
        %v1797 = vsub.f32 %v1789, %v1796
        %v1798 = vmul.f32 %v1797, 1.442695
        %v1799 = vpow.pop %v1798
        %v1800 = vsel %vm1084, %v1799, 0.0
        %1801 = vadd.xlane.f32.xlu0 %v1800
        %v1802 = vpop.xlane.xlu0 %1801
        %v1803 = vrcp.pop %v1802
        %v1804 = vmul.f32 %v1799, %v1803
        %v1805 = vpack.c.bf16 %v1804, %v1804
        %1806 = vrot.lane.b32.xlu0 %v1519, 48
        %v1807 = vpop.permute.xlu0 %1806
        %v1809 = vsel %vm1099, %v1805, 0
        %v1812 = vand.u32 %v1807, %v1106
        %1814 = vmatprep.subr.bf16.mxu0 0
        %1815 = vmatpush1.bf16.msra.mxu0 0
        %1816 = vmatprep.subr.bf16.mxu0 0
        %1817 = vmatpush1.bf16.msra.mxu0 0
        %1818 = vmatprep.subr.bf16.mxu0 0
        %1819 = vmatpush1.bf16.msra.mxu0 0
        %1820 = vmatprep.subr.bf16.mxu0 0
        %1821 = vmatpush1.bf16.msra.mxu0 0
        %1822 = vmatprep.subr.bf16.mxu0 0
        %1823 = vmatpush1.bf16.msra.mxu0 0
        %1824 = vmatprep.subr.bf16.mxu0 0
        %1825 = vmatpush1.bf16.msra.mxu0 0
        %1826 = vmatprep.subr.bf16.mxu0 0
        %1827 = vmatpush1.bf16.msra.mxu0 0
        %1828 = vmatprep.subr.bf16.mxu0 0
        %1829 = vmatpush1.bf16.msra.mxu0 %v1812
        %1830 = vmatprep.subr.bf16.mxu0 0
        %1831 = vmatpush2.bf16.msra.mxu0 0
        %1832 = vmatprep.subr.bf16.mxu0 0
        %1833 = vmatpush2.bf16.msra.mxu0 0
        %1834 = vmatprep.subr.bf16.mxu0 0
        %1835 = vmatpush2.bf16.msra.mxu0 0
        %1836 = vmatprep.subr.bf16.mxu0 0
        %1837 = vmatpush2.bf16.msra.mxu0 0
        %1838 = vmatprep.subr.bf16.mxu0 0
        %1839 = vmatpush2.bf16.msra.mxu0 0
        %1840 = vmatprep.subr.bf16.mxu0 0
        %1841 = vmatpush2.bf16.msra.mxu0 0
        %1842 = vmatprep.subr.bf16.mxu0 0
        %1843 = vmatpush2.bf16.msra.mxu0 0
        %1844 = vmatprep.subr.bf16.mxu0 0
        %1845 = vmatpush2.bf16.msra.mxu0 0
        %1846 = vmatprep.mubr.bf16.mxu0 0
        %1847 = vmatmul.mubr.bf16.gmra.mxu0 %v1809
        %v1848 = vpop.f32.mrf.mxu0
        %v1849 = vadd.f32 0.0, %v1848
        %v1850 = vpop.f32.mrf.mxu0
        %v1851 = vpop.f32.mrf.mxu0
        %v1852 = vpop.f32.mrf.mxu0
        %1853 = vdwg.mxu0
        %1855 = vrot.lane.b32.xlu0 %v1849, 16
        %v1856 = vpop.permute.xlu0 %1855
        %1858 = vst.msk [vmem:[#allocation3 + $0x5] sm:$0x1f] %vm1383, %v1856
        %1859 = vrot.lane.b32.xlu0 %v1511, 104
        %v1860 = vpop.permute.xlu0 %1859
        %1861 = vrot.lane.b32.xlu0 %v1519, 72
        %v1862 = vpop.permute.xlu0 %1861
        %v1864 = vsel %vm1037, %v1860, 0
        %v1867 = vsel %vm1037, %v1862, 0
        %1869 = vmatprep.subr.bf16.mxu0 0
        %1870 = vmatpush1.bf16.xpose.msra.mxu0 0
        %1871 = vmatprep.subr.bf16.mxu0 0
        %1872 = vmatpush1.bf16.xpose.msra.mxu0 0
        %1873 = vmatprep.subr.bf16.mxu0 0
        %1874 = vmatpush1.bf16.xpose.msra.mxu0 0
        %1875 = vmatprep.subr.bf16.mxu0 0
        %1876 = vmatpush1.bf16.xpose.msra.mxu0 0
        %1877 = vmatprep.subr.bf16.mxu0 0
        %1878 = vmatpush1.bf16.xpose.msra.mxu0 0
        %1879 = vmatprep.subr.bf16.mxu0 0
        %1880 = vmatpush1.bf16.xpose.msra.mxu0 0
        %1881 = vmatprep.subr.bf16.mxu0 0
        %1882 = vmatpush1.bf16.xpose.msra.mxu0 0
        %1883 = vmatprep.subr.bf16.mxu0 0
        %1884 = vmatpush1.bf16.xpose.msra.mxu0 %v1867
        %1885 = vmatprep.subr.bf16.mxu0 0
        %1886 = vmatpush2.bf16.xpose.msra.mxu0 0
        %1887 = vmatprep.subr.bf16.mxu0 0
        %1888 = vmatpush2.bf16.xpose.msra.mxu0 0
        %1889 = vmatprep.subr.bf16.mxu0 0
        %1890 = vmatpush2.bf16.xpose.msra.mxu0 0
        %1891 = vmatprep.subr.bf16.mxu0 0
        %1892 = vmatpush2.bf16.xpose.msra.mxu0 0
        %1893 = vmatprep.subr.bf16.mxu0 0
        %1894 = vmatpush2.bf16.xpose.msra.mxu0 0
        %1895 = vmatprep.subr.bf16.mxu0 0
        %1896 = vmatpush2.bf16.xpose.msra.mxu0 0
        %1897 = vmatprep.subr.bf16.mxu0 0
        %1898 = vmatpush2.bf16.xpose.msra.mxu0 0
        %1899 = vmatprep.subr.bf16.mxu0 0
        %1900 = vmatpush2.bf16.xpose.msra.mxu0 0
        %1901 = vmatprep.mubr.bf16.mxu0 0
        %1902 = vmatmul.mubr.bf16.gmra.mxu0 %v1864
        %v1903 = vpop.f32.mrf.mxu0
        %v1904 = vadd.f32 0.0, %v1903
        %v1905 = vpop.f32.mrf.mxu0
        %v1906 = vpop.f32.mrf.mxu0
        %v1907 = vpop.f32.mrf.mxu0
        %1908 = vdwg.mxu0
        %v1909 = vsel %vm1084, %v1904, -inf
        %1910 = vmax.xlane.f32.xlu0 %v1909
        %v1911 = vpop.xlane.xlu0 %1910
        %v1912 = vsub.f32 %v1904, %v1911
        %v1913 = vmul.f32 %v1912, 1.442695
        %v1914 = vpow.pop %v1913
        %v1915 = vsel %vm1084, %v1914, 0.0
        %1916 = vadd.xlane.f32.xlu0 %v1915
        %v1917 = vpop.xlane.xlu0 %1916
        %v1918 = vrcp.pop %v1917
        %v1919 = vmul.f32 %v1914, %v1918
        %v1920 = vpack.c.bf16 %v1919, %v1919
        %1921 = vrot.lane.b32.xlu0 %v1519, 40
        %v1922 = vpop.permute.xlu0 %1921
        %v1924 = vsel %vm1099, %v1920, 0
        %v1927 = vand.u32 %v1922, %v1106
        %1929 = vmatprep.subr.bf16.mxu0 0
        %1930 = vmatpush1.bf16.msra.mxu0 0
        %1931 = vmatprep.subr.bf16.mxu0 0
        %1932 = vmatpush1.bf16.msra.mxu0 0
        %1933 = vmatprep.subr.bf16.mxu0 0
        %1934 = vmatpush1.bf16.msra.mxu0 0
        %1935 = vmatprep.subr.bf16.mxu0 0
        %1936 = vmatpush1.bf16.msra.mxu0 0
        %1937 = vmatprep.subr.bf16.mxu0 0
        %1938 = vmatpush1.bf16.msra.mxu0 0
        %1939 = vmatprep.subr.bf16.mxu0 0
        %1940 = vmatpush1.bf16.msra.mxu0 0
        %1941 = vmatprep.subr.bf16.mxu0 0
        %1942 = vmatpush1.bf16.msra.mxu0 0
        %1943 = vmatprep.subr.bf16.mxu0 0
        %1944 = vmatpush1.bf16.msra.mxu0 %v1927
        %1945 = vmatprep.subr.bf16.mxu0 0
        %1946 = vmatpush2.bf16.msra.mxu0 0
        %1947 = vmatprep.subr.bf16.mxu0 0
        %1948 = vmatpush2.bf16.msra.mxu0 0
        %1949 = vmatprep.subr.bf16.mxu0 0
        %1950 = vmatpush2.bf16.msra.mxu0 0
        %1951 = vmatprep.subr.bf16.mxu0 0
        %1952 = vmatpush2.bf16.msra.mxu0 0
        %1953 = vmatprep.subr.bf16.mxu0 0
        %1954 = vmatpush2.bf16.msra.mxu0 0
        %1955 = vmatprep.subr.bf16.mxu0 0
        %1956 = vmatpush2.bf16.msra.mxu0 0
        %1957 = vmatprep.subr.bf16.mxu0 0
        %1958 = vmatpush2.bf16.msra.mxu0 0
        %1959 = vmatprep.subr.bf16.mxu0 0
        %1960 = vmatpush2.bf16.msra.mxu0 0
        %1961 = vmatprep.mubr.bf16.mxu0 0
        %1962 = vmatmul.mubr.bf16.gmra.mxu0 %v1924
        %v1963 = vpop.f32.mrf.mxu0
        %v1964 = vadd.f32 0.0, %v1963
        %v1965 = vpop.f32.mrf.mxu0
        %v1966 = vpop.f32.mrf.mxu0
        %v1967 = vpop.f32.mrf.mxu0
        %1968 = vdwg.mxu0
        %1970 = vrot.lane.b32.xlu0 %v1964, 24
        %v1971 = vpop.permute.xlu0 %1970
        %1973 = vst.msk [vmem:[#allocation3 + $0x5] sm:$0x1f] %vm1499, %v1971
        %v1974 = vld [vmem:[#allocation3] sm:$0xff]
        %v1975 = vld [vmem:[#allocation3 + $0x8] sm:$0x3]
        %v1976 = vld [vmem:[%s560] sm:$0xf]
        %v1977 = vld [vmem:[%s560 + $0x4] sm:$0xf]
        %v1978 = vld [vmem:[%s560 + $0x8] sm:$0xf]
        %v1979 = vld [vmem:[%s560 + $0xc] sm:$0xf]
        %v1980 = vpack.c.bf16 %v1975, %v1974
        %v1985 = vunpack.c.l.b16 %v1976
        %v1986 = vunpack.c.l.b16 %v1977
        %v1987 = vunpack.c.l.b16 %v1978
        %v1988 = vunpack.c.l.b16 %v1979
        %v1989 = vpack.c.b16 %v1986, %v1985
        %v1990 = vpack.c.b16 %v1988, %v1987
        %v1994 = vsel %vm922, %v1980, 0
        %1996 = vmatprep.subr.bf16.mxu0 0
        %1997 = vmatpush1.bf16.msra.mxu0 0
        %1998 = vmatprep.subr.bf16.mxu0 0
        %1999 = vmatpush1.bf16.msra.mxu0 0
        %2000 = vmatprep.subr.bf16.mxu0 0
        %2001 = vmatpush1.bf16.msra.mxu0 0
        %2002 = vmatprep.subr.bf16.mxu0 0
        %2003 = vmatpush1.bf16.msra.mxu0 0
        %2004 = vmatprep.subr.bf16.mxu0 0
        %2005 = vmatpush1.bf16.msra.mxu0 0
        %2006 = vmatprep.subr.bf16.mxu0 0
        %2007 = vmatpush1.bf16.msra.mxu0 0
        %2008 = vmatprep.subr.bf16.mxu0 0
        %2009 = vmatpush1.bf16.msra.mxu0 %v1990
        %2010 = vmatprep.subr.bf16.mxu0 0
        %2011 = vmatpush1.bf16.msra.mxu0 %v1989
        %2012 = vmatprep.subr.bf16.mxu0 0
        %2013 = vmatpush2.bf16.msra.mxu0 0
        %2014 = vmatprep.subr.bf16.mxu0 0
        %2015 = vmatpush2.bf16.msra.mxu0 0
        %2016 = vmatprep.subr.bf16.mxu0 0
        %2017 = vmatpush2.bf16.msra.mxu0 0
        %2018 = vmatprep.subr.bf16.mxu0 0
        %2019 = vmatpush2.bf16.msra.mxu0 0
        %2020 = vmatprep.subr.bf16.mxu0 0
        %2021 = vmatpush2.bf16.msra.mxu0 0
        %2022 = vmatprep.subr.bf16.mxu0 0
        %2023 = vmatpush2.bf16.msra.mxu0 0
        %2024 = vmatprep.subr.bf16.mxu0 0
        %2025 = vmatpush2.bf16.msra.mxu0 0
        %2026 = vmatprep.subr.bf16.mxu0 0
        %2027 = vmatpush2.bf16.msra.mxu0 0
        %2028 = vmatprep.mubr.bf16.mxu0 0
        %2029 = vmatmul.mubr.bf16.gmra.mxu0 %v1994
        %v2030 = vpop.f32.mrf.mxu0
        %v2031 = vadd.f32 0.0, %v2030
        %v2032 = vpop.f32.mrf.mxu0
        %v2033 = vpop.f32.mrf.mxu0
        %v2034 = vadd.f32 0.0, %v2033
        %v2035 = vpop.f32.mrf.mxu0
        %2036 = vdwg.mxu0
        %v2037 = vadd.f32 %v919, %v2031
        %v2038 = vadd.f32 %v920, %v2034
        %v2039 = vlaneseq
        %v2040 = vshrl.u32 %v2039, 7
        %v2041 = vsub.s32 4, %v2040
        %v2042 = vrot.slane %v921, %v2041
        %v2043 = vadd.f32 %v2037, %v2042
        %v2044 = vadd.f32 %v2038, %v2042
        %v2045 = vsel %vm922, %v2043, 0.0
        %2046 = vadd.xlane.f32.xlu0 %v2045
        %v2047 = vpop.xlane.xlu0 %2046
        %v2048 = vsel %vm926, %v2044, 0.0
        %2049 = vadd.xlane.f32.xlu0 %v2048
        %v2050 = vpop.xlane.xlu0 %2049
        %v2051 = vmul.f32 %v2047, %v930
        %v2052 = vmul.f32 %v2050, %v930
        %v2053 = vsub.f32 %v2043, %v2051
        %v2054 = vsub.f32 %v2044, %v2052
        %v2055 = vmul.f32 %v2053, %v2053
        %v2056 = vmul.f32 %v2054, %v2054
        %v2057 = vsel %vm922, %v2055, 0.0
        %2058 = vadd.xlane.f32.xlu0 %v2057
        %v2059 = vpop.xlane.xlu0 %2058
        %v2060 = vsel %vm926, %v2056, 0.0
        %2061 = vadd.xlane.f32.xlu0 %v2060
        %v2062 = vpop.xlane.xlu0 %2061
        %v2063 = vmul.f32 %v2059, %v930
        %v2064 = vmul.f32 %v2062, %v930
        %v2065 = vadd.f32 %v2063, 1e-05
        %v2066 = vadd.f32 %v2064, 1e-05
        %v2067 = vrsqrt.pop %v2065
        %v2068 = vrsqrt.pop %v2066
        %v2069 = vmul.f32 %v2053, %v2067
        %v2070 = vmul.f32 %v2054, %v2068
        %v2071 = vlaneseq
        %v2072 = vshrl.u32 %v2071, 7
        %v2073 = vsub.s32 2, %v2072
        %v2074 = vrot.slane %v921, %v2073
        %v2075 = vmul.f32 %v2069, %v2074
        %v2076 = vmul.f32 %v2070, %v2074
        %v2077 = vlaneseq
        %v2078 = vshrl.u32 %v2077, 7
        %v2079 = vsub.s32 3, %v2078
        %v2080 = vrot.slane %v921, %v2079
        %v2081 = vadd.f32 %v2075, %v2080
        %v2082 = vadd.f32 %v2076, %v2080
        %v2083 = vld [vmem:[%s565] sm:$0xf]
        %v2084 = vld [vmem:[%s565 + $0x4] sm:$0xf]
        %v2085 = vld [vmem:[%s565 + $0x8] sm:$0xf]
        %v2086 = vld [vmem:[%s565 + $0xc] sm:$0xf]
        %v2087 = vpack.c.bf16 %v2082, %v2081
        %v2088 = vld [vmem:[%s568] sm:$0x1]
        %v2090 = vlaneseq
        %v2091 = vshrl.u32 %v2090, 7
        %v2092 = vsub.s32 0, %v2091
        %v2093 = vrot.slane %v2088, %v2092
        %v2099 = vunpack.c.l.b16 %v2083
        %v2100 = vunpack.c.l.b16 %v2084
        %v2101 = vunpack.c.l.b16 %v2085
        %v2102 = vunpack.c.l.b16 %v2086
        %v2103 = vpack.c.b16 %v2100, %v2099
        %v2104 = vpack.c.b16 %v2102, %v2101
        %v2108 = vsel %vm922, %v2087, 0
        %2110 = vmatprep.subr.bf16.mxu0 0
        %2111 = vmatpush1.bf16.msra.mxu0 0
        %2112 = vmatprep.subr.bf16.mxu0 0
        %2113 = vmatpush1.bf16.msra.mxu0 0
        %2114 = vmatprep.subr.bf16.mxu0 0
        %2115 = vmatpush1.bf16.msra.mxu0 0
        %2116 = vmatprep.subr.bf16.mxu0 0
        %2117 = vmatpush1.bf16.msra.mxu0 0
        %2118 = vmatprep.subr.bf16.mxu0 0
        %2119 = vmatpush1.bf16.msra.mxu0 0
        %2120 = vmatprep.subr.bf16.mxu0 0
        %2121 = vmatpush1.bf16.msra.mxu0 0
        %2122 = vmatprep.subr.bf16.mxu0 0
        %2123 = vmatpush1.bf16.msra.mxu0 %v2104
        %2124 = vmatprep.subr.bf16.mxu0 0
        %2125 = vmatpush1.bf16.msra.mxu0 %v2103
        %2126 = vmatprep.subr.bf16.mxu0 0
        %2127 = vmatpush2.bf16.msra.mxu0 0
        %2128 = vmatprep.subr.bf16.mxu0 0
        %2129 = vmatpush2.bf16.msra.mxu0 0
        %2130 = vmatprep.subr.bf16.mxu0 0
        %2131 = vmatpush2.bf16.msra.mxu0 0
        %2132 = vmatprep.subr.bf16.mxu0 0
        %2133 = vmatpush2.bf16.msra.mxu0 0
        %2134 = vmatprep.subr.bf16.mxu0 0
        %2135 = vmatpush2.bf16.msra.mxu0 0
        %2136 = vmatprep.subr.bf16.mxu0 0
        %2137 = vmatpush2.bf16.msra.mxu0 0
        %2138 = vmatprep.subr.bf16.mxu0 0
        %2139 = vmatpush2.bf16.msra.mxu0 0
        %2140 = vmatprep.subr.bf16.mxu0 0
        %2141 = vmatpush2.bf16.msra.mxu0 0
        %2142 = vmatprep.mubr.bf16.mxu0 0
        %2143 = vmatmul.mubr.bf16.gmra.mxu0 %v2108
        %v2144 = vpop.f32.mrf.mxu0
        %v2145 = vadd.f32 %v2093, %v2144
        %v2146 = vpop.f32.mrf.mxu0
        %v2147 = vpop.f32.mrf.mxu0
        %v2148 = vadd.f32 %v2093, %v2147
        %v2149 = vpop.f32.mrf.mxu0
        %2150 = vdwg.mxu0
        %v2151 = vmul.f32 %v2145, 1.702
        %v2152 = vmul.f32 %v2148, 1.702
        %v2153 = vxor.u32 %v2151, 2147483648
        %v2154 = vxor.u32 %v2152, 2147483648
        %v2155 = vmul.f32 %v2153, 1.442695
        %v2156 = vpow.pop %v2155
        %v2157 = vmul.f32 %v2154, 1.442695
        %v2158 = vpow.pop %v2157
        %v2159 = vadd.f32 %v2156, 1.0
        %v2160 = vadd.f32 %v2158, 1.0
        %v2161 = vrcp.pop %v2159
        %v2162 = vmul.f32 1.0, %v2161
        %v2163 = vrcp.pop %v2160
        %v2164 = vmul.f32 1.0, %v2163
        %v2165 = vmul.f32 %v2145, %v2162
        %v2166 = vmul.f32 %v2148, %v2164
        %v2167 = vld [vmem:[%s573] sm:$0xf]
        %v2168 = vld [vmem:[%s573 + $0x4] sm:$0xf]
        %v2169 = vld [vmem:[%s573 + $0x8] sm:$0xf]
        %v2170 = vld [vmem:[%s573 + $0xc] sm:$0xf]
        %v2171 = vld [vmem:[%s573 + $0x10] sm:$0xf]
        %v2172 = vld [vmem:[%s573 + $0x14] sm:$0xf]
        %v2173 = vld [vmem:[%s573 + $0x18] sm:$0xf]
        %v2174 = vld [vmem:[%s573 + $0x1c] sm:$0xf]
        %v2175 = vld [vmem:[%s573 + $0x20] sm:$0xf]
        %v2176 = vld [vmem:[%s573 + $0x24] sm:$0xf]
        %v2177 = vld [vmem:[%s573 + $0x28] sm:$0xf]
        %v2178 = vld [vmem:[%s573 + $0x2c] sm:$0xf]
        %v2179 = vld [vmem:[%s573 + $0x30] sm:$0xf]
        %v2180 = vld [vmem:[%s573 + $0x34] sm:$0xf]
        %v2181 = vld [vmem:[%s573 + $0x38] sm:$0xf]
        %v2182 = vld [vmem:[%s573 + $0x3c] sm:$0xf]
        %v2183 = vpack.c.bf16 %v2166, %v2165
        %v2200 = vunpack.c.l.b16 %v2167
        %v2201 = vunpack.c.l.b16 %v2168
        %v2202 = vunpack.c.l.b16 %v2169
        %v2203 = vunpack.c.l.b16 %v2170
        %v2204 = vunpack.c.l.b16 %v2171
        %v2205 = vunpack.c.l.b16 %v2172
        %v2206 = vunpack.c.l.b16 %v2173
        %v2207 = vunpack.c.l.b16 %v2174
        %v2208 = vunpack.c.l.b16 %v2175
        %v2209 = vunpack.c.l.b16 %v2176
        %v2210 = vunpack.c.l.b16 %v2177
        %v2211 = vunpack.c.l.b16 %v2178
        %v2212 = vunpack.c.l.b16 %v2179
        %v2213 = vunpack.c.l.b16 %v2180
        %v2214 = vunpack.c.l.b16 %v2181
        %v2215 = vunpack.c.l.b16 %v2182
        %v2216 = vpack.c.b16 %v2201, %v2200
        %v2217 = vpack.c.b16 %v2203, %v2202
        %v2218 = vpack.c.b16 %v2205, %v2204
        %v2219 = vpack.c.b16 %v2207, %v2206
        %v2220 = vpack.c.b16 %v2209, %v2208
        %v2221 = vpack.c.b16 %v2211, %v2210
        %v2222 = vpack.c.b16 %v2213, %v2212
        %v2223 = vpack.c.b16 %v2215, %v2214
        %2232 = vmatprep.subr.bf16.mxu0 0
        %2233 = vmatpush1.bf16.msra.mxu0 %v2223
        %2234 = vmatprep.subr.bf16.mxu0 0
        %2235 = vmatpush1.bf16.msra.mxu0 %v2222
        %2236 = vmatprep.subr.bf16.mxu0 0
        %2237 = vmatpush1.bf16.msra.mxu0 %v2221
        %2238 = vmatprep.subr.bf16.mxu0 0
        %2239 = vmatpush1.bf16.msra.mxu0 %v2220
        %2240 = vmatprep.subr.bf16.mxu0 0
        %2241 = vmatpush1.bf16.msra.mxu0 %v2219
        %2242 = vmatprep.subr.bf16.mxu0 0
        %2243 = vmatpush1.bf16.msra.mxu0 %v2218
        %2244 = vmatprep.subr.bf16.mxu0 0
        %2245 = vmatpush1.bf16.msra.mxu0 %v2217
        %2246 = vmatprep.subr.bf16.mxu0 0
        %2247 = vmatpush1.bf16.msra.mxu0 %v2216
        %2248 = vmatprep.subr.bf16.mxu0 0
        %2249 = vmatpush2.bf16.msra.mxu0 0
        %2250 = vmatprep.subr.bf16.mxu0 0
        %2251 = vmatpush2.bf16.msra.mxu0 0
        %2252 = vmatprep.subr.bf16.mxu0 0
        %2253 = vmatpush2.bf16.msra.mxu0 0
        %2254 = vmatprep.subr.bf16.mxu0 0
        %2255 = vmatpush2.bf16.msra.mxu0 0
        %2256 = vmatprep.subr.bf16.mxu0 0
        %2257 = vmatpush2.bf16.msra.mxu0 0
        %2258 = vmatprep.subr.bf16.mxu0 0
        %2259 = vmatpush2.bf16.msra.mxu0 0
        %2260 = vmatprep.subr.bf16.mxu0 0
        %2261 = vmatpush2.bf16.msra.mxu0 0
        %2262 = vmatprep.subr.bf16.mxu0 0
        %2263 = vmatpush2.bf16.msra.mxu0 0
        %2264 = vmatprep.mubr.bf16.mxu0 0
        %2265 = vmatmul.mubr.bf16.gmra.mxu0 %v2183
        %v2266 = vpop.f32.mrf.mxu0
        %v2267 = vadd.f32 0.0, %v2266
        %v2268 = vpop.f32.mrf.mxu0
        %v2269 = vpop.f32.mrf.mxu0
        %v2270 = vadd.f32 0.0, %v2269
        %v2271 = vpop.f32.mrf.mxu0
        %2272 = vdwg.mxu0
        %v2273 = vadd.f32 %v2043, %v2267
        %v2274 = vadd.f32 %v2044, %v2270
        %v2275 = vlaneseq
        %v2276 = vshrl.u32 %v2275, 7
        %v2277 = vsub.s32 5, %v2276
        %v2278 = vrot.slane %v921, %v2277
        %v2279 = vadd.f32 %v2273, %v2278
        %v2280 = vadd.f32 %v2274, %v2278
        %2281 = vst.msk [vmem:[#allocation2] sm:$0xff] %vm922, %v2279
        %2282 = vst.msk [vmem:[#allocation2 + $0x8] sm:$0x3] %vm926, %v2280
        %p2283 = scmp.eq.s32.totalorder %s30, 1
        // Predicated region
        $region77: #{clip_super_forward.1} parent=71 // pred_check
          %p2284 = pneg %p2283
        $region78: #{clip_super_forward.1} parent=71 // pred_check_branch
          %2286 = sbr.rel (%p2284) target = $region80
        $region79: #{clip_super_forward.1} parent=71 // pred_region
          %v2288 = vrot.slane %v2279, 4
          %vm2290 = vcmask 1040384
          %v2291 = vsel %vm2290, %v2279, %v2288
          %v2292 = vld [vmem:[%s3 + $0x2] sm:$0x1]
          %v2293 = vld [vmem:[%s3 + $0x3] sm:$0x1]
          %v2294 = vsel %vm926, %v2291, 0.0
          %2295 = vadd.xlane.f32.xlu0 %v2294
          %v2296 = vpop.xlane.xlu0 %2295
          %v2297 = vmul.f32 %v2296, %v930
          %v2298 = vsub.f32 %v2291, %v2297
          %v2299 = vmul.f32 %v2298, %v2298
          %v2300 = vsel %vm926, %v2299, 0.0
          %2301 = vadd.xlane.f32.xlu0 %v2300
          %v2302 = vpop.xlane.xlu0 %2301
          %v2303 = vmul.f32 %v2302, %v930
          %v2304 = vadd.f32 %v2303, 1e-05
          %v2305 = vrsqrt.pop %v2304
          %v2306 = vmul.f32 %v2298, %v2305
          %v2307 = vlaneseq
          %v2308 = vshrl.u32 %v2307, 7
          %v2309 = vsub.s32 0, %v2308
          %v2310 = vrot.slane %v2292, %v2309
          %v2311 = vmul.f32 %v2306, %v2310
          %v2312 = vlaneseq
          %v2313 = vshrl.u32 %v2312, 7
          %v2314 = vsub.s32 0, %v2313
          %v2315 = vrot.slane %v2293, %v2314
          %v2316 = vadd.f32 %v2311, %v2315
          %v2317 = vld [vmem:[%s11] sm:$0xf]
          %v2318 = vld [vmem:[%s11 + $0x4] sm:$0xf]
          %v2319 = vld [vmem:[%s11 + $0x8] sm:$0xf]
          %v2320 = vld [vmem:[%s11 + $0xc] sm:$0xf]
          %v2321 = vpack.c.bf16 %v2316, %v2316
          %v2326 = vunpack.c.l.b16 %v2317
          %v2327 = vunpack.c.l.b16 %v2318
          %v2328 = vunpack.c.l.b16 %v2319
          %v2329 = vunpack.c.l.b16 %v2320
          %v2330 = vpack.c.b16 %v2327, %v2326
          %v2331 = vpack.c.b16 %v2329, %v2328
          %v2335 = vsel %vm922, %v2321, 0
          %2337 = vmatprep.subr.bf16.mxu0 0
          %2338 = vmatpush1.bf16.msra.mxu0 0
          %2339 = vmatprep.subr.bf16.mxu0 0
          %2340 = vmatpush1.bf16.msra.mxu0 0
          %2341 = vmatprep.subr.bf16.mxu0 0
          %2342 = vmatpush1.bf16.msra.mxu0 0
          %2343 = vmatprep.subr.bf16.mxu0 0
          %2344 = vmatpush1.bf16.msra.mxu0 0
          %2345 = vmatprep.subr.bf16.mxu0 0
          %2346 = vmatpush1.bf16.msra.mxu0 0
          %2347 = vmatprep.subr.bf16.mxu0 0
          %2348 = vmatpush1.bf16.msra.mxu0 0
          %2349 = vmatprep.subr.bf16.mxu0 0
          %2350 = vmatpush1.bf16.msra.mxu0 %v2331
          %2351 = vmatprep.subr.bf16.mxu0 0
          %2352 = vmatpush1.bf16.msra.mxu0 %v2330
          %2353 = vmatprep.subr.bf16.mxu0 0
          %2354 = vmatpush2.bf16.msra.mxu0 0
          %2355 = vmatprep.subr.bf16.mxu0 0
          %2356 = vmatpush2.bf16.msra.mxu0 0
          %2357 = vmatprep.subr.bf16.mxu0 0
          %2358 = vmatpush2.bf16.msra.mxu0 0
          %2359 = vmatprep.subr.bf16.mxu0 0
          %2360 = vmatpush2.bf16.msra.mxu0 0
          %2361 = vmatprep.subr.bf16.mxu0 0
          %2362 = vmatpush2.bf16.msra.mxu0 0
          %2363 = vmatprep.subr.bf16.mxu0 0
          %2364 = vmatpush2.bf16.msra.mxu0 0
          %2365 = vmatprep.subr.bf16.mxu0 0
          %2366 = vmatpush2.bf16.msra.mxu0 0
          %2367 = vmatprep.subr.bf16.mxu0 0
          %2368 = vmatpush2.bf16.msra.mxu0 0
          %2369 = vmatprep.mubr.bf16.mxu0 0
          %2370 = vmatmul.mubr.bf16.gmra.mxu0 %v2335
          %v2371 = vpop.f32.mrf.mxu0
          %v2372 = vadd.f32 0.0, %v2371
          %v2373 = vpop.f32.mrf.mxu0
          %v2374 = vpop.f32.mrf.mxu0
          %v2375 = vpop.f32.mrf.mxu0
          %2376 = vdwg.mxu0
          %v2377 = vmul.f32 %v2372, %v2372
          %vm2378 = vcmask 123904
          %v2379 = vsel %vm2378, %v2377, 0.0
          %2380 = vadd.xlane.f32.xlu0 %v2379
          %v2381 = vpop.xlane.xlu0 %2380
          %v2382 = vadd.f32 %v2381, 1e-12
          %v2383 = vrsqrt.pop %v2382
          %v2384 = vmul.f32 %v2372, %v2383
          %v2385 = vld [vmem:[%s12] sm:$0xf]
          %v2386 = vld [vmem:[%s12 + $0x4] sm:$0xf]
          %v2387 = vpack.c.bf16 %v2384, %v2384
          %v2390 = vunpack.c.l.b16 %v2385
          %v2391 = vunpack.c.l.b16 %v2386
          %v2392 = vpack.c.b16 %v2391, %v2390
          %vm2394 = vcmask 130048
          %v2396 = vsel %vm2394, %v2387, 0
          %2398 = vmatprep.subr.bf16.mxu0 0
          %2399 = vmatpush1.bf16.msra.mxu0 0
          %2400 = vmatprep.subr.bf16.mxu0 0
          %2401 = vmatpush1.bf16.msra.mxu0 0
          %2402 = vmatprep.subr.bf16.mxu0 0
          %2403 = vmatpush1.bf16.msra.mxu0 0
          %2404 = vmatprep.subr.bf16.mxu0 0
          %2405 = vmatpush1.bf16.msra.mxu0 0
          %2406 = vmatprep.subr.bf16.mxu0 0
          %2407 = vmatpush1.bf16.msra.mxu0 0
          %2408 = vmatprep.subr.bf16.mxu0 0
          %2409 = vmatpush1.bf16.msra.mxu0 0
          %2410 = vmatprep.subr.bf16.mxu0 0
          %2411 = vmatpush1.bf16.msra.mxu0 0
          %2412 = vmatprep.subr.bf16.mxu0 0
          %2413 = vmatpush1.bf16.msra.mxu0 %v2392
          %2414 = vmatprep.subr.bf16.mxu0 0
          %2415 = vmatpush2.bf16.msra.mxu0 0
          %2416 = vmatprep.subr.bf16.mxu0 0
          %2417 = vmatpush2.bf16.msra.mxu0 0
          %2418 = vmatprep.subr.bf16.mxu0 0
          %2419 = vmatpush2.bf16.msra.mxu0 0
          %2420 = vmatprep.subr.bf16.mxu0 0
          %2421 = vmatpush2.bf16.msra.mxu0 0
          %2422 = vmatprep.subr.bf16.mxu0 0
          %2423 = vmatpush2.bf16.msra.mxu0 0
          %2424 = vmatprep.subr.bf16.mxu0 0
          %2425 = vmatpush2.bf16.msra.mxu0 0
          %2426 = vmatprep.subr.bf16.mxu0 0
          %2427 = vmatpush2.bf16.msra.mxu0 0
          %2428 = vmatprep.subr.bf16.mxu0 0
          %2429 = vmatpush2.bf16.msra.mxu0 0
          %2430 = vmatprep.mubr.bf16.mxu0 0
          %2431 = vmatmul.mubr.bf16.gmra.mxu0 %v2396
          %v2432 = vpop.f32.mrf.mxu0
          %v2433 = vadd.f32 0.0, %v2432
          %v2434 = vpop.f32.mrf.mxu0
          %v2435 = vpop.f32.mrf.mxu0
          %v2436 = vpop.f32.mrf.mxu0
          %2437 = vdwg.mxu0
          %v2438 = vlaneseq
          %v2439 = vand.u32 %v2438, 127
          %vm2440 = vcmp.lt.s32.totalorder %v2439, 8
          %v2441 = vsel %vm2440, %v2433, -1e+30
          %v2442 = vsel %vm1103, %v2441, -inf
          %2443 = vmax.xlane.f32.xlu0 %v2442
          %v2444 = vpop.xlane.xlu0 %2443
          %v2445 = vsub.f32 %v2441, %v2444
          %v2446 = vmul.f32 %v2445, 1.442695
          %v2447 = vpow.pop %v2446
          %v2448 = vsel %vm1103, %v2447, 0.0
          %2449 = vadd.xlane.f32.xlu0 %v2448
          %v2450 = vpop.xlane.xlu0 %2449
          %v2451 = vrcp.pop %v2450
          %v2452 = vmul.f32 %v2447, %v2451
          %2453 = vst [vmem:[#allocation4] sm:$0x3] %v2452
        $region80: #{clip_super_forward.1} parent=71 // pred_fallthru
          _
        // Predicated region
        $region81: #{clip_super_forward.1} parent=71 // pred_check
          %p2454 = pneg %p368
        $region82: #{clip_super_forward.1} parent=71 // pred_check_branch
          %2456 = sbr.rel (%p2454) target = $region84
        $region83: #{clip_super_forward.1} parent=71 // pred_region
          %s2458 = ssub.s32 32, 32
          %2459 = vsyncadd [#allocation5], %s2458
          %s2460 = smul.addr %s29, 32
          %s2461 = scalar_lea.hbm %s13, %s2460
          %s2463 = sshll.u32 [#allocation4], 4
          %s2464 = int_to_ptr.vmem [resolvable:$true] %s2463
          %2466 = dma.vmem_to_hbm [thread:$0]  %s2464, 32, %s2461, [#allocation5]
        $region84: #{clip_super_forward.1} parent=71 // pred_fallthru
          _
        // Predicated region
        $region85: #{clip_super_forward.1} parent=71 // pred_check
          %p2467 = pneg %p368
        $region86: #{clip_super_forward.1} parent=71 // pred_check_branch
          %2469 = sbr.rel (%p2467) target = $region88
        $region87: #{clip_super_forward.1} parent=71 // pred_region
          %2470 = dma.done [#allocation5], 32
        $region88: #{clip_super_forward.1} parent=71 // pred_fallthru
          _
      $region72: #{clip_super_forward.1} parent=5 // pred_fallthru
        _
      %p2471 = scmp.le.s32.totalorder 2, %s20
      // Predicated region
      $region89: #{clip_super_forward.1} parent=5 // pred_check
        %p2472 = pneg %p2471
      $region90: #{clip_super_forward.1} parent=5 // pred_check_branch
        %2474 = sbr.rel (%p2472) target = $region92
      $region91: #{clip_super_forward.1} parent=5 // pred_region
        %s2475 = ssub.s32 %s20, 2
      $region92: #{clip_super_forward.1} parent=5 // pred_fallthru
        _
    $region6: #{clip_super_forward.1} parent=1 // loop_footer
      %s24 = sadd.s32 1, %s20
    $region7: #{clip_super_forward.1} parent=1 // loop_footer_branch
      %19 = sbr.rel target = $region3
    $region8: #{clip_super_forward.1} parent=1 // loop_exit
      _
    %2476 = vsyncpa [#allocation5], 1
    %s2477 = scalar_lea.sflag [#allocation5], 1
    %2478 = vsyncpa %s2477, 1

</llo_original>
